<compile_context>
chip_gen: v7x
topology: tpu7x:2x2x1
jax: 0.10.0
libtpu: 0.0.40
codegen_flags: <defaults>
</compile_context>

<pallas_src>
import functools
import math

import jax
import jax.numpy as jnp
from jax.experimental import pallas as pl
from jax.experimental.pallas import tpu as pltpu


# ---------------------------------------------------------------------------
# Fused kernel: conv subsample + PE -> L encoder layers -> logits + log-softmax
# ---------------------------------------------------------------------------

def _fused_ctc_kernel(src_ref, pe_ref, cw1_ref, cb1_ref, cw2_ref, cb2_ref,
                      wqkv_ref, bqkv_ref, wo_ref, bo_ref, ln1g_ref, ln1b_ref,
                      w1_ref, b1_ref, w2_ref, b2_ref, ln2g_ref, ln2b_ref,
                      ow_ref, ob_ref,
                      o_ref, acc_ref,
                      *, H, dk, scale, T2, V, eps=1e-5):
    """Grid = (B, L).  b ('parallel') selects the batch element, l
    ('arbitrary') is the layer.  acc_ref carries the (T2, D) activation in
    VMEM across layers; only the final log-probs block is stored to HBM."""
    l = pl.program_id(1)
    last = pl.num_programs(1) - 1
    D = H * dk
    bf16 = jnp.bfloat16
    f32 = jnp.float32
    dot = functools.partial(jnp.dot, preferred_element_type=f32)

    def layer_norm(h, g, b):
        mu = jnp.mean(h, axis=-1, keepdims=True)
        var = jnp.mean(jnp.square(h - mu), axis=-1, keepdims=True)
        return (h - mu) * jax.lax.rsqrt(var + eps) * g + b

    # ---- prologue (once per batch): 2x Conv1d(k=3, s=2) + positional enc ---
    @pl.when(l == 0)
    def _():
        Te, To = T2 + 1, T2                  # even / odd conv1 rows needed
        xg = src_ref[...]                    # (Te, 4*Cin): 4 frames per row
        Cin = xg.shape[-1] // 4
        xb = xg.astype(bf16)

        # conv1 row 2s   (even) uses input frames 4s+0, 4s+1, 4s+2
        ye = (dot(xb[:, 0 * Cin:1 * Cin], cw1_ref[0])
              + dot(xb[:, 1 * Cin:2 * Cin], cw1_ref[1])
              + dot(xb[:, 2 * Cin:3 * Cin], cw1_ref[2])
              + cb1_ref[...])                                   # (Te, D)
        # conv1 row 2s+1 (odd)  uses input frames 4s+2, 4s+3, 4s+4
        yo = (dot(xb[:To, 2 * Cin:3 * Cin], cw1_ref[0])
              + dot(xb[:To, 3 * Cin:4 * Cin], cw1_ref[1])
              + dot(xb[1:Te, 0 * Cin:1 * Cin], cw1_ref[2])
              + cb1_ref[...])                                   # (To, D)
        # conv2 row t uses conv1 rows 2t, 2t+1, 2t+2 = ye[t], yo[t], ye[t+1]
        x0 = (dot(ye[:T2].astype(bf16), cw2_ref[0])
              + dot(yo.astype(bf16), cw2_ref[1])
              + dot(ye[1:Te].astype(bf16), cw2_ref[2])
              + cb2_ref[...] + pe_ref[...])                     # (T2, D)
        acc_ref[...] = x0

    # ---- encoder layer l: MHA -> Add&LN -> FFN(ReLU) -> Add&LN (post-LN) ---
    x = acc_ref[...]                                            # (T2, D) f32

    # fused QKV projection: one MXU pass with N = 3*D
    qkv = dot(x.astype(bf16), wqkv_ref[...]) + bqkv_ref[...]    # (T2, 3D) f32
    q = qkv[:, 0 * D:1 * D]
    k = qkv[:, 1 * D:2 * D]
    v = qkv[:, 2 * D:3 * D]

    # attention: batch handled by the grid, static loop over heads with
    # transpose-free contractions; heads joined by a single lane concat.
    heads = []
    for hi in range(H):
        sl = slice(hi * dk, (hi + 1) * dk)
        qh = q[:, sl].astype(bf16)
        kh = k[:, sl].astype(bf16)
        vh = v[:, sl].astype(bf16)
        s = jax.lax.dot_general(qh, kh, (((1,), (1,)), ((), ())),
                                preferred_element_type=f32) * scale
        m = jnp.max(s, axis=-1, keepdims=True)
        p = jnp.exp(s - m)
        p = p / jnp.sum(p, axis=-1, keepdims=True)       # exact softmax
        heads.append(dot(p.astype(bf16), vh))
    ctx = jnp.concatenate(heads, axis=-1)                       # (T2, D) f32

    attn = dot(ctx.astype(bf16), wo_ref[...]) + bo_ref[...]
    h1 = layer_norm(x + attn, ln1g_ref[...], ln1b_ref[...])

    ff = jnp.maximum(dot(h1.astype(bf16), w1_ref[...]) + b1_ref[...], 0.0)
    ff = dot(ff.astype(bf16), w2_ref[...]) + b2_ref[...]
    h2 = layer_norm(h1 + ff, ln2g_ref[...], ln2b_ref[...])

    # carry to the next layer (skip the redundant store on the last layer)
    @pl.when(l != last)
    def _():
        acc_ref[...] = h2

    # ---- epilogue (last layer): vocab projection + log-softmax, lane-dense -
    @pl.when(l == last)
    def _():
        z = dot(h2.astype(bf16), ow_ref[...]) + ob_ref[...]     # (T2, Vpad)
        col = jax.lax.broadcasted_iota(jnp.int32, z.shape, 1)
        z = jnp.where(col < V, z, -1e30)     # keep lane padding out of softmax
        m = jnp.max(z, axis=-1, keepdims=True)
        lse = jnp.log(jnp.sum(jnp.exp(z - m), axis=-1, keepdims=True)) + m
        o_ref[...] = (z - lse).astype(o_ref.dtype)


def pallas_ctc_forward(src_g, pe, params, *, n_head, T2, V):
    """src_g: (B, T2+1, 4*Cin) frame-grouped input, pe: (T2, D)."""
    B, Te, C4 = src_g.shape
    lp = params["layers"]
    L, D, _ = lp["wqkv"].shape
    F = lp["w1"].shape[-1]
    Vpad = params["out_w"].shape[-1]
    Cin = C4 // 4
    dk = D // n_head
    scale = 1.0 / math.sqrt(dk)

    def const(shape):                       # block index never changes
        return pl.BlockSpec(shape, lambda b, l: (0,) * len(shape))

    def per_layer(rows, cols):              # stacked per-layer weights
        return pl.BlockSpec((None, rows, cols), lambda b, l: (l, 0, 0))

    kernel = functools.partial(_fused_ctc_kernel, H=n_head, dk=dk,
                               scale=scale, T2=T2, V=V)

    return pl.pallas_call(
        kernel,
        out_shape=jax.ShapeDtypeStruct((B, T2, Vpad), jnp.float32),
        grid=(B, L),
        in_specs=[
            pl.BlockSpec((None, Te, C4), lambda b, l: (b, 0, 0)),   # src groups
            const((T2, D)),                                         # pos. enc.
            const((3, Cin, D)), const((1, D)),                      # conv1 w, b
            const((3, D, D)), const((1, D)),                        # conv2 w, b
            per_layer(D, 3 * D), per_layer(1, 3 * D),               # wqkv, bqkv
            per_layer(D, D), per_layer(1, D),                       # wo, bo
            per_layer(1, D), per_layer(1, D),                       # ln1 g, b
            per_layer(D, F), per_layer(1, F),                       # ffn w1, b1
            per_layer(F, D), per_layer(1, D),                       # ffn w2, b2
            per_layer(1, D), per_layer(1, D),                       # ln2 g, b
            const((D, Vpad)), const((1, Vpad)),                     # out proj
        ],
        out_specs=pl.BlockSpec((None, T2, Vpad), lambda b, l: (b, 0, 0)),
        scratch_shapes=[pltpu.VMEM((T2, D), jnp.float32)],
        compiler_params=pltpu.CompilerParams(
            dimension_semantics=("parallel", "arbitrary")),
    )(src_g, pe,
      params["conv1_w"], params["conv1_b"],
      params["conv2_w"], params["conv2_b"],
      lp["wqkv"], lp["bqkv"], lp["wo"], lp["bo"],
      lp["ln1_g"], lp["ln1_b"], lp["w1"], lp["b1"],
      lp["w2"], lp["b2"], lp["ln2_g"], lp["ln2_b"],
      params["out_w"], params["out_b"])


# ---------------------------------------------------------------------------
# JAX glue (layout plumbing only) and forward pass
# ---------------------------------------------------------------------------

def sinusoidal_pe(seq_len, d_model):
    pos = jnp.arange(seq_len, dtype=jnp.float32)[:, None]
    div = jnp.exp(jnp.arange(0, d_model, 2, dtype=jnp.float32)
                  * (-math.log(10000.0) / d_model))
    pe = jnp.zeros((seq_len, d_model), jnp.float32)
    pe = pe.at[:, 0::2].set(jnp.sin(pos * div))
    pe = pe.at[:, 1::2].set(jnp.cos(pos * div))
    return pe


def ctc_self_attention_forward(src, params, *, n_head, dec_voc_size):
    B, Cin, T_in = src.shape
    D = params["conv1_b"].shape[-1]
    T1 = (T_in - 3) // 2 + 1
    T2 = (T1 - 3) // 2 + 1
    assert T2 >= 1, "input too short for two stride-2 convs"

    # Channels-last, then pack 4 consecutive frames per row so both stride-2
    # convolutions become contiguous lane/row slices inside the kernel
    # (no gather, no im2col materialization, no strided loads).
    src_cl = jnp.transpose(src, (0, 2, 1))                   # (B, T_in, Cin)
    rows = 4 * (T2 + 1)
    if rows > T_in:
        src_cl = jnp.pad(src_cl, ((0, 0), (0, rows - T_in), (0, 0)))
    src_g = src_cl[:, :rows, :].reshape(B, T2 + 1, 4 * Cin)

    pe = sinusoidal_pe(T2, D)

    out = pallas_ctc_forward(src_g, pe, params, n_head=n_head, T2=T2,
                             V=dec_voc_size)
    # TODO(synk): a downstream CTC loss/decoder could consume the 128-lane
    # padded layout directly; slicing here keeps the module's (B, T, vocab)
    # output contract.
    return out[:, :, :dec_voc_size]


# ---------------------------------------------------------------------------
# Parameters (deterministic synthetic init)
# ---------------------------------------------------------------------------

def init_params(key, features_length, d_model, d_ff, n_layers, dec_voc_size):
    f32, bf16 = jnp.float32, jnp.bfloat16
    keys = iter(jax.random.split(key, 3 + 6 * n_layers))

    def dense(k, din, dout):
        return 0.02 * jax.random.normal(k, (din, dout), f32)

    # Conv1d weights stored tap-major (k, Cin, Cout) (PyTorch (Cout, Cin, k)
    # transposed) so each tap is a ready (Cin, Cout) matmul operand.
    # Matmul weights are bf16 (MXU inputs, halves weight DMA); biases and
    # LayerNorm parameters stay f32.
    params = {
        "conv1_w": (0.02 * jax.random.normal(
            next(keys), (3, features_length, d_model), f32)).astype(bf16),
        "conv1_b": jnp.zeros((1, d_model), f32),
        "conv2_w": (0.02 * jax.random.normal(
            next(keys), (3, d_model, d_model), f32)).astype(bf16),
        "conv2_b": jnp.zeros((1, d_model), f32),
    }

    names = ["wqkv", "bqkv", "wo", "bo", "ln1_g", "ln1_b",
             "w1", "b1", "w2", "b2", "ln2_g", "ln2_b"]
    stk = {n: [] for n in names}
    for _ in range(n_layers):
        wq = dense(next(keys), d_model, d_model)
        wk = dense(next(keys), d_model, d_model)
        wv = dense(next(keys), d_model, d_model)
        wo = dense(next(keys), d_model, d_model)
        wf1 = dense(next(keys), d_model, d_ff)
        wf2 = dense(next(keys), d_ff, d_model)
        stk["wqkv"].append(jnp.concatenate([wq, wk, wv], axis=1))   # (D, 3D)
        stk["bqkv"].append(jnp.zeros((1, 3 * d_model), f32))
        stk["wo"].append(wo)
        stk["bo"].append(jnp.zeros((1, d_model), f32))
        stk["ln1_g"].append(jnp.ones((1, d_model), f32))
        stk["ln1_b"].append(jnp.zeros((1, d_model), f32))
        stk["w1"].append(wf1)
        stk["b1"].append(jnp.zeros((1, d_ff), f32))
        stk["w2"].append(wf2)
        stk["b2"].append(jnp.zeros((1, d_model), f32))
        stk["ln2_g"].append(jnp.ones((1, d_model), f32))
        stk["ln2_b"].append(jnp.zeros((1, d_model), f32))

    mxu_weights = {"wqkv", "wo", "w1", "w2"}
    layers = {}
    for n, v in stk.items():
        arr = jnp.stack(v)
        layers[n] = arr.astype(bf16) if n in mxu_weights else arr
    params["layers"] = layers

    v_pad = ((dec_voc_size + 127) // 128) * 128       # lane-dense vocab dim
    ow = dense(next(keys), d_model, dec_voc_size)
    out_w = jnp.zeros((d_model, v_pad), f32).at[:, :dec_voc_size].set(ow)
    params["out_w"] = out_w.astype(bf16)
    params["out_b"] = jnp.zeros((1, v_pad), f32)
    return params


# ---------------------------------------------------------------------------
# Main
# ---------------------------------------------------------------------------

if __name__ == "__main__":
    B = 2
    features_length = 16      # conv in_channels
    T_in = 67                 # input frames -> 33 after conv1 -> 16 after conv2
    d_model = 32
    n_head = 4
    d_feed_forward = 64
    n_enc_layers = 2
    dec_voc_size = 40

    root = jax.random.PRNGKey(0)
    k_params, k_data = jax.random.split(root)

    params = init_params(k_params, features_length, d_model,
                         d_feed_forward, n_enc_layers, dec_voc_size)
    src = jax.random.normal(k_data, (B, features_length, T_in), jnp.float32)

    fwd = jax.jit(functools.partial(ctc_self_attention_forward,
                                    n_head=n_head, dec_voc_size=dec_voc_size))
    out = jax.block_until_ready(fwd(src, params))

    T_out = (((T_in - 3) // 2 + 1) - 3) // 2 + 1
    assert out.shape == (B, T_out, dec_voc_size), out.shape
    # log_softmax rows must sum to ~1 in probability space
    row_sums = jnp.sum(jnp.exp(out), axis=-1)
    assert bool(jnp.all(jnp.abs(row_sums - 1.0) < 1e-3)), row_sums
    assert bool(jnp.all(jnp.isfinite(out)))
    print("KERNEL_OK")
</pallas_src>

<mosaic_0001>
module attributes {stable_mosaic.version = 11 : i64} {
  func.func @_fused_ctc_kernel(%arg0: i32, %arg1: i32, %arg2: memref<1x17x64xf32, #tpu.memory_space<vmem>>, %arg3: memref<16x32xf32, #tpu.memory_space<vmem>>, %arg4: memref<3x16x32xbf16, #tpu.memory_space<vmem>>, %arg5: memref<1x32xf32, #tpu.memory_space<vmem>>, %arg6: memref<3x32x32xbf16, #tpu.memory_space<vmem>>, %arg7: memref<1x32xf32, #tpu.memory_space<vmem>>, %arg8: memref<1x32x96xbf16, #tpu.memory_space<vmem>>, %arg9: memref<1x1x96xf32, #tpu.memory_space<vmem>>, %arg10: memref<1x32x32xbf16, #tpu.memory_space<vmem>>, %arg11: memref<1x1x32xf32, #tpu.memory_space<vmem>>, %arg12: memref<1x1x32xf32, #tpu.memory_space<vmem>>, %arg13: memref<1x1x32xf32, #tpu.memory_space<vmem>>, %arg14: memref<1x32x64xbf16, #tpu.memory_space<vmem>>, %arg15: memref<1x1x64xf32, #tpu.memory_space<vmem>>, %arg16: memref<1x64x32xbf16, #tpu.memory_space<vmem>>, %arg17: memref<1x1x32xf32, #tpu.memory_space<vmem>>, %arg18: memref<1x1x32xf32, #tpu.memory_space<vmem>>, %arg19: memref<1x1x32xf32, #tpu.memory_space<vmem>>, %arg20: memref<32x128xbf16, #tpu.memory_space<vmem>>, %arg21: memref<1x128xf32, #tpu.memory_space<vmem>>, %arg22: memref<1x16x128xf32, #tpu.memory_space<vmem>>, %arg23: memref<16x32xf32, #tpu.memory_space<vmem>>) attributes {dimension_semantics = [#tpu.dimension_semantics<parallel>, #tpu.dimension_semantics<arbitrary>], iteration_bounds = array<i64: 2, 2>, scalar_prefetch = 0 : i64, scratch_operands = 1 : i64, tpu.core_type = #tpu.core_type<tc>, window_params = [{transform_indices = @transform_0, window_bounds = array<i64: 1, 17, 64>}, {pipeline_mode = #tpu.pipeline_mode<synchronous>, transform_indices = @transform_1, window_bounds = array<i64: 16, 32>}, {pipeline_mode = #tpu.pipeline_mode<synchronous>, transform_indices = @transform_2, window_bounds = array<i64: 3, 16, 32>}, {pipeline_mode = #tpu.pipeline_mode<synchronous>, transform_indices = @transform_3, window_bounds = array<i64: 1, 32>}, {pipeline_mode = #tpu.pipeline_mode<synchronous>, transform_indices = @transform_4, window_bounds = array<i64: 3, 32, 32>}, {pipeline_mode = #tpu.pipeline_mode<synchronous>, transform_indices = @transform_5, window_bounds = array<i64: 1, 32>}, {transform_indices = @transform_6, window_bounds = array<i64: 1, 32, 96>}, {transform_indices = @transform_7, window_bounds = array<i64: 1, 1, 96>}, {transform_indices = @transform_8, window_bounds = array<i64: 1, 32, 32>}, {transform_indices = @transform_9, window_bounds = array<i64: 1, 1, 32>}, {transform_indices = @transform_10, window_bounds = array<i64: 1, 1, 32>}, {transform_indices = @transform_11, window_bounds = array<i64: 1, 1, 32>}, {transform_indices = @transform_12, window_bounds = array<i64: 1, 32, 64>}, {transform_indices = @transform_13, window_bounds = array<i64: 1, 1, 64>}, {transform_indices = @transform_14, window_bounds = array<i64: 1, 64, 32>}, {transform_indices = @transform_15, window_bounds = array<i64: 1, 1, 32>}, {transform_indices = @transform_16, window_bounds = array<i64: 1, 1, 32>}, {transform_indices = @transform_17, window_bounds = array<i64: 1, 1, 32>}, {pipeline_mode = #tpu.pipeline_mode<synchronous>, transform_indices = @transform_18, window_bounds = array<i64: 32, 128>}, {pipeline_mode = #tpu.pipeline_mode<synchronous>, transform_indices = @transform_19, window_bounds = array<i64: 1, 128>}, {transform_indices = @transform_20, window_bounds = array<i64: 1, 16, 128>}]} {
    %c0_i32 = arith.constant 0 : i32
    %0 = arith.cmpi eq, %arg1, %c0_i32 : i32
    %1 = arith.extui %0 : i1 to i32
    %c0_i32_0 = arith.constant 0 : i32
    %2 = arith.cmpi ne, %1, %c0_i32_0 : i32
    scf.if %2 {
      %c0_75 = arith.constant 0 : index
      %c0_76 = arith.constant 0 : index
      %c0_77 = arith.constant 0 : index
      %182 = vector.load %arg2[%c0_75, %c0_76, %c0_77] : memref<1x17x64xf32, #tpu.memory_space<vmem>>, vector<1x17x64xf32>
      %183 = vector.shape_cast %182 : vector<1x17x64xf32> to vector<17x64xf32>
      %184 = arith.truncf %183 : vector<17x64xf32> to vector<17x64xbf16>
      %185 = vector.extract_strided_slice %184 {offsets = [0, 0], sizes = [17, 16], strides = [1, 1]} : vector<17x64xbf16> to vector<17x16xbf16>
      %c0_78 = arith.constant 0 : index
      %c0_79 = arith.constant 0 : index
      %c0_80 = arith.constant 0 : index
      %186 = vector.load %arg4[%c0_78, %c0_79, %c0_80] : memref<3x16x32xbf16, #tpu.memory_space<vmem>>, vector<1x16x32xbf16>
      %187 = vector.shape_cast %186 : vector<1x16x32xbf16> to vector<16x32xbf16>
      %cst_81 = arith.constant dense<0.000000e+00> : vector<17x32xf32>
      %188 = tpu.matmul %185, %187, %cst_81 {dimension_numbers = #tpu.dot_dimension_numbers<[1], [0], [0], [1], [0, 0, 1, 1], [], []>} : vector<17x16xbf16>, vector<16x32xbf16>, vector<17x32xf32> -> vector<17x32xf32>
      %189 = vector.extract_strided_slice %184 {offsets = [0, 16], sizes = [17, 16], strides = [1, 1]} : vector<17x64xbf16> to vector<17x16xbf16>
      %c1 = arith.constant 1 : index
      %c0_82 = arith.constant 0 : index
      %c0_83 = arith.constant 0 : index
      %190 = vector.load %arg4[%c1, %c0_82, %c0_83] : memref<3x16x32xbf16, #tpu.memory_space<vmem>>, vector<1x16x32xbf16>
      %191 = vector.shape_cast %190 : vector<1x16x32xbf16> to vector<16x32xbf16>
      %cst_84 = arith.constant dense<0.000000e+00> : vector<17x32xf32>
      %192 = tpu.matmul %189, %191, %cst_84 {dimension_numbers = #tpu.dot_dimension_numbers<[1], [0], [0], [1], [0, 0, 1, 1], [], []>} : vector<17x16xbf16>, vector<16x32xbf16>, vector<17x32xf32> -> vector<17x32xf32>
      %193 = arith.addf %188, %192 : vector<17x32xf32>
      %194 = vector.extract_strided_slice %184 {offsets = [0, 32], sizes = [17, 16], strides = [1, 1]} : vector<17x64xbf16> to vector<17x16xbf16>
      %c2 = arith.constant 2 : index
      %c0_85 = arith.constant 0 : index
      %c0_86 = arith.constant 0 : index
      %195 = vector.load %arg4[%c2, %c0_85, %c0_86] : memref<3x16x32xbf16, #tpu.memory_space<vmem>>, vector<1x16x32xbf16>
      %196 = vector.shape_cast %195 : vector<1x16x32xbf16> to vector<16x32xbf16>
      %cst_87 = arith.constant dense<0.000000e+00> : vector<17x32xf32>
      %197 = tpu.matmul %194, %196, %cst_87 {dimension_numbers = #tpu.dot_dimension_numbers<[1], [0], [0], [1], [0, 0, 1, 1], [], []>} : vector<17x16xbf16>, vector<16x32xbf16>, vector<17x32xf32> -> vector<17x32xf32>
      %198 = arith.addf %193, %197 : vector<17x32xf32>
      %c0_88 = arith.constant 0 : index
      %c0_89 = arith.constant 0 : index
      %199 = vector.load %arg5[%c0_88, %c0_89] : memref<1x32xf32, #tpu.memory_space<vmem>>, vector<1x32xf32>
      %200 = vector.broadcast %199 : vector<1x32xf32> to vector<17x32xf32>
      %201 = arith.addf %198, %200 : vector<17x32xf32>
      %202 = vector.extract_strided_slice %184 {offsets = [0, 32], sizes = [16, 16], strides = [1, 1]} : vector<17x64xbf16> to vector<16x16xbf16>
      %c0_90 = arith.constant 0 : index
      %c0_91 = arith.constant 0 : index
      %c0_92 = arith.constant 0 : index
      %203 = vector.load %arg4[%c0_90, %c0_91, %c0_92] : memref<3x16x32xbf16, #tpu.memory_space<vmem>>, vector<1x16x32xbf16>
      %204 = vector.shape_cast %203 : vector<1x16x32xbf16> to vector<16x32xbf16>
      %cst_93 = arith.constant dense<0.000000e+00> : vector<16x32xf32>
      %205 = tpu.matmul %202, %204, %cst_93 {dimension_numbers = #tpu.dot_dimension_numbers<[1], [0], [0], [1], [0, 0, 1, 1], [], []>} : vector<16x16xbf16>, vector<16x32xbf16>, vector<16x32xf32> -> vector<16x32xf32>
      %206 = vector.extract_strided_slice %184 {offsets = [0, 48], sizes = [16, 16], strides = [1, 1]} : vector<17x64xbf16> to vector<16x16xbf16>
      %c1_94 = arith.constant 1 : index
      %c0_95 = arith.constant 0 : index
      %c0_96 = arith.constant 0 : index
      %207 = vector.load %arg4[%c1_94, %c0_95, %c0_96] : memref<3x16x32xbf16, #tpu.memory_space<vmem>>, vector<1x16x32xbf16>
      %208 = vector.shape_cast %207 : vector<1x16x32xbf16> to vector<16x32xbf16>
      %cst_97 = arith.constant dense<0.000000e+00> : vector<16x32xf32>
      %209 = tpu.matmul %206, %208, %cst_97 {dimension_numbers = #tpu.dot_dimension_numbers<[1], [0], [0], [1], [0, 0, 1, 1], [], []>} : vector<16x16xbf16>, vector<16x32xbf16>, vector<16x32xf32> -> vector<16x32xf32>
      %210 = arith.addf %205, %209 : vector<16x32xf32>
      %211 = vector.extract_strided_slice %184 {offsets = [1, 0], sizes = [16, 16], strides = [1, 1]} : vector<17x64xbf16> to vector<16x16xbf16>
      %c2_98 = arith.constant 2 : index
      %c0_99 = arith.constant 0 : index
      %c0_100 = arith.constant 0 : index
      %212 = vector.load %arg4[%c2_98, %c0_99, %c0_100] : memref<3x16x32xbf16, #tpu.memory_space<vmem>>, vector<1x16x32xbf16>
      %213 = vector.shape_cast %212 : vector<1x16x32xbf16> to vector<16x32xbf16>
      %cst_101 = arith.constant dense<0.000000e+00> : vector<16x32xf32>
      %214 = tpu.matmul %211, %213, %cst_101 {dimension_numbers = #tpu.dot_dimension_numbers<[1], [0], [0], [1], [0, 0, 1, 1], [], []>} : vector<16x16xbf16>, vector<16x32xbf16>, vector<16x32xf32> -> vector<16x32xf32>
      %215 = arith.addf %210, %214 : vector<16x32xf32>
      %c0_102 = arith.constant 0 : index
      %c0_103 = arith.constant 0 : index
      %216 = vector.load %arg5[%c0_102, %c0_103] : memref<1x32xf32, #tpu.memory_space<vmem>>, vector<1x32xf32>
      %217 = vector.broadcast %216 : vector<1x32xf32> to vector<16x32xf32>
      %218 = arith.addf %215, %217 : vector<16x32xf32>
      %219 = vector.extract_strided_slice %201 {offsets = [0, 0], sizes = [16, 32], strides = [1, 1]} : vector<17x32xf32> to vector<16x32xf32>
      %220 = arith.truncf %219 : vector<16x32xf32> to vector<16x32xbf16>
      %c0_104 = arith.constant 0 : index
      %c0_105 = arith.constant 0 : index
      %c0_106 = arith.constant 0 : index
      %221 = vector.load %arg6[%c0_104, %c0_105, %c0_106] : memref<3x32x32xbf16, #tpu.memory_space<vmem>>, vector<1x32x32xbf16>
      %222 = vector.shape_cast %221 : vector<1x32x32xbf16> to vector<32x32xbf16>
      %cst_107 = arith.constant dense<0.000000e+00> : vector<16x32xf32>
      %223 = tpu.matmul %220, %222, %cst_107 {dimension_numbers = #tpu.dot_dimension_numbers<[1], [0], [0], [1], [0, 0, 1, 1], [], []>} : vector<16x32xbf16>, vector<32x32xbf16>, vector<16x32xf32> -> vector<16x32xf32>
      %224 = arith.truncf %218 : vector<16x32xf32> to vector<16x32xbf16>
      %c1_108 = arith.constant 1 : index
      %c0_109 = arith.constant 0 : index
      %c0_110 = arith.constant 0 : index
      %225 = vector.load %arg6[%c1_108, %c0_109, %c0_110] : memref<3x32x32xbf16, #tpu.memory_space<vmem>>, vector<1x32x32xbf16>
      %226 = vector.shape_cast %225 : vector<1x32x32xbf16> to vector<32x32xbf16>
      %cst_111 = arith.constant dense<0.000000e+00> : vector<16x32xf32>
      %227 = tpu.matmul %224, %226, %cst_111 {dimension_numbers = #tpu.dot_dimension_numbers<[1], [0], [0], [1], [0, 0, 1, 1], [], []>} : vector<16x32xbf16>, vector<32x32xbf16>, vector<16x32xf32> -> vector<16x32xf32>
      %228 = arith.addf %223, %227 : vector<16x32xf32>
      %229 = vector.extract_strided_slice %201 {offsets = [1, 0], sizes = [16, 32], strides = [1, 1]} : vector<17x32xf32> to vector<16x32xf32>
      %230 = arith.truncf %229 : vector<16x32xf32> to vector<16x32xbf16>
      %c2_112 = arith.constant 2 : index
      %c0_113 = arith.constant 0 : index
      %c0_114 = arith.constant 0 : index
      %231 = vector.load %arg6[%c2_112, %c0_113, %c0_114] : memref<3x32x32xbf16, #tpu.memory_space<vmem>>, vector<1x32x32xbf16>
      %232 = vector.shape_cast %231 : vector<1x32x32xbf16> to vector<32x32xbf16>
      %cst_115 = arith.constant dense<0.000000e+00> : vector<16x32xf32>
      %233 = tpu.matmul %230, %232, %cst_115 {dimension_numbers = #tpu.dot_dimension_numbers<[1], [0], [0], [1], [0, 0, 1, 1], [], []>} : vector<16x32xbf16>, vector<32x32xbf16>, vector<16x32xf32> -> vector<16x32xf32>
      %234 = arith.addf %228, %233 : vector<16x32xf32>
      %c0_116 = arith.constant 0 : index
      %c0_117 = arith.constant 0 : index
      %235 = vector.load %arg7[%c0_116, %c0_117] : memref<1x32xf32, #tpu.memory_space<vmem>>, vector<1x32xf32>
      %236 = vector.broadcast %235 : vector<1x32xf32> to vector<16x32xf32>
      %237 = arith.addf %234, %236 : vector<16x32xf32>
      %c0_118 = arith.constant 0 : index
      %c0_119 = arith.constant 0 : index
      %238 = vector.load %arg3[%c0_118, %c0_119] : memref<16x32xf32, #tpu.memory_space<vmem>>, vector<16x32xf32>
      %239 = arith.addf %237, %238 : vector<16x32xf32>
      %c0_120 = arith.constant 0 : index
      %c0_121 = arith.constant 0 : index
      %240 = vector.load %arg23[%c0_120, %c0_121] : memref<16x32xf32, #tpu.memory_space<vmem>>, vector<16x32xf32>
      tpu.vector_store %arg23[%c0_120, %c0_121], %239 {strides = array<i32>} : memref<16x32xf32, #tpu.memory_space<vmem>>, vector<16x32xf32>,
    } else {
    }
    %c0 = arith.constant 0 : index
    %c0_1 = arith.constant 0 : index
    %3 = vector.load %arg23[%c0, %c0_1] : memref<16x32xf32, #tpu.memory_space<vmem>>, vector<16x32xf32>
    %4 = arith.truncf %3 : vector<16x32xf32> to vector<16x32xbf16>
    %c0_2 = arith.constant 0 : index
    %c0_3 = arith.constant 0 : index
    %c0_4 = arith.constant 0 : index
    %5 = vector.load %arg8[%c0_2, %c0_3, %c0_4] : memref<1x32x96xbf16, #tpu.memory_space<vmem>>, vector<1x32x96xbf16>
    %6 = vector.shape_cast %5 : vector<1x32x96xbf16> to vector<32x96xbf16>
    %cst = arith.constant dense<0.000000e+00> : vector<16x96xf32>
    %7 = tpu.matmul %4, %6, %cst {dimension_numbers = #tpu.dot_dimension_numbers<[1], [0], [0], [1], [0, 0, 1, 1], [], []>} : vector<16x32xbf16>, vector<32x96xbf16>, vector<16x96xf32> -> vector<16x96xf32>
    %c0_5 = arith.constant 0 : index
    %c0_6 = arith.constant 0 : index
    %c0_7 = arith.constant 0 : index
    %8 = vector.load %arg9[%c0_5, %c0_6, %c0_7] : memref<1x1x96xf32, #tpu.memory_space<vmem>>, vector<1x1x96xf32>
    %9 = vector.shape_cast %8 : vector<1x1x96xf32> to vector<1x96xf32>
    %10 = vector.broadcast %9 : vector<1x96xf32> to vector<16x96xf32>
    %11 = arith.addf %7, %10 : vector<16x96xf32>
    %12 = vector.extract_strided_slice %11 {offsets = [0, 0], sizes = [16, 32], strides = [1, 1]} : vector<16x96xf32> to vector<16x32xf32>
    %13 = vector.extract_strided_slice %11 {offsets = [0, 32], sizes = [16, 32], strides = [1, 1]} : vector<16x96xf32> to vector<16x32xf32>
    %14 = vector.extract_strided_slice %11 {offsets = [0, 64], sizes = [16, 32], strides = [1, 1]} : vector<16x96xf32> to vector<16x32xf32>
    %15 = vector.extract_strided_slice %12 {offsets = [0, 0], sizes = [16, 8], strides = [1, 1]} : vector<16x32xf32> to vector<16x8xf32>
    %16 = arith.truncf %15 : vector<16x8xf32> to vector<16x8xbf16>
    %17 = vector.extract_strided_slice %13 {offsets = [0, 0], sizes = [16, 8], strides = [1, 1]} : vector<16x32xf32> to vector<16x8xf32>
    %18 = arith.truncf %17 : vector<16x8xf32> to vector<16x8xbf16>
    %19 = vector.extract_strided_slice %14 {offsets = [0, 0], sizes = [16, 8], strides = [1, 1]} : vector<16x32xf32> to vector<16x8xf32>
    %20 = arith.truncf %19 : vector<16x8xf32> to vector<16x8xbf16>
    %cst_8 = arith.constant dense<0.000000e+00> : vector<16x16xf32>
    %21 = tpu.matmul %16, %18, %cst_8 {dimension_numbers = #tpu.dot_dimension_numbers<[1], [1], [0], [0], [0, 0, 1, 0], [], []>} : vector<16x8xbf16>, vector<16x8xbf16>, vector<16x16xf32> -> vector<16x16xf32>
    %cst_9 = arith.constant 0.353553385 : f32
    %22 = vector.broadcast %cst_9 : f32 to vector<16x16xf32>
    %23 = arith.mulf %21, %22 : vector<16x16xf32>
    %cst_10 = arith.constant dense<0xFF800000> : vector<16xf32>
    %24 = vector.multi_reduction <maximumf>, %23, %cst_10 [1] : vector<16x16xf32> to vector<16xf32>
    %25 = vector.shape_cast %24 : vector<16xf32> to vector<16x1xf32>
    %26 = vector.broadcast %25 : vector<16x1xf32> to vector<16x16xf32>
    %27 = arith.subf %23, %26 : vector<16x16xf32>
    %28 = math.exp %27 : vector<16x16xf32>
    %cst_11 = arith.constant dense<0.000000e+00> : vector<16xf32>
    %29 = vector.multi_reduction <add>, %28, %cst_11 [1] : vector<16x16xf32> to vector<16xf32>
    %30 = vector.shape_cast %29 : vector<16xf32> to vector<16x1xf32>
    %31 = vector.broadcast %30 : vector<16x1xf32> to vector<16x16xf32>
    %32 = arith.divf %28, %31 : vector<16x16xf32>
    %33 = arith.truncf %32 : vector<16x16xf32> to vector<16x16xbf16>
    %cst_12 = arith.constant dense<0.000000e+00> : vector<16x8xf32>
    %34 = tpu.matmul %33, %20, %cst_12 {dimension_numbers = #tpu.dot_dimension_numbers<[1], [0], [0], [1], [0, 0, 1, 1], [], []>} : vector<16x16xbf16>, vector<16x8xbf16>, vector<16x8xf32> -> vector<16x8xf32>
    %35 = vector.extract_strided_slice %12 {offsets = [0, 8], sizes = [16, 8], strides = [1, 1]} : vector<16x32xf32> to vector<16x8xf32>
    %36 = arith.truncf %35 : vector<16x8xf32> to vector<16x8xbf16>
    %37 = vector.extract_strided_slice %13 {offsets = [0, 8], sizes = [16, 8], strides = [1, 1]} : vector<16x32xf32> to vector<16x8xf32>
    %38 = arith.truncf %37 : vector<16x8xf32> to vector<16x8xbf16>
    %39 = vector.extract_strided_slice %14 {offsets = [0, 8], sizes = [16, 8], strides = [1, 1]} : vector<16x32xf32> to vector<16x8xf32>
    %40 = arith.truncf %39 : vector<16x8xf32> to vector<16x8xbf16>
    %cst_13 = arith.constant dense<0.000000e+00> : vector<16x16xf32>
    %41 = tpu.matmul %36, %38, %cst_13 {dimension_numbers = #tpu.dot_dimension_numbers<[1], [1], [0], [0], [0, 0, 1, 0], [], []>} : vector<16x8xbf16>, vector<16x8xbf16>, vector<16x16xf32> -> vector<16x16xf32>
    %cst_14 = arith.constant 0.353553385 : f32
    %42 = vector.broadcast %cst_14 : f32 to vector<16x16xf32>
    %43 = arith.mulf %41, %42 : vector<16x16xf32>
    %cst_15 = arith.constant dense<0xFF800000> : vector<16xf32>
    %44 = vector.multi_reduction <maximumf>, %43, %cst_15 [1] : vector<16x16xf32> to vector<16xf32>
    %45 = vector.shape_cast %44 : vector<16xf32> to vector<16x1xf32>
    %46 = vector.broadcast %45 : vector<16x1xf32> to vector<16x16xf32>
    %47 = arith.subf %43, %46 : vector<16x16xf32>
    %48 = math.exp %47 : vector<16x16xf32>
    %cst_16 = arith.constant dense<0.000000e+00> : vector<16xf32>
    %49 = vector.multi_reduction <add>, %48, %cst_16 [1] : vector<16x16xf32> to vector<16xf32>
    %50 = vector.shape_cast %49 : vector<16xf32> to vector<16x1xf32>
    %51 = vector.broadcast %50 : vector<16x1xf32> to vector<16x16xf32>
    %52 = arith.divf %48, %51 : vector<16x16xf32>
    %53 = arith.truncf %52 : vector<16x16xf32> to vector<16x16xbf16>
    %cst_17 = arith.constant dense<0.000000e+00> : vector<16x8xf32>
    %54 = tpu.matmul %53, %40, %cst_17 {dimension_numbers = #tpu.dot_dimension_numbers<[1], [0], [0], [1], [0, 0, 1, 1], [], []>} : vector<16x16xbf16>, vector<16x8xbf16>, vector<16x8xf32> -> vector<16x8xf32>
    %55 = vector.extract_strided_slice %12 {offsets = [0, 16], sizes = [16, 8], strides = [1, 1]} : vector<16x32xf32> to vector<16x8xf32>
    %56 = arith.truncf %55 : vector<16x8xf32> to vector<16x8xbf16>
    %57 = vector.extract_strided_slice %13 {offsets = [0, 16], sizes = [16, 8], strides = [1, 1]} : vector<16x32xf32> to vector<16x8xf32>
    %58 = arith.truncf %57 : vector<16x8xf32> to vector<16x8xbf16>
    %59 = vector.extract_strided_slice %14 {offsets = [0, 16], sizes = [16, 8], strides = [1, 1]} : vector<16x32xf32> to vector<16x8xf32>
    %60 = arith.truncf %59 : vector<16x8xf32> to vector<16x8xbf16>
    %cst_18 = arith.constant dense<0.000000e+00> : vector<16x16xf32>
    %61 = tpu.matmul %56, %58, %cst_18 {dimension_numbers = #tpu.dot_dimension_numbers<[1], [1], [0], [0], [0, 0, 1, 0], [], []>} : vector<16x8xbf16>, vector<16x8xbf16>, vector<16x16xf32> -> vector<16x16xf32>
    %cst_19 = arith.constant 0.353553385 : f32
    %62 = vector.broadcast %cst_19 : f32 to vector<16x16xf32>
    %63 = arith.mulf %61, %62 : vector<16x16xf32>
    %cst_20 = arith.constant dense<0xFF800000> : vector<16xf32>
    %64 = vector.multi_reduction <maximumf>, %63, %cst_20 [1] : vector<16x16xf32> to vector<16xf32>
    %65 = vector.shape_cast %64 : vector<16xf32> to vector<16x1xf32>
    %66 = vector.broadcast %65 : vector<16x1xf32> to vector<16x16xf32>
    %67 = arith.subf %63, %66 : vector<16x16xf32>
    %68 = math.exp %67 : vector<16x16xf32>
    %cst_21 = arith.constant dense<0.000000e+00> : vector<16xf32>
    %69 = vector.multi_reduction <add>, %68, %cst_21 [1] : vector<16x16xf32> to vector<16xf32>
    %70 = vector.shape_cast %69 : vector<16xf32> to vector<16x1xf32>
    %71 = vector.broadcast %70 : vector<16x1xf32> to vector<16x16xf32>
    %72 = arith.divf %68, %71 : vector<16x16xf32>
    %73 = arith.truncf %72 : vector<16x16xf32> to vector<16x16xbf16>
    %cst_22 = arith.constant dense<0.000000e+00> : vector<16x8xf32>
    %74 = tpu.matmul %73, %60, %cst_22 {dimension_numbers = #tpu.dot_dimension_numbers<[1], [0], [0], [1], [0, 0, 1, 1], [], []>} : vector<16x16xbf16>, vector<16x8xbf16>, vector<16x8xf32> -> vector<16x8xf32>
    %75 = vector.extract_strided_slice %12 {offsets = [0, 24], sizes = [16, 8], strides = [1, 1]} : vector<16x32xf32> to vector<16x8xf32>
    %76 = arith.truncf %75 : vector<16x8xf32> to vector<16x8xbf16>
    %77 = vector.extract_strided_slice %13 {offsets = [0, 24], sizes = [16, 8], strides = [1, 1]} : vector<16x32xf32> to vector<16x8xf32>
    %78 = arith.truncf %77 : vector<16x8xf32> to vector<16x8xbf16>
    %79 = vector.extract_strided_slice %14 {offsets = [0, 24], sizes = [16, 8], strides = [1, 1]} : vector<16x32xf32> to vector<16x8xf32>
    %80 = arith.truncf %79 : vector<16x8xf32> to vector<16x8xbf16>
    %cst_23 = arith.constant dense<0.000000e+00> : vector<16x16xf32>
    %81 = tpu.matmul %76, %78, %cst_23 {dimension_numbers = #tpu.dot_dimension_numbers<[1], [1], [0], [0], [0, 0, 1, 0], [], []>} : vector<16x8xbf16>, vector<16x8xbf16>, vector<16x16xf32> -> vector<16x16xf32>
    %cst_24 = arith.constant 0.353553385 : f32
    %82 = vector.broadcast %cst_24 : f32 to vector<16x16xf32>
    %83 = arith.mulf %81, %82 : vector<16x16xf32>
    %cst_25 = arith.constant dense<0xFF800000> : vector<16xf32>
    %84 = vector.multi_reduction <maximumf>, %83, %cst_25 [1] : vector<16x16xf32> to vector<16xf32>
    %85 = vector.shape_cast %84 : vector<16xf32> to vector<16x1xf32>
    %86 = vector.broadcast %85 : vector<16x1xf32> to vector<16x16xf32>
    %87 = arith.subf %83, %86 : vector<16x16xf32>
    %88 = math.exp %87 : vector<16x16xf32>
    %cst_26 = arith.constant dense<0.000000e+00> : vector<16xf32>
    %89 = vector.multi_reduction <add>, %88, %cst_26 [1] : vector<16x16xf32> to vector<16xf32>
    %90 = vector.shape_cast %89 : vector<16xf32> to vector<16x1xf32>
    %91 = vector.broadcast %90 : vector<16x1xf32> to vector<16x16xf32>
    %92 = arith.divf %88, %91 : vector<16x16xf32>
    %93 = arith.truncf %92 : vector<16x16xf32> to vector<16x16xbf16>
    %cst_27 = arith.constant dense<0.000000e+00> : vector<16x8xf32>
    %94 = tpu.matmul %93, %80, %cst_27 {dimension_numbers = #tpu.dot_dimension_numbers<[1], [0], [0], [1], [0, 0, 1, 1], [], []>} : vector<16x16xbf16>, vector<16x8xbf16>, vector<16x8xf32> -> vector<16x8xf32>
    %95 = tpu.concatenate %34, %54, %74, %94 in 1 : vector<16x8xf32>, vector<16x8xf32>, vector<16x8xf32>, vector<16x8xf32> -> vector<16x32xf32>
    %96 = arith.truncf %95 : vector<16x32xf32> to vector<16x32xbf16>
    %c0_28 = arith.constant 0 : index
    %c0_29 = arith.constant 0 : index
    %c0_30 = arith.constant 0 : index
    %97 = vector.load %arg10[%c0_28, %c0_29, %c0_30] : memref<1x32x32xbf16, #tpu.memory_space<vmem>>, vector<1x32x32xbf16>
    %98 = vector.shape_cast %97 : vector<1x32x32xbf16> to vector<32x32xbf16>
    %cst_31 = arith.constant dense<0.000000e+00> : vector<16x32xf32>
    %99 = tpu.matmul %96, %98, %cst_31 {dimension_numbers = #tpu.dot_dimension_numbers<[1], [0], [0], [1], [0, 0, 1, 1], [], []>} : vector<16x32xbf16>, vector<32x32xbf16>, vector<16x32xf32> -> vector<16x32xf32>
    %c0_32 = arith.constant 0 : index
    %c0_33 = arith.constant 0 : index
    %c0_34 = arith.constant 0 : index
    %100 = vector.load %arg11[%c0_32, %c0_33, %c0_34] : memref<1x1x32xf32, #tpu.memory_space<vmem>>, vector<1x1x32xf32>
    %101 = vector.shape_cast %100 : vector<1x1x32xf32> to vector<1x32xf32>
    %102 = vector.broadcast %101 : vector<1x32xf32> to vector<16x32xf32>
    %103 = arith.addf %99, %102 : vector<16x32xf32>
    %104 = arith.addf %3, %103 : vector<16x32xf32>
    %c0_35 = arith.constant 0 : index
    %c0_36 = arith.constant 0 : index
    %c0_37 = arith.constant 0 : index
    %105 = vector.load %arg12[%c0_35, %c0_36, %c0_37] : memref<1x1x32xf32, #tpu.memory_space<vmem>>, vector<1x1x32xf32>
    %106 = vector.shape_cast %105 : vector<1x1x32xf32> to vector<1x32xf32>
    %c0_38 = arith.constant 0 : index
    %c0_39 = arith.constant 0 : index
    %c0_40 = arith.constant 0 : index
    %107 = vector.load %arg13[%c0_38, %c0_39, %c0_40] : memref<1x1x32xf32, #tpu.memory_space<vmem>>, vector<1x1x32xf32>
    %108 = vector.shape_cast %107 : vector<1x1x32xf32> to vector<1x32xf32>
    %cst_41 = arith.constant dense<0.000000e+00> : vector<16xf32>
    %109 = vector.multi_reduction <add>, %104, %cst_41 [1] : vector<16x32xf32> to vector<16xf32>
    %110 = vector.shape_cast %109 : vector<16xf32> to vector<16x1xf32>
    %cst_42 = arith.constant 3.200000e+01 : f32
    %111 = vector.broadcast %cst_42 : f32 to vector<16x1xf32>
    %112 = arith.divf %110, %111 : vector<16x1xf32>
    %113 = vector.broadcast %112 : vector<16x1xf32> to vector<16x32xf32>
    %114 = arith.subf %104, %113 : vector<16x32xf32>
    %115 = arith.mulf %114, %114 : vector<16x32xf32>
    %cst_43 = arith.constant dense<0.000000e+00> : vector<16xf32>
    %116 = vector.multi_reduction <add>, %115, %cst_43 [1] : vector<16x32xf32> to vector<16xf32>
    %117 = vector.shape_cast %116 : vector<16xf32> to vector<16x1xf32>
    %cst_44 = arith.constant 3.200000e+01 : f32
    %118 = vector.broadcast %cst_44 : f32 to vector<16x1xf32>
    %119 = arith.divf %117, %118 : vector<16x1xf32>
    %120 = vector.broadcast %112 : vector<16x1xf32> to vector<16x32xf32>
    %121 = arith.subf %104, %120 : vector<16x32xf32>
    %cst_45 = arith.constant 9.99999974E-6 : f32
    %122 = vector.broadcast %cst_45 : f32 to vector<16x1xf32>
    %123 = arith.addf %119, %122 : vector<16x1xf32>
    %124 = math.rsqrt %123 : vector<16x1xf32>
    %125 = vector.broadcast %124 : vector<16x1xf32> to vector<16x32xf32>
    %126 = arith.mulf %121, %125 : vector<16x32xf32>
    %127 = vector.broadcast %106 : vector<1x32xf32> to vector<16x32xf32>
    %128 = arith.mulf %126, %127 : vector<16x32xf32>
    %129 = vector.broadcast %108 : vector<1x32xf32> to vector<16x32xf32>
    %130 = arith.addf %128, %129 : vector<16x32xf32>
    %131 = arith.truncf %130 : vector<16x32xf32> to vector<16x32xbf16>
    %c0_46 = arith.constant 0 : index
    %c0_47 = arith.constant 0 : index
    %c0_48 = arith.constant 0 : index
    %132 = vector.load %arg14[%c0_46, %c0_47, %c0_48] : memref<1x32x64xbf16, #tpu.memory_space<vmem>>, vector<1x32x64xbf16>
    %133 = vector.shape_cast %132 : vector<1x32x64xbf16> to vector<32x64xbf16>
    %cst_49 = arith.constant dense<0.000000e+00> : vector<16x64xf32>
    %134 = tpu.matmul %131, %133, %cst_49 {dimension_numbers = #tpu.dot_dimension_numbers<[1], [0], [0], [1], [0, 0, 1, 1], [], []>} : vector<16x32xbf16>, vector<32x64xbf16>, vector<16x64xf32> -> vector<16x64xf32>
    %c0_50 = arith.constant 0 : index
    %c0_51 = arith.constant 0 : index
    %c0_52 = arith.constant 0 : index
    %135 = vector.load %arg15[%c0_50, %c0_51, %c0_52] : memref<1x1x64xf32, #tpu.memory_space<vmem>>, vector<1x1x64xf32>
    %136 = vector.shape_cast %135 : vector<1x1x64xf32> to vector<1x64xf32>
    %137 = vector.broadcast %136 : vector<1x64xf32> to vector<16x64xf32>
    %138 = arith.addf %134, %137 : vector<16x64xf32>
    %cst_53 = arith.constant 0.000000e+00 : f32
    %139 = vector.broadcast %cst_53 : f32 to vector<16x64xf32>
    %140 = arith.maximumf %138, %139 : vector<16x64xf32>
    %141 = arith.truncf %140 : vector<16x64xf32> to vector<16x64xbf16>
    %c0_54 = arith.constant 0 : index
    %c0_55 = arith.constant 0 : index
    %c0_56 = arith.constant 0 : index
    %142 = vector.load %arg16[%c0_54, %c0_55, %c0_56] : memref<1x64x32xbf16, #tpu.memory_space<vmem>>, vector<1x64x32xbf16>
    %143 = vector.shape_cast %142 : vector<1x64x32xbf16> to vector<64x32xbf16>
    %cst_57 = arith.constant dense<0.000000e+00> : vector<16x32xf32>
    %144 = tpu.matmul %141, %143, %cst_57 {dimension_numbers = #tpu.dot_dimension_numbers<[1], [0], [0], [1], [0, 0, 1, 1], [], []>} : vector<16x64xbf16>, vector<64x32xbf16>, vector<16x32xf32> -> vector<16x32xf32>
    %c0_58 = arith.constant 0 : index
    %c0_59 = arith.constant 0 : index
    %c0_60 = arith.constant 0 : index
    %145 = vector.load %arg17[%c0_58, %c0_59, %c0_60] : memref<1x1x32xf32, #tpu.memory_space<vmem>>, vector<1x1x32xf32>
    %146 = vector.shape_cast %145 : vector<1x1x32xf32> to vector<1x32xf32>
    %147 = vector.broadcast %146 : vector<1x32xf32> to vector<16x32xf32>
    %148 = arith.addf %144, %147 : vector<16x32xf32>
    %149 = arith.addf %130, %148 : vector<16x32xf32>
    %c0_61 = arith.constant 0 : index
    %c0_62 = arith.constant 0 : index
    %c0_63 = arith.constant 0 : index
    %150 = vector.load %arg18[%c0_61, %c0_62, %c0_63] : memref<1x1x32xf32, #tpu.memory_space<vmem>>, vector<1x1x32xf32>
    %151 = vector.shape_cast %150 : vector<1x1x32xf32> to vector<1x32xf32>
    %c0_64 = arith.constant 0 : index
    %c0_65 = arith.constant 0 : index
    %c0_66 = arith.constant 0 : index
    %152 = vector.load %arg19[%c0_64, %c0_65, %c0_66] : memref<1x1x32xf32, #tpu.memory_space<vmem>>, vector<1x1x32xf32>
    %153 = vector.shape_cast %152 : vector<1x1x32xf32> to vector<1x32xf32>
    %cst_67 = arith.constant dense<0.000000e+00> : vector<16xf32>
    %154 = vector.multi_reduction <add>, %149, %cst_67 [1] : vector<16x32xf32> to vector<16xf32>
    %155 = vector.shape_cast %154 : vector<16xf32> to vector<16x1xf32>
    %cst_68 = arith.constant 3.200000e+01 : f32
    %156 = vector.broadcast %cst_68 : f32 to vector<16x1xf32>
    %157 = arith.divf %155, %156 : vector<16x1xf32>
    %158 = vector.broadcast %157 : vector<16x1xf32> to vector<16x32xf32>
    %159 = arith.subf %149, %158 : vector<16x32xf32>
    %160 = arith.mulf %159, %159 : vector<16x32xf32>
    %cst_69 = arith.constant dense<0.000000e+00> : vector<16xf32>
    %161 = vector.multi_reduction <add>, %160, %cst_69 [1] : vector<16x32xf32> to vector<16xf32>
    %162 = vector.shape_cast %161 : vector<16xf32> to vector<16x1xf32>
    %cst_70 = arith.constant 3.200000e+01 : f32
    %163 = vector.broadcast %cst_70 : f32 to vector<16x1xf32>
    %164 = arith.divf %162, %163 : vector<16x1xf32>
    %165 = vector.broadcast %157 : vector<16x1xf32> to vector<16x32xf32>
    %166 = arith.subf %149, %165 : vector<16x32xf32>
    %cst_71 = arith.constant 9.99999974E-6 : f32
    %167 = vector.broadcast %cst_71 : f32 to vector<16x1xf32>
    %168 = arith.addf %164, %167 : vector<16x1xf32>
    %169 = math.rsqrt %168 : vector<16x1xf32>
    %170 = vector.broadcast %169 : vector<16x1xf32> to vector<16x32xf32>
    %171 = arith.mulf %166, %170 : vector<16x32xf32>
    %172 = vector.broadcast %151 : vector<1x32xf32> to vector<16x32xf32>
    %173 = arith.mulf %171, %172 : vector<16x32xf32>
    %174 = vector.broadcast %153 : vector<1x32xf32> to vector<16x32xf32>
    %175 = arith.addf %173, %174 : vector<16x32xf32>
    %c1_i32 = arith.constant 1 : i32
    %176 = arith.cmpi ne, %arg1, %c1_i32 : i32
    %177 = arith.extui %176 : i1 to i32
    %c0_i32_72 = arith.constant 0 : i32
    %178 = arith.cmpi ne, %177, %c0_i32_72 : i32
    scf.if %178 {
      %c0_75 = arith.constant 0 : index
      %c0_76 = arith.constant 0 : index
      %182 = vector.load %arg23[%c0_75, %c0_76] : memref<16x32xf32, #tpu.memory_space<vmem>>, vector<16x32xf32>
      tpu.vector_store %arg23[%c0_75, %c0_76], %175 {strides = array<i32>} : memref<16x32xf32, #tpu.memory_space<vmem>>, vector<16x32xf32>,
    } else {
    }
    %c1_i32_73 = arith.constant 1 : i32
    %179 = arith.cmpi eq, %arg1, %c1_i32_73 : i32
    %180 = arith.extui %179 : i1 to i32
    %c0_i32_74 = arith.constant 0 : i32
    %181 = arith.cmpi ne, %180, %c0_i32_74 : i32
    scf.if %181 {
      %182 = arith.truncf %175 : vector<16x32xf32> to vector<16x32xbf16>
      %c0_75 = arith.constant 0 : index
      %c0_76 = arith.constant 0 : index
      %183 = vector.load %arg20[%c0_75, %c0_76] : memref<32x128xbf16, #tpu.memory_space<vmem>>, vector<32x128xbf16>
      %cst_77 = arith.constant dense<0.000000e+00> : vector<16x128xf32>
      %184 = tpu.matmul %182, %183, %cst_77 {dimension_numbers = #tpu.dot_dimension_numbers<[1], [0], [0], [1], [0, 0, 1, 1], [], []>} : vector<16x32xbf16>, vector<32x128xbf16>, vector<16x128xf32> -> vector<16x128xf32>
      %c0_78 = arith.constant 0 : index
      %c0_79 = arith.constant 0 : index
      %185 = vector.load %arg21[%c0_78, %c0_79] : memref<1x128xf32, #tpu.memory_space<vmem>>, vector<1x128xf32>
      %186 = vector.broadcast %185 : vector<1x128xf32> to vector<16x128xf32>
      %187 = arith.addf %184, %186 : vector<16x128xf32>
      %188 = tpu.iota {dimensions = array<i32: 1>} : vector<16x128xi32>
      %c40_i32 = arith.constant 40 : i32
      %189 = vector.broadcast %c40_i32 : i32 to vector<16x128xi32>
      %190 = arith.cmpi slt, %188, %189 : vector<16x128xi32>
      %cst_80 = arith.constant -1.000000e+30 : f32
      %191 = vector.broadcast %cst_80 : f32 to vector<16x128xf32>
      %192 = arith.select %190, %187, %191 : vector<16x128xi1>, vector<16x128xf32>
      %cst_81 = arith.constant dense<0xFF800000> : vector<16xf32>
      %193 = vector.multi_reduction <maximumf>, %192, %cst_81 [1] : vector<16x128xf32> to vector<16xf32>
      %194 = vector.shape_cast %193 : vector<16xf32> to vector<16x1xf32>
      %195 = vector.broadcast %194 : vector<16x1xf32> to vector<16x128xf32>
      %196 = arith.subf %192, %195 : vector<16x128xf32>
      %197 = math.exp %196 : vector<16x128xf32>
      %cst_82 = arith.constant dense<0.000000e+00> : vector<16xf32>
      %198 = vector.multi_reduction <add>, %197, %cst_82 [1] : vector<16x128xf32> to vector<16xf32>
      %199 = vector.shape_cast %198 : vector<16xf32> to vector<16x1xf32>
      %200 = math.log %199 : vector<16x1xf32>
      %201 = arith.addf %200, %194 : vector<16x1xf32>
      %202 = vector.broadcast %201 : vector<16x1xf32> to vector<16x128xf32>
      %203 = arith.subf %192, %202 : vector<16x128xf32>
      %c0_83 = arith.constant 0 : index
      %c0_84 = arith.constant 0 : index
      %c0_85 = arith.constant 0 : index
      %204 = vector.load %arg22[%c0_83, %c0_84, %c0_85] : memref<1x16x128xf32, #tpu.memory_space<vmem>>, vector<1x16x128xf32>
      %205 = vector.shape_cast %204 : vector<1x16x128xf32> to vector<16x128xf32>
      %206 = vector.shape_cast %203 : vector<16x128xf32> to vector<1x16x128xf32>
      tpu.vector_store %arg22[%c0_83, %c0_84, %c0_85], %206 {strides = array<i32>} : memref<1x16x128xf32, #tpu.memory_space<vmem>>, vector<1x16x128xf32>,
    } else {
    }
    return
  }
  func.func @transform_0(%arg0: i32, %arg1: i32) -> (i32, i32, i32) {
    %c0_i32 = arith.constant 0 : i32
    %c0_i32_0 = arith.constant 0 : i32
    %c0_i32_1 = arith.constant 0 : i32
    return %arg0, %c0_i32, %c0_i32_0 : i32, i32, i32
  }
  func.func @transform_1(%arg0: i32, %arg1: i32) -> (i32, i32) {
    %c0_i32 = arith.constant 0 : i32
    %c0_i32_0 = arith.constant 0 : i32
    %c0_i32_1 = arith.constant 0 : i32
    return %c0_i32, %c0_i32_0 : i32, i32
  }
  func.func @transform_2(%arg0: i32, %arg1: i32) -> (i32, i32, i32) {
    %c0_i32 = arith.constant 0 : i32
    %c0_i32_0 = arith.constant 0 : i32
    %c0_i32_1 = arith.constant 0 : i32
    %c0_i32_2 = arith.constant 0 : i32
    return %c0_i32, %c0_i32_0, %c0_i32_1 : i32, i32, i32
  }
  func.func @transform_3(%arg0: i32, %arg1: i32) -> (i32, i32) {
    %c0_i32 = arith.constant 0 : i32
    %c0_i32_0 = arith.constant 0 : i32
    %c0_i32_1 = arith.constant 0 : i32
    return %c0_i32, %c0_i32_0 : i32, i32
  }
  func.func @transform_4(%arg0: i32, %arg1: i32) -> (i32, i32, i32) {
    %c0_i32 = arith.constant 0 : i32
    %c0_i32_0 = arith.constant 0 : i32
    %c0_i32_1 = arith.constant 0 : i32
    %c0_i32_2 = arith.constant 0 : i32
    return %c0_i32, %c0_i32_0, %c0_i32_1 : i32, i32, i32
  }
  func.func @transform_5(%arg0: i32, %arg1: i32) -> (i32, i32) {
    %c0_i32 = arith.constant 0 : i32
    %c0_i32_0 = arith.constant 0 : i32
    %c0_i32_1 = arith.constant 0 : i32
    return %c0_i32, %c0_i32_0 : i32, i32
  }
  func.func @transform_6(%arg0: i32, %arg1: i32) -> (i32, i32, i32) {
    %c0_i32 = arith.constant 0 : i32
    %c0_i32_0 = arith.constant 0 : i32
    %c0_i32_1 = arith.constant 0 : i32
    return %arg1, %c0_i32, %c0_i32_0 : i32, i32, i32
  }
  func.func @transform_7(%arg0: i32, %arg1: i32) -> (i32, i32, i32) {
    %c0_i32 = arith.constant 0 : i32
    %c0_i32_0 = arith.constant 0 : i32
    %c0_i32_1 = arith.constant 0 : i32
    return %arg1, %c0_i32, %c0_i32_0 : i32, i32, i32
  }
  func.func @transform_8(%arg0: i32, %arg1: i32) -> (i32, i32, i32) {
    %c0_i32 = arith.constant 0 : i32
    %c0_i32_0 = arith.constant 0 : i32
    %c0_i32_1 = arith.constant 0 : i32
    return %arg1, %c0_i32, %c0_i32_0 : i32, i32, i32
  }
  func.func @transform_9(%arg0: i32, %arg1: i32) -> (i32, i32, i32) {
    %c0_i32 = arith.constant 0 : i32
    %c0_i32_0 = arith.constant 0 : i32
    %c0_i32_1 = arith.constant 0 : i32
    return %arg1, %c0_i32, %c0_i32_0 : i32, i32, i32
  }
  func.func @transform_10(%arg0: i32, %arg1: i32) -> (i32, i32, i32) {
    %c0_i32 = arith.constant 0 : i32
    %c0_i32_0 = arith.constant 0 : i32
    %c0_i32_1 = arith.constant 0 : i32
    return %arg1, %c0_i32, %c0_i32_0 : i32, i32, i32
  }
  func.func @transform_11(%arg0: i32, %arg1: i32) -> (i32, i32, i32) {
    %c0_i32 = arith.constant 0 : i32
    %c0_i32_0 = arith.constant 0 : i32
    %c0_i32_1 = arith.constant 0 : i32
    return %arg1, %c0_i32, %c0_i32_0 : i32, i32, i32
  }
  func.func @transform_12(%arg0: i32, %arg1: i32) -> (i32, i32, i32) {
    %c0_i32 = arith.constant 0 : i32
    %c0_i32_0 = arith.constant 0 : i32
    %c0_i32_1 = arith.constant 0 : i32
    return %arg1, %c0_i32, %c0_i32_0 : i32, i32, i32
  }
  func.func @transform_13(%arg0: i32, %arg1: i32) -> (i32, i32, i32) {
    %c0_i32 = arith.constant 0 : i32
    %c0_i32_0 = arith.constant 0 : i32
    %c0_i32_1 = arith.constant 0 : i32
    return %arg1, %c0_i32, %c0_i32_0 : i32, i32, i32
  }
  func.func @transform_14(%arg0: i32, %arg1: i32) -> (i32, i32, i32) {
    %c0_i32 = arith.constant 0 : i32
    %c0_i32_0 = arith.constant 0 : i32
    %c0_i32_1 = arith.constant 0 : i32
    return %arg1, %c0_i32, %c0_i32_0 : i32, i32, i32
  }
  func.func @transform_15(%arg0: i32, %arg1: i32) -> (i32, i32, i32) {
    %c0_i32 = arith.constant 0 : i32
    %c0_i32_0 = arith.constant 0 : i32
    %c0_i32_1 = arith.constant 0 : i32
    return %arg1, %c0_i32, %c0_i32_0 : i32, i32, i32
  }
  func.func @transform_16(%arg0: i32, %arg1: i32) -> (i32, i32, i32) {
    %c0_i32 = arith.constant 0 : i32
    %c0_i32_0 = arith.constant 0 : i32
    %c0_i32_1 = arith.constant 0 : i32
    return %arg1, %c0_i32, %c0_i32_0 : i32, i32, i32
  }
  func.func @transform_17(%arg0: i32, %arg1: i32) -> (i32, i32, i32) {
    %c0_i32 = arith.constant 0 : i32
    %c0_i32_0 = arith.constant 0 : i32
    %c0_i32_1 = arith.constant 0 : i32
    return %arg1, %c0_i32, %c0_i32_0 : i32, i32, i32
  }
  func.func @transform_18(%arg0: i32, %arg1: i32) -> (i32, i32) {
    %c0_i32 = arith.constant 0 : i32
    %c0_i32_0 = arith.constant 0 : i32
    %c0_i32_1 = arith.constant 0 : i32
    return %c0_i32, %c0_i32_0 : i32, i32
  }
  func.func @transform_19(%arg0: i32, %arg1: i32) -> (i32, i32) {
    %c0_i32 = arith.constant 0 : i32
    %c0_i32_0 = arith.constant 0 : i32
    %c0_i32_1 = arith.constant 0 : i32
    return %c0_i32, %c0_i32_0 : i32, i32
  }
  func.func @transform_20(%arg0: i32, %arg1: i32) -> (i32, i32, i32) {
    %c0_i32 = arith.constant 0 : i32
    %c0_i32_0 = arith.constant 0 : i32
    %c0_i32_1 = arith.constant 0 : i32
    return %arg0, %c0_i32, %c0_i32_0 : i32, i32, i32
  }
}

</mosaic_0001>

<llo_original>
// kernel: ctc_self_attention_forward.1
$region0: #{ctc_self_attention_forward.1}
  #allocation0 [shape = 'u32[]', space=smem, size = 0x4, offset = 0x4, fixed_abs, tag = 'smem constant byte address 0x4 - core index']
  #allocation1 [shape = 'u32[144,128]{1,0:T(1,128)}', space=vmem, size = 0x12000, scoped, tag = 'internal scratch']
  #allocation2 [shape = 'f32[16,32]{1,0:T(8,128)}', space=vmem, size = 0x2000, scoped, tag = 'scratch operand']
  %s0 = inlined_call_operand.vmem [shape: f32[2,17,64], index: 0, kind: input, shape index: {}]
  %s1 = inlined_call_operand.vmem [shape: f32[16,32], index: 1, kind: input, shape index: {}]
  %s2 = inlined_call_operand.vmem [shape: bf16[3,16,32], index: 2, kind: input, shape index: {}]
  %s3 = inlined_call_operand.vmem [shape: f32[1,32], index: 3, kind: input, shape index: {}]
  %s4 = inlined_call_operand.vmem [shape: bf16[3,32,32], index: 4, kind: input, shape index: {}]
  %s5 = inlined_call_operand.vmem [shape: f32[1,32], index: 5, kind: input, shape index: {}]
  %s6 = inlined_call_operand.vmem [shape: bf16[2,32,96], index: 6, kind: input, shape index: {}]
  %s7 = inlined_call_operand.vmem [shape: f32[2,1,96], index: 7, kind: input, shape index: {}]
  %s8 = inlined_call_operand.vmem [shape: bf16[2,32,32], index: 8, kind: input, shape index: {}]
  %s9 = inlined_call_operand.vmem [shape: f32[2,1,32], index: 9, kind: input, shape index: {}]
  %s10 = inlined_call_operand.vmem [shape: f32[2,1,32], index: 10, kind: input, shape index: {}]
  %s11 = inlined_call_operand.vmem [shape: f32[2,1,32], index: 11, kind: input, shape index: {}]
  %s12 = inlined_call_operand.vmem [shape: bf16[2,32,64], index: 12, kind: input, shape index: {}]
  %s13 = inlined_call_operand.vmem [shape: f32[2,1,64], index: 13, kind: input, shape index: {}]
  %s14 = inlined_call_operand.vmem [shape: bf16[2,64,32], index: 14, kind: input, shape index: {}]
  %s15 = inlined_call_operand.vmem [shape: f32[2,1,32], index: 15, kind: input, shape index: {}]
  %s16 = inlined_call_operand.vmem [shape: f32[2,1,32], index: 16, kind: input, shape index: {}]
  %s17 = inlined_call_operand.vmem [shape: f32[2,1,32], index: 17, kind: input, shape index: {}]
  %s18 = inlined_call_operand.vmem [shape: bf16[32,128], index: 18, kind: input, shape index: {}]
  %s19 = inlined_call_operand.vmem [shape: f32[1,128], index: 19, kind: input, shape index: {}]
  %s20 = inlined_call_operand.hbm [shape: f32[2,16,128], index: 20, kind: output, shape index: {}]
  %s21 = sld [smem:[#allocation0]]
  $region125: #{ctc_self_attention_forward.1} parent=0
    _
  %s23 = ssub.s32 1, %s21
  %s24 = scalar_select 0, %s23, %s21
  $region1: #{ctc_self_attention_forward.1} parent=0
    #allocation3 [shape = 'u8[16384]{0}', space=vmem, size = 0x4000, scoped, tag = 'output window, operand 0']
    #allocation4 [shape = 's32[2]{0}', space=sflag, size = 0x8, scoped, tag = 'scoped memory for ctc_self_attention_forward.1']
    %25 = vsyncpa [#allocation4], 0
    %s26 = scalar_lea.sflag [#allocation4], 1
    %27 = vsyncpa %s26, 0
    loop: start=0, step=1, limit=6
    $region2: #{ctc_self_attention_forward.1} parent=1 // loop_pre_header
      _
    $region3: #{ctc_self_attention_forward.1} parent=1 // loop_header
      %s29 = sphi 0, %s33
      %p30 = scmp.ge.s32.totalorder %s29, 6
      %s36 = sphi 0, %s48
      %s37 = sphi 0, %s44
      %s38 = sphi 0, %s36
      %s39 = sphi 0, %s37
      %s40 = sphi 0, %s38
      %s41 = sphi 0, %s39
      %s51 = sphi 0, %s53
      %s54 = sphi 0, %s51
      %s55 = sphi 0, %s54
      %s71 = sphi 0, %s55
      %s75 = sphi 0, %s75
      %s77 = sphi 0, %s75
      %s78 = sphi 0, %s77
      %s92 = sphi 0, %s78
      %s96 = sphi 0, %s96
      %s98 = sphi 0, %s96
      %s99 = sphi 0, %s98
      %s113 = sphi 0, %s99
      %s117 = sphi 0, %s117
      %s119 = sphi 0, %s117
      %s120 = sphi 0, %s119
      %s134 = sphi 0, %s120
      %s138 = sphi 0, %s138
      %s140 = sphi 0, %s138
      %s141 = sphi 0, %s140
      %s155 = sphi 0, %s141
      %s159 = sphi 0, %s159
      %s161 = sphi 0, %s159
      %s162 = sphi 0, %s161
      %s176 = sphi 0, %s162
      %s182 = sphi 0, %s184
      %s185 = sphi 0, %s182
      %s186 = sphi 0, %s185
      %s202 = sphi 0, %s186
      %s208 = sphi 0, %s210
      %s211 = sphi 0, %s208
      %s212 = sphi 0, %s211
      %s228 = sphi 0, %s212
      %s234 = sphi 0, %s236
      %s237 = sphi 0, %s234
      %s238 = sphi 0, %s237
      %s254 = sphi 0, %s238
      %s260 = sphi 0, %s262
      %s263 = sphi 0, %s260
      %s264 = sphi 0, %s263
      %s280 = sphi 0, %s264
      %s286 = sphi 0, %s288
      %s289 = sphi 0, %s286
      %s290 = sphi 0, %s289
      %s306 = sphi 0, %s290
      %s312 = sphi 0, %s314
      %s315 = sphi 0, %s312
      %s316 = sphi 0, %s315
      %s332 = sphi 0, %s316
      %s338 = sphi 0, %s340
      %s341 = sphi 0, %s338
      %s342 = sphi 0, %s341
      %s358 = sphi 0, %s342
      %s364 = sphi 0, %s366
      %s367 = sphi 0, %s364
      %s368 = sphi 0, %s367
      %s384 = sphi 0, %s368
      %s390 = sphi 0, %s392
      %s393 = sphi 0, %s390
      %s394 = sphi 0, %s393
      %s410 = sphi 0, %s394
      %s416 = sphi 0, %s418
      %s419 = sphi 0, %s416
      %s420 = sphi 0, %s419
      %s436 = sphi 0, %s420
      %s442 = sphi 0, %s444
      %s445 = sphi 0, %s442
      %s446 = sphi 0, %s445
      %s462 = sphi 0, %s446
      %s468 = sphi 0, %s470
      %s471 = sphi 0, %s468
      %s472 = sphi 0, %s471
      %s488 = sphi 0, %s472
      %s492 = sphi 0, %s492
      %s494 = sphi 0, %s492
      %s495 = sphi 0, %s494
      %s509 = sphi 0, %s495
      %s513 = sphi 0, %s513
      %s515 = sphi 0, %s513
      %s516 = sphi 0, %s515
      %s530 = sphi 0, %s516
      %s536 = sphi 0, %s538
      %s539 = sphi 0, %s536
      %s540 = sphi 0, %s539
      %s556 = sphi 0, %s540
    $region4: #{ctc_self_attention_forward.1} parent=1 // loop_header_branch
      %32 = sbr.rel (%p30) target = $region8
    $region5: #{ctc_self_attention_forward.1} parent=1 // loop_body
      %s34 = ssub.s32 %s29, 1
      %s35 = ssub.s32 %s29, 2
      %s42 = sadd.s32 1, %s37
      %p43 = scmp.ge.s32.totalorder %s42, 2
      %s44 = scalar_select %p43, 0, %s42
      %s45 = sadd.s32 1, %s36
      %s46 = scalar_select %p43, %s45, %s36
      %p47 = scmp.ge.s32.totalorder %s46, 2
      %s48 = scalar_select %p47, 0, %s46
      %s49 = ssub.s32 %s36, %s48
      %p50 = scmp.eq.s32.totalorder %s49, 0
      %s52 = sadd.s32 %s51, 1
      %s53 = scalar_select %p50, %s51, %s52
      %p56 = pneg %p50
      %p57 = scmp.eq.s32.totalorder %s29, 3
      %p58 = por %p56, %p57
      %p59 = scmp.ne.s32.totalorder %s51, %s54
      %p60 = scmp.eq.s32.totalorder %s29, 0
      %p61 = por %p59, %p60
      %p62 = scmp.ne.s32.totalorder %s51, %s54
      %p63 = scmp.eq.s32.totalorder %s34, 3
      %p64 = por %p62, %p63
      %p65 = scmp.ne.s32.totalorder %s54, %s55
      %p66 = scmp.eq.s32.totalorder %s34, 0
      %p67 = por %p65, %p66
      %p68 = scmp.ne.s32.totalorder %s54, %s55
      %p69 = scmp.eq.s32.totalorder %s35, 3
      %p70 = por %p68, %p69
      %p72 = scmp.ne.s32.totalorder %s55, %s71
      %p73 = scmp.eq.s32.totalorder %s35, 0
      %p74 = por %p72, %p73
      %s76 = sadd.s32 %s75, 1
      %p79 = scmp.eq.s32.totalorder %s29, 3
      %p80 = scmp.ne.s32.totalorder %s75, %s77
      %p81 = scmp.eq.s32.totalorder %s29, 0
      %p82 = por %p80, %p81
      %p83 = scmp.ne.s32.totalorder %s75, %s77
      %p84 = scmp.eq.s32.totalorder %s34, 3
      %p85 = por %p83, %p84
      %p86 = scmp.ne.s32.totalorder %s77, %s78
      %p87 = scmp.eq.s32.totalorder %s34, 0
      %p88 = por %p86, %p87
      %p89 = scmp.ne.s32.totalorder %s77, %s78
      %p90 = scmp.eq.s32.totalorder %s35, 3
      %p91 = por %p89, %p90
      %p93 = scmp.ne.s32.totalorder %s78, %s92
      %p94 = scmp.eq.s32.totalorder %s35, 0
      %p95 = por %p93, %p94
      %s97 = sadd.s32 %s96, 1
      %p100 = scmp.eq.s32.totalorder %s29, 3
      %p101 = scmp.ne.s32.totalorder %s96, %s98
      %p102 = scmp.eq.s32.totalorder %s29, 0
      %p103 = por %p101, %p102
      %p104 = scmp.ne.s32.totalorder %s96, %s98
      %p105 = scmp.eq.s32.totalorder %s34, 3
      %p106 = por %p104, %p105
      %p107 = scmp.ne.s32.totalorder %s98, %s99
      %p108 = scmp.eq.s32.totalorder %s34, 0
      %p109 = por %p107, %p108
      %p110 = scmp.ne.s32.totalorder %s98, %s99
      %p111 = scmp.eq.s32.totalorder %s35, 3
      %p112 = por %p110, %p111
      %p114 = scmp.ne.s32.totalorder %s99, %s113
      %p115 = scmp.eq.s32.totalorder %s35, 0
      %p116 = por %p114, %p115
      %s118 = sadd.s32 %s117, 1
      %p121 = scmp.eq.s32.totalorder %s29, 3
      %p122 = scmp.ne.s32.totalorder %s117, %s119
      %p123 = scmp.eq.s32.totalorder %s29, 0
      %p124 = por %p122, %p123
      %p125 = scmp.ne.s32.totalorder %s117, %s119
      %p126 = scmp.eq.s32.totalorder %s34, 3
      %p127 = por %p125, %p126
      %p128 = scmp.ne.s32.totalorder %s119, %s120
      %p129 = scmp.eq.s32.totalorder %s34, 0
      %p130 = por %p128, %p129
      %p131 = scmp.ne.s32.totalorder %s119, %s120
      %p132 = scmp.eq.s32.totalorder %s35, 3
      %p133 = por %p131, %p132
      %p135 = scmp.ne.s32.totalorder %s120, %s134
      %p136 = scmp.eq.s32.totalorder %s35, 0
      %p137 = por %p135, %p136
      %s139 = sadd.s32 %s138, 1
      %p142 = scmp.eq.s32.totalorder %s29, 3
      %p143 = scmp.ne.s32.totalorder %s138, %s140
      %p144 = scmp.eq.s32.totalorder %s29, 0
      %p145 = por %p143, %p144
      %p146 = scmp.ne.s32.totalorder %s138, %s140
      %p147 = scmp.eq.s32.totalorder %s34, 3
      %p148 = por %p146, %p147
      %p149 = scmp.ne.s32.totalorder %s140, %s141
      %p150 = scmp.eq.s32.totalorder %s34, 0
      %p151 = por %p149, %p150
      %p152 = scmp.ne.s32.totalorder %s140, %s141
      %p153 = scmp.eq.s32.totalorder %s35, 3
      %p154 = por %p152, %p153
      %p156 = scmp.ne.s32.totalorder %s141, %s155
      %p157 = scmp.eq.s32.totalorder %s35, 0
      %p158 = por %p156, %p157
      %s160 = sadd.s32 %s159, 1
      %p163 = scmp.eq.s32.totalorder %s29, 3
      %p164 = scmp.ne.s32.totalorder %s159, %s161
      %p165 = scmp.eq.s32.totalorder %s29, 0
      %p166 = por %p164, %p165
      %p167 = scmp.ne.s32.totalorder %s159, %s161
      %p168 = scmp.eq.s32.totalorder %s34, 3
      %p169 = por %p167, %p168
      %p170 = scmp.ne.s32.totalorder %s161, %s162
      %p171 = scmp.eq.s32.totalorder %s34, 0
      %p172 = por %p170, %p171
      %p173 = scmp.ne.s32.totalorder %s161, %s162
      %p174 = scmp.eq.s32.totalorder %s35, 3
      %p175 = por %p173, %p174
      %p177 = scmp.ne.s32.totalorder %s162, %s176
      %p178 = scmp.eq.s32.totalorder %s35, 0
      %p179 = por %p177, %p178
      %s180 = ssub.s32 %s37, %s44
      %p181 = scmp.eq.s32.totalorder %s180, 0
      %s183 = sadd.s32 %s182, 1
      %s184 = scalar_select %p181, %s182, %s183
      %p187 = pneg %p181
      %p188 = scmp.eq.s32.totalorder %s29, 3
      %p189 = por %p187, %p188
      %p190 = scmp.ne.s32.totalorder %s182, %s185
      %p191 = scmp.eq.s32.totalorder %s29, 0
      %p192 = por %p190, %p191
      %p193 = scmp.ne.s32.totalorder %s182, %s185
      %p194 = scmp.eq.s32.totalorder %s34, 3
      %p195 = por %p193, %p194
      %p196 = scmp.ne.s32.totalorder %s185, %s186
      %p197 = scmp.eq.s32.totalorder %s34, 0
      %p198 = por %p196, %p197
      %p199 = scmp.ne.s32.totalorder %s185, %s186
      %p200 = scmp.eq.s32.totalorder %s35, 3
      %p201 = por %p199, %p200
      %p203 = scmp.ne.s32.totalorder %s186, %s202
      %p204 = scmp.eq.s32.totalorder %s35, 0
      %p205 = por %p203, %p204
      %s206 = ssub.s32 %s37, %s44
      %p207 = scmp.eq.s32.totalorder %s206, 0
      %s209 = sadd.s32 %s208, 1
      %s210 = scalar_select %p207, %s208, %s209
      %p213 = pneg %p207
      %p214 = scmp.eq.s32.totalorder %s29, 3
      %p215 = por %p213, %p214
      %p216 = scmp.ne.s32.totalorder %s208, %s211
      %p217 = scmp.eq.s32.totalorder %s29, 0
      %p218 = por %p216, %p217
      %p219 = scmp.ne.s32.totalorder %s208, %s211
      %p220 = scmp.eq.s32.totalorder %s34, 3
      %p221 = por %p219, %p220
      %p222 = scmp.ne.s32.totalorder %s211, %s212
      %p223 = scmp.eq.s32.totalorder %s34, 0
      %p224 = por %p222, %p223
      %p225 = scmp.ne.s32.totalorder %s211, %s212
      %p226 = scmp.eq.s32.totalorder %s35, 3
      %p227 = por %p225, %p226
      %p229 = scmp.ne.s32.totalorder %s212, %s228
      %p230 = scmp.eq.s32.totalorder %s35, 0
      %p231 = por %p229, %p230
      %s232 = ssub.s32 %s37, %s44
      %p233 = scmp.eq.s32.totalorder %s232, 0
      %s235 = sadd.s32 %s234, 1
      %s236 = scalar_select %p233, %s234, %s235
      %p239 = pneg %p233
      %p240 = scmp.eq.s32.totalorder %s29, 3
      %p241 = por %p239, %p240
      %p242 = scmp.ne.s32.totalorder %s234, %s237
      %p243 = scmp.eq.s32.totalorder %s29, 0
      %p244 = por %p242, %p243
      %p245 = scmp.ne.s32.totalorder %s234, %s237
      %p246 = scmp.eq.s32.totalorder %s34, 3
      %p247 = por %p245, %p246
      %p248 = scmp.ne.s32.totalorder %s237, %s238
      %p249 = scmp.eq.s32.totalorder %s34, 0
      %p250 = por %p248, %p249
      %p251 = scmp.ne.s32.totalorder %s237, %s238
      %p252 = scmp.eq.s32.totalorder %s35, 3
      %p253 = por %p251, %p252
      %p255 = scmp.ne.s32.totalorder %s238, %s254
      %p256 = scmp.eq.s32.totalorder %s35, 0
      %p257 = por %p255, %p256
      %s258 = ssub.s32 %s37, %s44
      %p259 = scmp.eq.s32.totalorder %s258, 0
      %s261 = sadd.s32 %s260, 1
      %s262 = scalar_select %p259, %s260, %s261
      %p265 = pneg %p259
      %p266 = scmp.eq.s32.totalorder %s29, 3
      %p267 = por %p265, %p266
      %p268 = scmp.ne.s32.totalorder %s260, %s263
      %p269 = scmp.eq.s32.totalorder %s29, 0
      %p270 = por %p268, %p269
      %p271 = scmp.ne.s32.totalorder %s260, %s263
      %p272 = scmp.eq.s32.totalorder %s34, 3
      %p273 = por %p271, %p272
      %p274 = scmp.ne.s32.totalorder %s263, %s264
      %p275 = scmp.eq.s32.totalorder %s34, 0
      %p276 = por %p274, %p275
      %p277 = scmp.ne.s32.totalorder %s263, %s264
      %p278 = scmp.eq.s32.totalorder %s35, 3
      %p279 = por %p277, %p278
      %p281 = scmp.ne.s32.totalorder %s264, %s280
      %p282 = scmp.eq.s32.totalorder %s35, 0
      %p283 = por %p281, %p282
      %s284 = ssub.s32 %s37, %s44
      %p285 = scmp.eq.s32.totalorder %s284, 0
      %s287 = sadd.s32 %s286, 1
      %s288 = scalar_select %p285, %s286, %s287
      %p291 = pneg %p285
      %p292 = scmp.eq.s32.totalorder %s29, 3
      %p293 = por %p291, %p292
      %p294 = scmp.ne.s32.totalorder %s286, %s289
      %p295 = scmp.eq.s32.totalorder %s29, 0
      %p296 = por %p294, %p295
      %p297 = scmp.ne.s32.totalorder %s286, %s289
      %p298 = scmp.eq.s32.totalorder %s34, 3
      %p299 = por %p297, %p298
      %p300 = scmp.ne.s32.totalorder %s289, %s290
      %p301 = scmp.eq.s32.totalorder %s34, 0
      %p302 = por %p300, %p301
      %p303 = scmp.ne.s32.totalorder %s289, %s290
      %p304 = scmp.eq.s32.totalorder %s35, 3
      %p305 = por %p303, %p304
      %p307 = scmp.ne.s32.totalorder %s290, %s306
      %p308 = scmp.eq.s32.totalorder %s35, 0
      %p309 = por %p307, %p308
      %s310 = ssub.s32 %s37, %s44
      %p311 = scmp.eq.s32.totalorder %s310, 0
      %s313 = sadd.s32 %s312, 1
      %s314 = scalar_select %p311, %s312, %s313
      %p317 = pneg %p311
      %p318 = scmp.eq.s32.totalorder %s29, 3
      %p319 = por %p317, %p318
      %p320 = scmp.ne.s32.totalorder %s312, %s315
      %p321 = scmp.eq.s32.totalorder %s29, 0
      %p322 = por %p320, %p321
      %p323 = scmp.ne.s32.totalorder %s312, %s315
      %p324 = scmp.eq.s32.totalorder %s34, 3
      %p325 = por %p323, %p324
      %p326 = scmp.ne.s32.totalorder %s315, %s316
      %p327 = scmp.eq.s32.totalorder %s34, 0
      %p328 = por %p326, %p327
      %p329 = scmp.ne.s32.totalorder %s315, %s316
      %p330 = scmp.eq.s32.totalorder %s35, 3
      %p331 = por %p329, %p330
      %p333 = scmp.ne.s32.totalorder %s316, %s332
      %p334 = scmp.eq.s32.totalorder %s35, 0
      %p335 = por %p333, %p334
      %s336 = ssub.s32 %s37, %s44
      %p337 = scmp.eq.s32.totalorder %s336, 0
      %s339 = sadd.s32 %s338, 1
      %s340 = scalar_select %p337, %s338, %s339
      %p343 = pneg %p337
      %p344 = scmp.eq.s32.totalorder %s29, 3
      %p345 = por %p343, %p344
      %p346 = scmp.ne.s32.totalorder %s338, %s341
      %p347 = scmp.eq.s32.totalorder %s29, 0
      %p348 = por %p346, %p347
      %p349 = scmp.ne.s32.totalorder %s338, %s341
      %p350 = scmp.eq.s32.totalorder %s34, 3
      %p351 = por %p349, %p350
      %p352 = scmp.ne.s32.totalorder %s341, %s342
      %p353 = scmp.eq.s32.totalorder %s34, 0
      %p354 = por %p352, %p353
      %p355 = scmp.ne.s32.totalorder %s341, %s342
      %p356 = scmp.eq.s32.totalorder %s35, 3
      %p357 = por %p355, %p356
      %p359 = scmp.ne.s32.totalorder %s342, %s358
      %p360 = scmp.eq.s32.totalorder %s35, 0
      %p361 = por %p359, %p360
      %s362 = ssub.s32 %s37, %s44
      %p363 = scmp.eq.s32.totalorder %s362, 0
      %s365 = sadd.s32 %s364, 1
      %s366 = scalar_select %p363, %s364, %s365
      %p369 = pneg %p363
      %p370 = scmp.eq.s32.totalorder %s29, 3
      %p371 = por %p369, %p370
      %p372 = scmp.ne.s32.totalorder %s364, %s367
      %p373 = scmp.eq.s32.totalorder %s29, 0
      %p374 = por %p372, %p373
      %p375 = scmp.ne.s32.totalorder %s364, %s367
      %p376 = scmp.eq.s32.totalorder %s34, 3
      %p377 = por %p375, %p376
      %p378 = scmp.ne.s32.totalorder %s367, %s368
      %p379 = scmp.eq.s32.totalorder %s34, 0
      %p380 = por %p378, %p379
      %p381 = scmp.ne.s32.totalorder %s367, %s368
      %p382 = scmp.eq.s32.totalorder %s35, 3
      %p383 = por %p381, %p382
      %p385 = scmp.ne.s32.totalorder %s368, %s384
      %p386 = scmp.eq.s32.totalorder %s35, 0
      %p387 = por %p385, %p386
      %s388 = ssub.s32 %s37, %s44
      %p389 = scmp.eq.s32.totalorder %s388, 0
      %s391 = sadd.s32 %s390, 1
      %s392 = scalar_select %p389, %s390, %s391
      %p395 = pneg %p389
      %p396 = scmp.eq.s32.totalorder %s29, 3
      %p397 = por %p395, %p396
      %p398 = scmp.ne.s32.totalorder %s390, %s393
      %p399 = scmp.eq.s32.totalorder %s29, 0
      %p400 = por %p398, %p399
      %p401 = scmp.ne.s32.totalorder %s390, %s393
      %p402 = scmp.eq.s32.totalorder %s34, 3
      %p403 = por %p401, %p402
      %p404 = scmp.ne.s32.totalorder %s393, %s394
      %p405 = scmp.eq.s32.totalorder %s34, 0
      %p406 = por %p404, %p405
      %p407 = scmp.ne.s32.totalorder %s393, %s394
      %p408 = scmp.eq.s32.totalorder %s35, 3
      %p409 = por %p407, %p408
      %p411 = scmp.ne.s32.totalorder %s394, %s410
      %p412 = scmp.eq.s32.totalorder %s35, 0
      %p413 = por %p411, %p412
      %s414 = ssub.s32 %s37, %s44
      %p415 = scmp.eq.s32.totalorder %s414, 0
      %s417 = sadd.s32 %s416, 1
      %s418 = scalar_select %p415, %s416, %s417
      %p421 = pneg %p415
      %p422 = scmp.eq.s32.totalorder %s29, 3
      %p423 = por %p421, %p422
      %p424 = scmp.ne.s32.totalorder %s416, %s419
      %p425 = scmp.eq.s32.totalorder %s29, 0
      %p426 = por %p424, %p425
      %p427 = scmp.ne.s32.totalorder %s416, %s419
      %p428 = scmp.eq.s32.totalorder %s34, 3
      %p429 = por %p427, %p428
      %p430 = scmp.ne.s32.totalorder %s419, %s420
      %p431 = scmp.eq.s32.totalorder %s34, 0
      %p432 = por %p430, %p431
      %p433 = scmp.ne.s32.totalorder %s419, %s420
      %p434 = scmp.eq.s32.totalorder %s35, 3
      %p435 = por %p433, %p434
      %p437 = scmp.ne.s32.totalorder %s420, %s436
      %p438 = scmp.eq.s32.totalorder %s35, 0
      %p439 = por %p437, %p438
      %s440 = ssub.s32 %s37, %s44
      %p441 = scmp.eq.s32.totalorder %s440, 0
      %s443 = sadd.s32 %s442, 1
      %s444 = scalar_select %p441, %s442, %s443
      %p447 = pneg %p441
      %p448 = scmp.eq.s32.totalorder %s29, 3
      %p449 = por %p447, %p448
      %p450 = scmp.ne.s32.totalorder %s442, %s445
      %p451 = scmp.eq.s32.totalorder %s29, 0
      %p452 = por %p450, %p451
      %p453 = scmp.ne.s32.totalorder %s442, %s445
      %p454 = scmp.eq.s32.totalorder %s34, 3
      %p455 = por %p453, %p454
      %p456 = scmp.ne.s32.totalorder %s445, %s446
      %p457 = scmp.eq.s32.totalorder %s34, 0
      %p458 = por %p456, %p457
      %p459 = scmp.ne.s32.totalorder %s445, %s446
      %p460 = scmp.eq.s32.totalorder %s35, 3
      %p461 = por %p459, %p460
      %p463 = scmp.ne.s32.totalorder %s446, %s462
      %p464 = scmp.eq.s32.totalorder %s35, 0
      %p465 = por %p463, %p464
      %s466 = ssub.s32 %s37, %s44
      %p467 = scmp.eq.s32.totalorder %s466, 0
      %s469 = sadd.s32 %s468, 1
      %s470 = scalar_select %p467, %s468, %s469
      %p473 = pneg %p467
      %p474 = scmp.eq.s32.totalorder %s29, 3
      %p475 = por %p473, %p474
      %p476 = scmp.ne.s32.totalorder %s468, %s471
      %p477 = scmp.eq.s32.totalorder %s29, 0
      %p478 = por %p476, %p477
      %p479 = scmp.ne.s32.totalorder %s468, %s471
      %p480 = scmp.eq.s32.totalorder %s34, 3
      %p481 = por %p479, %p480
      %p482 = scmp.ne.s32.totalorder %s471, %s472
      %p483 = scmp.eq.s32.totalorder %s34, 0
      %p484 = por %p482, %p483
      %p485 = scmp.ne.s32.totalorder %s471, %s472
      %p486 = scmp.eq.s32.totalorder %s35, 3
      %p487 = por %p485, %p486
      %p489 = scmp.ne.s32.totalorder %s472, %s488
      %p490 = scmp.eq.s32.totalorder %s35, 0
      %p491 = por %p489, %p490
      %s493 = sadd.s32 %s492, 1
      %p496 = scmp.eq.s32.totalorder %s29, 3
      %p497 = scmp.ne.s32.totalorder %s492, %s494
      %p498 = scmp.eq.s32.totalorder %s29, 0
      %p499 = por %p497, %p498
      %p500 = scmp.ne.s32.totalorder %s492, %s494
      %p501 = scmp.eq.s32.totalorder %s34, 3
      %p502 = por %p500, %p501
      %p503 = scmp.ne.s32.totalorder %s494, %s495
      %p504 = scmp.eq.s32.totalorder %s34, 0
      %p505 = por %p503, %p504
      %p506 = scmp.ne.s32.totalorder %s494, %s495
      %p507 = scmp.eq.s32.totalorder %s35, 3
      %p508 = por %p506, %p507
      %p510 = scmp.ne.s32.totalorder %s495, %s509
      %p511 = scmp.eq.s32.totalorder %s35, 0
      %p512 = por %p510, %p511
      %s514 = sadd.s32 %s513, 1
      %p517 = scmp.eq.s32.totalorder %s29, 3
      %p518 = scmp.ne.s32.totalorder %s513, %s515
      %p519 = scmp.eq.s32.totalorder %s29, 0
      %p520 = por %p518, %p519
      %p521 = scmp.ne.s32.totalorder %s513, %s515
      %p522 = scmp.eq.s32.totalorder %s34, 3
      %p523 = por %p521, %p522
      %p524 = scmp.ne.s32.totalorder %s515, %s516
      %p525 = scmp.eq.s32.totalorder %s34, 0
      %p526 = por %p524, %p525
      %p527 = scmp.ne.s32.totalorder %s515, %s516
      %p528 = scmp.eq.s32.totalorder %s35, 3
      %p529 = por %p527, %p528
      %p531 = scmp.ne.s32.totalorder %s516, %s530
      %p532 = scmp.eq.s32.totalorder %s35, 0
      %p533 = por %p531, %p532
      %s534 = ssub.s32 %s36, %s48
      %p535 = scmp.eq.s32.totalorder %s534, 0
      %s537 = sadd.s32 %s536, 1
      %s538 = scalar_select %p535, %s536, %s537
      %p541 = pneg %p535
      %p542 = scmp.eq.s32.totalorder %s29, 3
      %p543 = por %p541, %p542
      %p544 = scmp.ne.s32.totalorder %s536, %s539
      %p545 = scmp.eq.s32.totalorder %s29, 0
      %p546 = por %p544, %p545
      %p547 = scmp.ne.s32.totalorder %s536, %s539
      %p548 = scmp.eq.s32.totalorder %s34, 3
      %p549 = por %p547, %p548
      %p550 = scmp.ne.s32.totalorder %s539, %s540
      %p551 = scmp.eq.s32.totalorder %s34, 0
      %p552 = por %p550, %p551
      %p553 = scmp.ne.s32.totalorder %s539, %s540
      %p554 = scmp.eq.s32.totalorder %s35, 3
      %p555 = por %p553, %p554
      %p557 = scmp.ne.s32.totalorder %s540, %s556
      %p558 = scmp.eq.s32.totalorder %s35, 0
      %p559 = por %p557, %p558
      %p560 = scmp.le.s32.totalorder 1, %s29
      %p561 = scmp.lt.s32.totalorder %s29, 5
      %p562 = pnand %p560, %p561
      %p563 = pneg %p562
      // Predicated region
      $region9: #{ctc_self_attention_forward.1} parent=5 // pred_check
        _
      $region10: #{ctc_self_attention_forward.1} parent=5 // pred_check_branch
        %565 = sbr.rel (%p562) target = $region12
      $region11: #{ctc_self_attention_forward.1} parent=5 // pred_region
        %s566 = ssub.s32 %s29, 1
        // Predicated region
        $region13: #{ctc_self_attention_forward.1} parent=11 // pred_check
          %p567 = pneg %p88
        $region14: #{ctc_self_attention_forward.1} parent=11 // pred_check_branch
          %569 = sbr.rel (%p567) target = $region16
        $region15: #{ctc_self_attention_forward.1} parent=11 // pred_region
          _
        $region16: #{ctc_self_attention_forward.1} parent=11 // pred_fallthru
          _
        // Predicated region
        $region17: #{ctc_self_attention_forward.1} parent=11 // pred_check
          %p570 = pneg %p109
        $region18: #{ctc_self_attention_forward.1} parent=11 // pred_check_branch
          %572 = sbr.rel (%p570) target = $region20
        $region19: #{ctc_self_attention_forward.1} parent=11 // pred_region
          _
        $region20: #{ctc_self_attention_forward.1} parent=11 // pred_fallthru
          _
        // Predicated region
        $region21: #{ctc_self_attention_forward.1} parent=11 // pred_check
          %p573 = pneg %p130
        $region22: #{ctc_self_attention_forward.1} parent=11 // pred_check_branch
          %575 = sbr.rel (%p573) target = $region24
        $region23: #{ctc_self_attention_forward.1} parent=11 // pred_region
          _
        $region24: #{ctc_self_attention_forward.1} parent=11 // pred_fallthru
          _
        // Predicated region
        $region25: #{ctc_self_attention_forward.1} parent=11 // pred_check
          %p576 = pneg %p151
        $region26: #{ctc_self_attention_forward.1} parent=11 // pred_check_branch
          %578 = sbr.rel (%p576) target = $region28
        $region27: #{ctc_self_attention_forward.1} parent=11 // pred_region
          _
        $region28: #{ctc_self_attention_forward.1} parent=11 // pred_fallthru
          _
        // Predicated region
        $region29: #{ctc_self_attention_forward.1} parent=11 // pred_check
          %p579 = pneg %p172
        $region30: #{ctc_self_attention_forward.1} parent=11 // pred_check_branch
          %581 = sbr.rel (%p579) target = $region32
        $region31: #{ctc_self_attention_forward.1} parent=11 // pred_region
          _
        $region32: #{ctc_self_attention_forward.1} parent=11 // pred_fallthru
          _
        // Predicated region
        $region33: #{ctc_self_attention_forward.1} parent=11 // pred_check
          %p582 = pneg %p505
        $region34: #{ctc_self_attention_forward.1} parent=11 // pred_check_branch
          %584 = sbr.rel (%p582) target = $region36
        $region35: #{ctc_self_attention_forward.1} parent=11 // pred_region
          _
        $region36: #{ctc_self_attention_forward.1} parent=11 // pred_fallthru
          _
        // Predicated region
        $region37: #{ctc_self_attention_forward.1} parent=11 // pred_check
          %p585 = pneg %p526
        $region38: #{ctc_self_attention_forward.1} parent=11 // pred_check_branch
          %587 = sbr.rel (%p585) target = $region40
        $region39: #{ctc_self_attention_forward.1} parent=11 // pred_region
          _
        $region40: #{ctc_self_attention_forward.1} parent=11 // pred_fallthru
          _
      $region12: #{ctc_self_attention_forward.1} parent=5 // pred_fallthru
        _
      %p588 = scmp.lt.s32.totalorder %s29, 4
      // Predicated region
      $region41: #{ctc_self_attention_forward.1} parent=5 // pred_check
        %p589 = pneg %p588
      $region42: #{ctc_self_attention_forward.1} parent=5 // pred_check_branch
        %591 = sbr.rel (%p589) target = $region44
      $region43: #{ctc_self_attention_forward.1} parent=5 // pred_region
        // Predicated region
        $region45: #{ctc_self_attention_forward.1} parent=43 // pred_check
          %p592 = pneg %p61
        $region46: #{ctc_self_attention_forward.1} parent=43 // pred_check_branch
          %594 = sbr.rel (%p592) target = $region48
        $region47: #{ctc_self_attention_forward.1} parent=43 // pred_region
          %p595 = scmp.lt.s32.totalorder %s36, 1
          %s596 = scalar_select %p595, %s36, 1
          %s597 = smul.addr %s596, 3
          %s598 = smul.addr %s597, 8
          %s599 = scalar_lea.vmem %s0, %s598
        $region48: #{ctc_self_attention_forward.1} parent=43 // pred_fallthru
          _
        // Predicated region
        $region49: #{ctc_self_attention_forward.1} parent=43 // pred_check
          %p600 = pneg %p192
        $region50: #{ctc_self_attention_forward.1} parent=43 // pred_check_branch
          %602 = sbr.rel (%p600) target = $region52
        $region51: #{ctc_self_attention_forward.1} parent=43 // pred_region
          %p603 = scmp.lt.s32.totalorder %s37, 1
          %s604 = scalar_select %p603, %s37, 1
          %s605 = smul.addr %s604, 4
          %s606 = smul.addr %s605, 4
          %s607 = scalar_lea.vmem %s6, %s606
        $region52: #{ctc_self_attention_forward.1} parent=43 // pred_fallthru
          _
        // Predicated region
        $region53: #{ctc_self_attention_forward.1} parent=43 // pred_check
          %p608 = pneg %p218
        $region54: #{ctc_self_attention_forward.1} parent=43 // pred_check_branch
          %610 = sbr.rel (%p608) target = $region56
        $region55: #{ctc_self_attention_forward.1} parent=43 // pred_region
          %p611 = scmp.lt.s32.totalorder %s37, 1
          %s612 = scalar_select %p611, %s37, 1
          %s613 = scalar_lea.vmem %s7, %s612
        $region56: #{ctc_self_attention_forward.1} parent=43 // pred_fallthru
          _
        // Predicated region
        $region57: #{ctc_self_attention_forward.1} parent=43 // pred_check
          %p614 = pneg %p244
        $region58: #{ctc_self_attention_forward.1} parent=43 // pred_check_branch
          %616 = sbr.rel (%p614) target = $region60
        $region59: #{ctc_self_attention_forward.1} parent=43 // pred_region
          %p617 = scmp.lt.s32.totalorder %s37, 1
          %s618 = scalar_select %p617, %s37, 1
          %s619 = smul.addr %s618, 4
          %s620 = smul.addr %s619, 4
          %s621 = scalar_lea.vmem %s8, %s620
        $region60: #{ctc_self_attention_forward.1} parent=43 // pred_fallthru
          _
        // Predicated region
        $region61: #{ctc_self_attention_forward.1} parent=43 // pred_check
          %p622 = pneg %p270
        $region62: #{ctc_self_attention_forward.1} parent=43 // pred_check_branch
          %624 = sbr.rel (%p622) target = $region64
        $region63: #{ctc_self_attention_forward.1} parent=43 // pred_region
          %p625 = scmp.lt.s32.totalorder %s37, 1
          %s626 = scalar_select %p625, %s37, 1
          %s627 = scalar_lea.vmem %s9, %s626
        $region64: #{ctc_self_attention_forward.1} parent=43 // pred_fallthru
          _
        // Predicated region
        $region65: #{ctc_self_attention_forward.1} parent=43 // pred_check
          %p628 = pneg %p296
        $region66: #{ctc_self_attention_forward.1} parent=43 // pred_check_branch
          %630 = sbr.rel (%p628) target = $region68
        $region67: #{ctc_self_attention_forward.1} parent=43 // pred_region
          %p631 = scmp.lt.s32.totalorder %s37, 1
          %s632 = scalar_select %p631, %s37, 1
          %s633 = scalar_lea.vmem %s10, %s632
        $region68: #{ctc_self_attention_forward.1} parent=43 // pred_fallthru
          _
        // Predicated region
        $region69: #{ctc_self_attention_forward.1} parent=43 // pred_check
          %p634 = pneg %p322
        $region70: #{ctc_self_attention_forward.1} parent=43 // pred_check_branch
          %636 = sbr.rel (%p634) target = $region72
        $region71: #{ctc_self_attention_forward.1} parent=43 // pred_region
          %p637 = scmp.lt.s32.totalorder %s37, 1
          %s638 = scalar_select %p637, %s37, 1
          %s639 = scalar_lea.vmem %s11, %s638
        $region72: #{ctc_self_attention_forward.1} parent=43 // pred_fallthru
          _
        // Predicated region
        $region73: #{ctc_self_attention_forward.1} parent=43 // pred_check
          %p640 = pneg %p348
        $region74: #{ctc_self_attention_forward.1} parent=43 // pred_check_branch
          %642 = sbr.rel (%p640) target = $region76
        $region75: #{ctc_self_attention_forward.1} parent=43 // pred_region
          %p643 = scmp.lt.s32.totalorder %s37, 1
          %s644 = scalar_select %p643, %s37, 1
          %s645 = smul.addr %s644, 4
          %s646 = smul.addr %s645, 4
          %s647 = scalar_lea.vmem %s12, %s646
        $region76: #{ctc_self_attention_forward.1} parent=43 // pred_fallthru
          _
        // Predicated region
        $region77: #{ctc_self_attention_forward.1} parent=43 // pred_check
          %p648 = pneg %p374
        $region78: #{ctc_self_attention_forward.1} parent=43 // pred_check_branch
          %650 = sbr.rel (%p648) target = $region80
        $region79: #{ctc_self_attention_forward.1} parent=43 // pred_region
          %p651 = scmp.lt.s32.totalorder %s37, 1
          %s652 = scalar_select %p651, %s37, 1
          %s653 = scalar_lea.vmem %s13, %s652
        $region80: #{ctc_self_attention_forward.1} parent=43 // pred_fallthru
          _
        // Predicated region
        $region81: #{ctc_self_attention_forward.1} parent=43 // pred_check
          %p654 = pneg %p400
        $region82: #{ctc_self_attention_forward.1} parent=43 // pred_check_branch
          %656 = sbr.rel (%p654) target = $region84
        $region83: #{ctc_self_attention_forward.1} parent=43 // pred_region
          %p657 = scmp.lt.s32.totalorder %s37, 1
          %s658 = scalar_select %p657, %s37, 1
          %s659 = smul.addr %s658, 8
          %s660 = smul.addr %s659, 4
          %s661 = scalar_lea.vmem %s14, %s660
        $region84: #{ctc_self_attention_forward.1} parent=43 // pred_fallthru
          _
        // Predicated region
        $region85: #{ctc_self_attention_forward.1} parent=43 // pred_check
          %p662 = pneg %p426
        $region86: #{ctc_self_attention_forward.1} parent=43 // pred_check_branch
          %664 = sbr.rel (%p662) target = $region88
        $region87: #{ctc_self_attention_forward.1} parent=43 // pred_region
          %p665 = scmp.lt.s32.totalorder %s37, 1
          %s666 = scalar_select %p665, %s37, 1
          %s667 = scalar_lea.vmem %s15, %s666
        $region88: #{ctc_self_attention_forward.1} parent=43 // pred_fallthru
          _
        // Predicated region
        $region89: #{ctc_self_attention_forward.1} parent=43 // pred_check
          %p668 = pneg %p452
        $region90: #{ctc_self_attention_forward.1} parent=43 // pred_check_branch
          %670 = sbr.rel (%p668) target = $region92
        $region91: #{ctc_self_attention_forward.1} parent=43 // pred_region
          %p671 = scmp.lt.s32.totalorder %s37, 1
          %s672 = scalar_select %p671, %s37, 1
          %s673 = scalar_lea.vmem %s16, %s672
        $region92: #{ctc_self_attention_forward.1} parent=43 // pred_fallthru
          _
        // Predicated region
        $region93: #{ctc_self_attention_forward.1} parent=43 // pred_check
          %p674 = pneg %p478
        $region94: #{ctc_self_attention_forward.1} parent=43 // pred_check_branch
          %676 = sbr.rel (%p674) target = $region96
        $region95: #{ctc_self_attention_forward.1} parent=43 // pred_region
          %p677 = scmp.lt.s32.totalorder %s37, 1
          %s678 = scalar_select %p677, %s37, 1
          %s679 = scalar_lea.vmem %s17, %s678
        $region96: #{ctc_self_attention_forward.1} parent=43 // pred_fallthru
          _
      $region44: #{ctc_self_attention_forward.1} parent=5 // pred_fallthru
        _
      %p680 = scmp.le.s32.totalorder 1, %s29
      %p681 = scmp.lt.s32.totalorder %s29, 5
      %p682 = pnand %p680, %p681
      %p683 = pneg %p682
      // Predicated region
      $region97: #{ctc_self_attention_forward.1} parent=5 // pred_check
        _
      $region98: #{ctc_self_attention_forward.1} parent=5 // pred_check_branch
        %685 = sbr.rel (%p682) target = $region100
      $region99: #{ctc_self_attention_forward.1} parent=5 // pred_region
        %s686 = ssub.s32 %s29, 1
        %p687 = scmp.lt.s32.totalorder %s38, 1
        %s688 = scalar_select %p687, %s38, 1
        %s689 = smul.addr %s688, 3
        %s690 = smul.addr %s689, 8
        %s691 = scalar_lea.vmem %s0, %s690
        %p692 = pneg %p67
        %p693 = pneg %p64
        %p694 = pneg %p88
        %p695 = pneg %p85
        %p696 = pneg %p109
        %p697 = pneg %p106
        %p698 = pneg %p130
        %p699 = pneg %p127
        %p700 = pneg %p151
        %p701 = pneg %p148
        %p702 = pneg %p172
        %p703 = pneg %p169
        %p704 = scmp.lt.s32.totalorder %s39, 1
        %s705 = scalar_select %p704, %s39, 1
        %s706 = smul.addr %s705, 4
        %s707 = smul.addr %s706, 4
        %s708 = scalar_lea.vmem %s6, %s707
        %p709 = pneg %p198
        %p710 = pneg %p195
        %p711 = scmp.lt.s32.totalorder %s39, 1
        %s712 = scalar_select %p711, %s39, 1
        %s713 = scalar_lea.vmem %s7, %s712
        %p714 = pneg %p224
        %p715 = pneg %p221
        %p716 = scmp.lt.s32.totalorder %s39, 1
        %s717 = scalar_select %p716, %s39, 1
        %s718 = smul.addr %s717, 4
        %s719 = smul.addr %s718, 4
        %s720 = scalar_lea.vmem %s8, %s719
        %p721 = pneg %p250
        %p722 = pneg %p247
        %p723 = scmp.lt.s32.totalorder %s39, 1
        %s724 = scalar_select %p723, %s39, 1
        %s725 = scalar_lea.vmem %s9, %s724
        %p726 = pneg %p276
        %p727 = pneg %p273
        %p728 = scmp.lt.s32.totalorder %s39, 1
        %s729 = scalar_select %p728, %s39, 1
        %s730 = scalar_lea.vmem %s10, %s729
        %p731 = pneg %p302
        %p732 = pneg %p299
        %p733 = scmp.lt.s32.totalorder %s39, 1
        %s734 = scalar_select %p733, %s39, 1
        %s735 = scalar_lea.vmem %s11, %s734
        %p736 = pneg %p328
        %p737 = pneg %p325
        %p738 = scmp.lt.s32.totalorder %s39, 1
        %s739 = scalar_select %p738, %s39, 1
        %s740 = smul.addr %s739, 4
        %s741 = smul.addr %s740, 4
        %s742 = scalar_lea.vmem %s12, %s741
        %p743 = pneg %p354
        %p744 = pneg %p351
        %p745 = scmp.lt.s32.totalorder %s39, 1
        %s746 = scalar_select %p745, %s39, 1
        %s747 = scalar_lea.vmem %s13, %s746
        %p748 = pneg %p380
        %p749 = pneg %p377
        %p750 = scmp.lt.s32.totalorder %s39, 1
        %s751 = scalar_select %p750, %s39, 1
        %s752 = smul.addr %s751, 8
        %s753 = smul.addr %s752, 4
        %s754 = scalar_lea.vmem %s14, %s753
        %p755 = pneg %p406
        %p756 = pneg %p403
        %p757 = scmp.lt.s32.totalorder %s39, 1
        %s758 = scalar_select %p757, %s39, 1
        %s759 = scalar_lea.vmem %s15, %s758
        %p760 = pneg %p432
        %p761 = pneg %p429
        %p762 = scmp.lt.s32.totalorder %s39, 1
        %s763 = scalar_select %p762, %s39, 1
        %s764 = scalar_lea.vmem %s16, %s763
        %p765 = pneg %p458
        %p766 = pneg %p455
        %p767 = scmp.lt.s32.totalorder %s39, 1
        %s768 = scalar_select %p767, %s39, 1
        %s769 = scalar_lea.vmem %s17, %s768
        %p770 = pneg %p484
        %p771 = pneg %p481
        %p772 = pneg %p505
        %p773 = pneg %p502
        %p774 = pneg %p526
        %p775 = pneg %p523
        %p776 = pneg %p552
        %p777 = pneg %p549
        %s778 = sand.u32 %s539, 1
        %s779 = scalar_lea.sflag [#allocation4], %s778
        %s780 = sand.u32 %s539, 1
        %s781 = smul.addr %s780, 16
        %s782 = scalar_lea.vmem [#allocation3], %s781
        %p783 = scmp.lt.s32.totalorder %s38, 1
        %s784 = scalar_select %p783, %s38, 1
        %s785 = smul.addr %s784, 3
        %s786 = smul.addr %s785, 8
        %s787 = scalar_lea.vmem %s0, %s786
        %p788 = scmp.lt.s32.totalorder %s39, 1
        %s789 = scalar_select %p788, %s39, 1
        %s790 = smul.addr %s789, 4
        %s791 = smul.addr %s790, 4
        %s792 = scalar_lea.vmem %s6, %s791
        %p793 = scmp.lt.s32.totalorder %s39, 1
        %s794 = scalar_select %p793, %s39, 1
        %s795 = scalar_lea.vmem %s7, %s794
        %p796 = scmp.lt.s32.totalorder %s39, 1
        %s797 = scalar_select %p796, %s39, 1
        %s798 = smul.addr %s797, 4
        %s799 = smul.addr %s798, 4
        %s800 = scalar_lea.vmem %s8, %s799
        %p801 = scmp.lt.s32.totalorder %s39, 1
        %s802 = scalar_select %p801, %s39, 1
        %s803 = scalar_lea.vmem %s9, %s802
        %p804 = scmp.lt.s32.totalorder %s39, 1
        %s805 = scalar_select %p804, %s39, 1
        %s806 = scalar_lea.vmem %s10, %s805
        %p807 = scmp.lt.s32.totalorder %s39, 1
        %s808 = scalar_select %p807, %s39, 1
        %s809 = scalar_lea.vmem %s11, %s808
        %p810 = scmp.lt.s32.totalorder %s39, 1
        %s811 = scalar_select %p810, %s39, 1
        %s812 = smul.addr %s811, 4
        %s813 = smul.addr %s812, 4
        %s814 = scalar_lea.vmem %s12, %s813
        %p815 = scmp.lt.s32.totalorder %s39, 1
        %s816 = scalar_select %p815, %s39, 1
        %s817 = scalar_lea.vmem %s13, %s816
        %p818 = scmp.lt.s32.totalorder %s39, 1
        %s819 = scalar_select %p818, %s39, 1
        %s820 = smul.addr %s819, 8
        %s821 = smul.addr %s820, 4
        %s822 = scalar_lea.vmem %s14, %s821
        %p823 = scmp.lt.s32.totalorder %s39, 1
        %s824 = scalar_select %p823, %s39, 1
        %s825 = scalar_lea.vmem %s15, %s824
        %p826 = scmp.lt.s32.totalorder %s39, 1
        %s827 = scalar_select %p826, %s39, 1
        %s828 = scalar_lea.vmem %s16, %s827
        %p829 = scmp.lt.s32.totalorder %s39, 1
        %s830 = scalar_select %p829, %s39, 1
        %s831 = scalar_lea.vmem %s17, %s830
        %p833 = scmp.eq.s32.totalorder %s39, 0
        // Predicated region
        $region101: #{ctc_self_attention_forward.1} parent=99 // pred_check
          %p834 = pneg %p833
        $region102: #{ctc_self_attention_forward.1} parent=99 // pred_check_branch
          %836 = sbr.rel (%p834) target = $region104
        $region103: #{ctc_self_attention_forward.1} parent=99 // pred_region
          %v837 = vld [vmem:[%s787] sm:$0xff]
          %v838 = vld [vmem:[%s787 + $0x8] sm:$0xff]
          %v839 = vld [vmem:[%s787 + $0x10] sm:$0x1]
          %v840 = vpack.c.bf16 %v838, %v837
          %v841 = vpack.c.bf16 %v839, %v839
          %v842 = vld [vmem:[%s2] sm:$0xf]
          %v843 = vld [vmem:[%s2 + $0x4] sm:$0xf]
          %s844 = scalar_lea.vmem %s2, 8
          %v845 = vld [vmem:[%s844] sm:$0xf]
          %v846 = vld [vmem:[%s844 + $0x4] sm:$0xf]
          %849 = vrot.lane.b32.xlu0 %v840, 112
          %v850 = vpop.permute.xlu0 %849
          %851 = vrot.lane.b32.xlu0 %v841, 112
          %v852 = vpop.permute.xlu0 %851
          %v855 = vunpack.c.l.b16 %v845
          %v856 = vunpack.c.l.b16 %v846
          %v857 = vpack.c.b16 %v856, %v855
          %vm859 = vcmask 130048
          %v861 = vsel %vm859, %v850, 0
          %v864 = vsel %vm859, %v852, 0
          %866 = vmatprep.subr.bf16.mxu0 0
          %867 = vmatpush1.bf16.msra.mxu0 %v857
          %868 = vmatprep.subr.bf16.mxu0 0
          %869 = vmatpush1.bf16.msra.mxu0 0
          %870 = vmatprep.subr.bf16.mxu0 0
          %871 = vmatpush1.bf16.msra.mxu0 0
          %872 = vmatprep.subr.bf16.mxu0 0
          %873 = vmatpush1.bf16.msra.mxu0 0
          %874 = vmatprep.subr.bf16.mxu0 0
          %875 = vmatpush1.bf16.msra.mxu0 0
          %876 = vmatprep.subr.bf16.mxu0 0
          %877 = vmatpush1.bf16.msra.mxu0 0
          %878 = vmatprep.subr.bf16.mxu0 0
          %879 = vmatpush1.bf16.msra.mxu0 0
          %880 = vmatprep.subr.bf16.mxu0 0
          %881 = vmatpush1.bf16.msra.mxu0 0
          %882 = vmatprep.subr.bf16.mxu0 0
          %883 = vmatpush1.bf16.msra.mxu0 0
          %884 = vmatprep.subr.bf16.mxu0 0
          %885 = vmatpush1.bf16.msra.mxu0 0
          %886 = vmatprep.subr.bf16.mxu0 0
          %887 = vmatpush1.bf16.msra.mxu0 0
          %888 = vmatprep.subr.bf16.mxu0 0
          %889 = vmatpush1.bf16.msra.mxu0 0
          %890 = vmatprep.subr.bf16.mxu0 0
          %891 = vmatpush1.bf16.msra.mxu0 0
          %892 = vmatprep.subr.bf16.mxu0 0
          %893 = vmatpush1.bf16.msra.mxu0 0
          %894 = vmatprep.subr.bf16.mxu0 0
          %895 = vmatpush1.bf16.msra.mxu0 0
          %896 = vmatprep.subr.bf16.mxu0 0
          %897 = vmatpush1.bf16.msra.mxu0 0
          %898 = vmatprep.mubr.bf16.mxu0 0
          %899 = vmatmul.mubr.bf16.gmra.mrb[0].mxu0 %v861
          %v900 = vpop.f32.mrb[0].mxu0
          %v901 = vadd.f32 0.0, %v900
          %v902 = vpop.f32.mrb[0].mxu0
          %v903 = vpop.f32.mrb[0].mxu0
          %v904 = vadd.f32 0.0, %v903
          %v905 = vpop.f32.mrb[0].mxu0
          %906 = vmatprep.mubr.bf16.mxu0 0
          %907 = vmatmul.mubr.bf16.gmra.mrb[0].mxu0 %v864
          %v908 = vpop.f32.mrb[0].mxu0
          %v909 = vadd.f32 0.0, %v908
          %v910 = vpop.f32.mrb[0].mxu0
          %v911 = vpop.f32.mrb[0].mxu0
          %v912 = vpop.f32.mrb[0].mxu0
          %913 = vdwg.mxu0
          %v916 = vunpack.c.l.b16 %v842
          %v917 = vunpack.c.l.b16 %v843
          %v918 = vpack.c.b16 %v917, %v916
          %v921 = vsel %vm859, %v840, 0
          %v924 = vsel %vm859, %v841, 0
          %926 = vmatprep.subr.bf16.mxu0 0
          %927 = vmatpush1.bf16.msra.mxu0 %v918
          %928 = vmatprep.subr.bf16.mxu0 0
          %929 = vmatpush1.bf16.msra.mxu0 0
          %930 = vmatprep.subr.bf16.mxu0 0
          %931 = vmatpush1.bf16.msra.mxu0 0
          %932 = vmatprep.subr.bf16.mxu0 0
          %933 = vmatpush1.bf16.msra.mxu0 0
          %934 = vmatprep.subr.bf16.mxu0 0
          %935 = vmatpush1.bf16.msra.mxu0 0
          %936 = vmatprep.subr.bf16.mxu0 0
          %937 = vmatpush1.bf16.msra.mxu0 0
          %938 = vmatprep.subr.bf16.mxu0 0
          %939 = vmatpush1.bf16.msra.mxu0 0
          %940 = vmatprep.subr.bf16.mxu0 0
          %941 = vmatpush1.bf16.msra.mxu0 0
          %942 = vmatprep.subr.bf16.mxu0 0
          %943 = vmatpush1.bf16.msra.mxu0 0
          %944 = vmatprep.subr.bf16.mxu0 0
          %945 = vmatpush1.bf16.msra.mxu0 0
          %946 = vmatprep.subr.bf16.mxu0 0
          %947 = vmatpush1.bf16.msra.mxu0 0
          %948 = vmatprep.subr.bf16.mxu0 0
          %949 = vmatpush1.bf16.msra.mxu0 0
          %950 = vmatprep.subr.bf16.mxu0 0
          %951 = vmatpush1.bf16.msra.mxu0 0
          %952 = vmatprep.subr.bf16.mxu0 0
          %953 = vmatpush1.bf16.msra.mxu0 0
          %954 = vmatprep.subr.bf16.mxu0 0
          %955 = vmatpush1.bf16.msra.mxu0 0
          %956 = vmatprep.subr.bf16.mxu0 0
          %957 = vmatpush1.bf16.msra.mxu0 0
          %958 = vmatprep.mubr.bf16.mxu0 0
          %959 = vmatmul.mubr.bf16.gmra.mrb[0].mxu0 %v921
          %v960 = vpop.f32.mrb[0].mxu0
          %v961 = vadd.f32 %v901, %v960
          %v962 = vpop.f32.mrb[0].mxu0
          %v963 = vpop.f32.mrb[0].mxu0
          %v964 = vadd.f32 %v904, %v963
          %v965 = vpop.f32.mrb[0].mxu0
          %966 = vmatprep.mubr.bf16.mxu0 0
          %967 = vmatmul.mubr.bf16.gmra.mrb[0].mxu0 %v924
          %v968 = vpop.f32.mrb[0].mxu0
          %v969 = vadd.f32 %v909, %v968
          %v970 = vpop.f32.mrb[0].mxu0
          %v971 = vpop.f32.mrb[0].mxu0
          %v972 = vpop.f32.mrb[0].mxu0
          %973 = vdwg.mxu0
          %s974 = scalar_lea.vmem %s2, 16
          %v975 = vld [vmem:[%s974] sm:$0xf]
          %v976 = vld [vmem:[%s974 + $0x4] sm:$0xf]
          %977 = vrot.lane.b32.xlu0 %v840, 96
          %v978 = vpop.permute.xlu0 %977
          %979 = vrot.lane.b32.xlu0 %v841, 96
          %v980 = vpop.permute.xlu0 %979
          %v983 = vunpack.c.l.b16 %v975
          %v984 = vunpack.c.l.b16 %v976
          %v985 = vpack.c.b16 %v984, %v983
          %v988 = vsel %vm859, %v978, 0
          %v991 = vsel %vm859, %v980, 0
          %993 = vmatprep.subr.bf16.mxu0 0
          %994 = vmatpush1.bf16.msra.mxu0 %v985
          %995 = vmatprep.subr.bf16.mxu0 0
          %996 = vmatpush1.bf16.msra.mxu0 0
          %997 = vmatprep.subr.bf16.mxu0 0
          %998 = vmatpush1.bf16.msra.mxu0 0
          %999 = vmatprep.subr.bf16.mxu0 0
          %1000 = vmatpush1.bf16.msra.mxu0 0
          %1001 = vmatprep.subr.bf16.mxu0 0
          %1002 = vmatpush1.bf16.msra.mxu0 0
          %1003 = vmatprep.subr.bf16.mxu0 0
          %1004 = vmatpush1.bf16.msra.mxu0 0
          %1005 = vmatprep.subr.bf16.mxu0 0
          %1006 = vmatpush1.bf16.msra.mxu0 0
          %1007 = vmatprep.subr.bf16.mxu0 0
          %1008 = vmatpush1.bf16.msra.mxu0 0
          %1009 = vmatprep.subr.bf16.mxu0 0
          %1010 = vmatpush1.bf16.msra.mxu0 0
          %1011 = vmatprep.subr.bf16.mxu0 0
          %1012 = vmatpush1.bf16.msra.mxu0 0
          %1013 = vmatprep.subr.bf16.mxu0 0
          %1014 = vmatpush1.bf16.msra.mxu0 0
          %1015 = vmatprep.subr.bf16.mxu0 0
          %1016 = vmatpush1.bf16.msra.mxu0 0
          %1017 = vmatprep.subr.bf16.mxu0 0
          %1018 = vmatpush1.bf16.msra.mxu0 0
          %1019 = vmatprep.subr.bf16.mxu0 0
          %1020 = vmatpush1.bf16.msra.mxu0 0
          %1021 = vmatprep.subr.bf16.mxu0 0
          %1022 = vmatpush1.bf16.msra.mxu0 0
          %1023 = vmatprep.subr.bf16.mxu0 0
          %1024 = vmatpush1.bf16.msra.mxu0 0
          %1025 = vmatprep.mubr.bf16.mxu0 0
          %1026 = vmatmul.mubr.bf16.gmra.mrb[0].mxu0 %v988
          %v1027 = vpop.f32.mrb[0].mxu0
          %v1028 = vadd.f32 0.0, %v1027
          %v1029 = vpop.f32.mrb[0].mxu0
          %v1030 = vpop.f32.mrb[0].mxu0
          %v1031 = vadd.f32 0.0, %v1030
          %v1032 = vpop.f32.mrb[0].mxu0
          %1033 = vmatprep.mubr.bf16.mxu0 0
          %1034 = vmatmul.mubr.bf16.gmra.mrb[0].mxu0 %v991
          %v1035 = vpop.f32.mrb[0].mxu0
          %v1036 = vadd.f32 0.0, %v1035
          %v1037 = vpop.f32.mrb[0].mxu0
          %v1038 = vpop.f32.mrb[0].mxu0
          %v1039 = vpop.f32.mrb[0].mxu0
          %1040 = vdwg.mxu0
          %v1041 = vadd.f32 %v961, %v1028
          %v1042 = vadd.f32 %v964, %v1031
          %v1043 = vadd.f32 %v969, %v1036
          %v1044 = vld [vmem:[%s3] sm:$0x1]
          %v1046 = vlaneseq
          %v1047 = vshrl.u32 %v1046, 7
          %v1048 = vsub.s32 0, %v1047
          %v1049 = vrot.slane %v1044, %v1048
          %v1051 = vadd.f32 %v1041, %v1049
          %v1052 = vadd.f32 %v1042, %v1049
          %v1053 = vadd.f32 %v1043, %v1049
          %1054 = vrot.lane.b32.xlu0 %v840, 80
          %v1055 = vpop.permute.xlu0 %1054
          %v1057 = vsel %vm859, %v1055, 0
          %1059 = vmatprep.subr.bf16.mxu0 0
          %1060 = vmatpush1.bf16.msra.mxu0 %v857
          %1061 = vmatprep.subr.bf16.mxu0 0
          %1062 = vmatpush1.bf16.msra.mxu0 0
          %1063 = vmatprep.subr.bf16.mxu0 0
          %1064 = vmatpush1.bf16.msra.mxu0 0
          %1065 = vmatprep.subr.bf16.mxu0 0
          %1066 = vmatpush1.bf16.msra.mxu0 0
          %1067 = vmatprep.subr.bf16.mxu0 0
          %1068 = vmatpush1.bf16.msra.mxu0 0
          %1069 = vmatprep.subr.bf16.mxu0 0
          %1070 = vmatpush1.bf16.msra.mxu0 0
          %1071 = vmatprep.subr.bf16.mxu0 0
          %1072 = vmatpush1.bf16.msra.mxu0 0
          %1073 = vmatprep.subr.bf16.mxu0 0
          %1074 = vmatpush1.bf16.msra.mxu0 0
          %1075 = vmatprep.subr.bf16.mxu0 0
          %1076 = vmatpush1.bf16.msra.mxu0 0
          %1077 = vmatprep.subr.bf16.mxu0 0
          %1078 = vmatpush1.bf16.msra.mxu0 0
          %1079 = vmatprep.subr.bf16.mxu0 0
          %1080 = vmatpush1.bf16.msra.mxu0 0
          %1081 = vmatprep.subr.bf16.mxu0 0
          %1082 = vmatpush1.bf16.msra.mxu0 0
          %1083 = vmatprep.subr.bf16.mxu0 0
          %1084 = vmatpush1.bf16.msra.mxu0 0
          %1085 = vmatprep.subr.bf16.mxu0 0
          %1086 = vmatpush1.bf16.msra.mxu0 0
          %1087 = vmatprep.subr.bf16.mxu0 0
          %1088 = vmatpush1.bf16.msra.mxu0 0
          %1089 = vmatprep.subr.bf16.mxu0 0
          %1090 = vmatpush1.bf16.msra.mxu0 0
          %1091 = vmatprep.mubr.bf16.mxu0 0
          %1092 = vmatmul.mubr.bf16.gmra.mrb[0].mxu0 %v1057
          %v1093 = vpop.f32.mrb[0].mxu0
          %v1094 = vadd.f32 0.0, %v1093
          %v1095 = vpop.f32.mrb[0].mxu0
          %v1096 = vpop.f32.mrb[0].mxu0
          %v1097 = vadd.f32 0.0, %v1096
          %v1098 = vpop.f32.mrb[0].mxu0
          %1099 = vdwg.mxu0
          %1100 = vmatprep.subr.bf16.mxu0 0
          %1101 = vmatpush1.bf16.msra.mxu0 %v918
          %1102 = vmatprep.subr.bf16.mxu0 0
          %1103 = vmatpush1.bf16.msra.mxu0 0
          %1104 = vmatprep.subr.bf16.mxu0 0
          %1105 = vmatpush1.bf16.msra.mxu0 0
          %1106 = vmatprep.subr.bf16.mxu0 0
          %1107 = vmatpush1.bf16.msra.mxu0 0
          %1108 = vmatprep.subr.bf16.mxu0 0
          %1109 = vmatpush1.bf16.msra.mxu0 0
          %1110 = vmatprep.subr.bf16.mxu0 0
          %1111 = vmatpush1.bf16.msra.mxu0 0
          %1112 = vmatprep.subr.bf16.mxu0 0
          %1113 = vmatpush1.bf16.msra.mxu0 0
          %1114 = vmatprep.subr.bf16.mxu0 0
          %1115 = vmatpush1.bf16.msra.mxu0 0
          %1116 = vmatprep.subr.bf16.mxu0 0
          %1117 = vmatpush1.bf16.msra.mxu0 0
          %1118 = vmatprep.subr.bf16.mxu0 0
          %1119 = vmatpush1.bf16.msra.mxu0 0
          %1120 = vmatprep.subr.bf16.mxu0 0
          %1121 = vmatpush1.bf16.msra.mxu0 0
          %1122 = vmatprep.subr.bf16.mxu0 0
          %1123 = vmatpush1.bf16.msra.mxu0 0
          %1124 = vmatprep.subr.bf16.mxu0 0
          %1125 = vmatpush1.bf16.msra.mxu0 0
          %1126 = vmatprep.subr.bf16.mxu0 0
          %1127 = vmatpush1.bf16.msra.mxu0 0
          %1128 = vmatprep.subr.bf16.mxu0 0
          %1129 = vmatpush1.bf16.msra.mxu0 0
          %1130 = vmatprep.subr.bf16.mxu0 0
          %1131 = vmatpush1.bf16.msra.mxu0 0
          %1132 = vmatprep.mubr.bf16.mxu0 0
          %1133 = vmatmul.mubr.bf16.gmra.mrb[0].mxu0 %v988
          %v1134 = vpop.f32.mrb[0].mxu0
          %v1135 = vadd.f32 %v1094, %v1134
          %v1136 = vpop.f32.mrb[0].mxu0
          %v1137 = vpop.f32.mrb[0].mxu0
          %v1138 = vadd.f32 %v1097, %v1137
          %v1139 = vpop.f32.mrb[0].mxu0
          %1140 = vdwg.mxu0
          %vm1141 = vsmask.f32 7424
          %v1142 = vshrl.u32 %v840, 16
          %v1144 = vshll.u32 %v840, 16
          %v1146 = vrot.slane %v1144, 1
          %v1147 = vor.u32 %v1142, %v1146
          %v1148 = vshll.u32 %v841, 16
          %v1150 = vrot.slane %v1148, 1
          %v1151 = vsel %vm1141, %v1147, %v1150
          %v1153 = vsel %vm859, %v1151, 0
          %1155 = vmatprep.subr.bf16.mxu0 0
          %1156 = vmatpush1.bf16.msra.mxu0 %v985
          %1157 = vmatprep.subr.bf16.mxu0 0
          %1158 = vmatpush1.bf16.msra.mxu0 0
          %1159 = vmatprep.subr.bf16.mxu0 0
          %1160 = vmatpush1.bf16.msra.mxu0 0
          %1161 = vmatprep.subr.bf16.mxu0 0
          %1162 = vmatpush1.bf16.msra.mxu0 0
          %1163 = vmatprep.subr.bf16.mxu0 0
          %1164 = vmatpush1.bf16.msra.mxu0 0
          %1165 = vmatprep.subr.bf16.mxu0 0
          %1166 = vmatpush1.bf16.msra.mxu0 0
          %1167 = vmatprep.subr.bf16.mxu0 0
          %1168 = vmatpush1.bf16.msra.mxu0 0
          %1169 = vmatprep.subr.bf16.mxu0 0
          %1170 = vmatpush1.bf16.msra.mxu0 0
          %1171 = vmatprep.subr.bf16.mxu0 0
          %1172 = vmatpush1.bf16.msra.mxu0 0
          %1173 = vmatprep.subr.bf16.mxu0 0
          %1174 = vmatpush1.bf16.msra.mxu0 0
          %1175 = vmatprep.subr.bf16.mxu0 0
          %1176 = vmatpush1.bf16.msra.mxu0 0
          %1177 = vmatprep.subr.bf16.mxu0 0
          %1178 = vmatpush1.bf16.msra.mxu0 0
          %1179 = vmatprep.subr.bf16.mxu0 0
          %1180 = vmatpush1.bf16.msra.mxu0 0
          %1181 = vmatprep.subr.bf16.mxu0 0
          %1182 = vmatpush1.bf16.msra.mxu0 0
          %1183 = vmatprep.subr.bf16.mxu0 0
          %1184 = vmatpush1.bf16.msra.mxu0 0
          %1185 = vmatprep.subr.bf16.mxu0 0
          %1186 = vmatpush1.bf16.msra.mxu0 0
          %1187 = vmatprep.mubr.bf16.mxu0 0
          %1188 = vmatmul.mubr.bf16.gmra.mrb[0].mxu0 %v1153
          %v1189 = vpop.f32.mrb[0].mxu0
          %v1190 = vadd.f32 0.0, %v1189
          %v1191 = vpop.f32.mrb[0].mxu0
          %v1192 = vpop.f32.mrb[0].mxu0
          %v1193 = vadd.f32 0.0, %v1192
          %v1194 = vpop.f32.mrb[0].mxu0
          %1195 = vdwg.mxu0
          %v1196 = vadd.f32 %v1135, %v1190
          %v1197 = vadd.f32 %v1138, %v1193
          %v1198 = vadd.f32 %v1196, %v1049
          %v1199 = vadd.f32 %v1197, %v1049
          %v1200 = vpack.c.bf16 %v1052, %v1051
          %v1201 = vld [vmem:[%s4] sm:$0xf]
          %v1202 = vld [vmem:[%s4 + $0x4] sm:$0xf]
          %v1203 = vld [vmem:[%s4 + $0x8] sm:$0xf]
          %v1204 = vld [vmem:[%s4 + $0xc] sm:$0xf]
          %v1205 = vpack.c.bf16 %v1199, %v1198
          %s1206 = scalar_lea.vmem %s4, 16
          %v1207 = vld [vmem:[%s1206] sm:$0xf]
          %v1208 = vld [vmem:[%s1206 + $0x4] sm:$0xf]
          %v1209 = vld [vmem:[%s1206 + $0x8] sm:$0xf]
          %v1210 = vld [vmem:[%s1206 + $0xc] sm:$0xf]
          %v1215 = vunpack.c.l.b16 %v1207
          %v1216 = vunpack.c.l.b16 %v1208
          %v1217 = vunpack.c.l.b16 %v1209
          %v1218 = vunpack.c.l.b16 %v1210
          %v1219 = vpack.c.b16 %v1216, %v1215
          %v1220 = vpack.c.b16 %v1218, %v1217
          %vm1223 = vcmask 261120
          %v1225 = vsel %vm1223, %v1205, 0
          %1227 = vmatprep.subr.bf16.mxu0 0
          %1228 = vmatpush1.bf16.msra.mxu0 %v1219
          %1229 = vmatprep.subr.bf16.mxu0 0
          %1230 = vmatpush1.bf16.msra.mxu0 %v1220
          %1231 = vmatprep.subr.bf16.mxu0 0
          %1232 = vmatpush1.bf16.msra.mxu0 0
          %1233 = vmatprep.subr.bf16.mxu0 0
          %1234 = vmatpush1.bf16.msra.mxu0 0
          %1235 = vmatprep.subr.bf16.mxu0 0
          %1236 = vmatpush1.bf16.msra.mxu0 0
          %1237 = vmatprep.subr.bf16.mxu0 0
          %1238 = vmatpush1.bf16.msra.mxu0 0
          %1239 = vmatprep.subr.bf16.mxu0 0
          %1240 = vmatpush1.bf16.msra.mxu0 0
          %1241 = vmatprep.subr.bf16.mxu0 0
          %1242 = vmatpush1.bf16.msra.mxu0 0
          %1243 = vmatprep.subr.bf16.mxu0 0
          %1244 = vmatpush1.bf16.msra.mxu0 0
          %1245 = vmatprep.subr.bf16.mxu0 0
          %1246 = vmatpush1.bf16.msra.mxu0 0
          %1247 = vmatprep.subr.bf16.mxu0 0
          %1248 = vmatpush1.bf16.msra.mxu0 0
          %1249 = vmatprep.subr.bf16.mxu0 0
          %1250 = vmatpush1.bf16.msra.mxu0 0
          %1251 = vmatprep.subr.bf16.mxu0 0
          %1252 = vmatpush1.bf16.msra.mxu0 0
          %1253 = vmatprep.subr.bf16.mxu0 0
          %1254 = vmatpush1.bf16.msra.mxu0 0
          %1255 = vmatprep.subr.bf16.mxu0 0
          %1256 = vmatpush1.bf16.msra.mxu0 0
          %1257 = vmatprep.subr.bf16.mxu0 0
          %1258 = vmatpush1.bf16.msra.mxu0 0
          %1259 = vmatprep.mubr.bf16.mxu0 0
          %1260 = vmatmul.mubr.bf16.gmra.mrb[0].mxu0 %v1225
          %v1261 = vpop.f32.mrb[0].mxu0
          %v1262 = vadd.f32 0.0, %v1261
          %v1263 = vpop.f32.mrb[0].mxu0
          %v1264 = vpop.f32.mrb[0].mxu0
          %v1265 = vadd.f32 0.0, %v1264
          %v1266 = vpop.f32.mrb[0].mxu0
          %1267 = vdwg.mxu0
          %v1272 = vunpack.c.l.b16 %v1201
          %v1273 = vunpack.c.l.b16 %v1202
          %v1274 = vunpack.c.l.b16 %v1203
          %v1275 = vunpack.c.l.b16 %v1204
          %v1276 = vpack.c.b16 %v1273, %v1272
          %v1277 = vpack.c.b16 %v1275, %v1274
          %v1281 = vsel %vm1223, %v1200, 0
          %1283 = vmatprep.subr.bf16.mxu0 0
          %1284 = vmatpush1.bf16.msra.mxu0 %v1276
          %1285 = vmatprep.subr.bf16.mxu0 0
          %1286 = vmatpush1.bf16.msra.mxu0 %v1277
          %1287 = vmatprep.subr.bf16.mxu0 0
          %1288 = vmatpush1.bf16.msra.mxu0 0
          %1289 = vmatprep.subr.bf16.mxu0 0
          %1290 = vmatpush1.bf16.msra.mxu0 0
          %1291 = vmatprep.subr.bf16.mxu0 0
          %1292 = vmatpush1.bf16.msra.mxu0 0
          %1293 = vmatprep.subr.bf16.mxu0 0
          %1294 = vmatpush1.bf16.msra.mxu0 0
          %1295 = vmatprep.subr.bf16.mxu0 0
          %1296 = vmatpush1.bf16.msra.mxu0 0
          %1297 = vmatprep.subr.bf16.mxu0 0
          %1298 = vmatpush1.bf16.msra.mxu0 0
          %1299 = vmatprep.subr.bf16.mxu0 0
          %1300 = vmatpush1.bf16.msra.mxu0 0
          %1301 = vmatprep.subr.bf16.mxu0 0
          %1302 = vmatpush1.bf16.msra.mxu0 0
          %1303 = vmatprep.subr.bf16.mxu0 0
          %1304 = vmatpush1.bf16.msra.mxu0 0
          %1305 = vmatprep.subr.bf16.mxu0 0
          %1306 = vmatpush1.bf16.msra.mxu0 0
          %1307 = vmatprep.subr.bf16.mxu0 0
          %1308 = vmatpush1.bf16.msra.mxu0 0
          %1309 = vmatprep.subr.bf16.mxu0 0
          %1310 = vmatpush1.bf16.msra.mxu0 0
          %1311 = vmatprep.subr.bf16.mxu0 0
          %1312 = vmatpush1.bf16.msra.mxu0 0
          %1313 = vmatprep.subr.bf16.mxu0 0
          %1314 = vmatpush1.bf16.msra.mxu0 0
          %1315 = vmatprep.mubr.bf16.mxu0 0
          %1316 = vmatmul.mubr.bf16.gmra.mrb[0].mxu0 %v1281
          %v1317 = vpop.f32.mrb[0].mxu0
          %v1318 = vadd.f32 %v1262, %v1317
          %v1319 = vpop.f32.mrb[0].mxu0
          %v1320 = vpop.f32.mrb[0].mxu0
          %v1321 = vadd.f32 %v1265, %v1320
          %v1322 = vpop.f32.mrb[0].mxu0
          %1323 = vdwg.mxu0
          %v1324 = vpack.c.bf16 %v1053, %v1053
          %s1325 = scalar_lea.vmem %s4, 32
          %v1326 = vld [vmem:[%s1325] sm:$0xf]
          %v1327 = vld [vmem:[%s1325 + $0x4] sm:$0xf]
          %v1328 = vld [vmem:[%s1325 + $0x8] sm:$0xf]
          %v1329 = vld [vmem:[%s1325 + $0xc] sm:$0xf]
          %v1330 = vshrl.u32 %v1200, 16
          %v1332 = vshll.u32 %v1200, 16
          %v1334 = vrot.slane %v1332, 1
          %v1335 = vor.u32 %v1330, %v1334
          %v1337 = vshll.u32 %v1324, 16
          %v1339 = vrot.slane %v1337, 1
          %v1340 = vsel %vm1141, %v1335, %v1339
          %v1345 = vunpack.c.l.b16 %v1326
          %v1346 = vunpack.c.l.b16 %v1327
          %v1347 = vunpack.c.l.b16 %v1328
          %v1348 = vunpack.c.l.b16 %v1329
          %v1349 = vpack.c.b16 %v1346, %v1345
          %v1350 = vpack.c.b16 %v1348, %v1347
          %v1354 = vsel %vm1223, %v1340, 0
          %1356 = vmatprep.subr.bf16.mxu0 0
          %1357 = vmatpush1.bf16.msra.mxu0 %v1349
          %1358 = vmatprep.subr.bf16.mxu0 0
          %1359 = vmatpush1.bf16.msra.mxu0 %v1350
          %1360 = vmatprep.subr.bf16.mxu0 0
          %1361 = vmatpush1.bf16.msra.mxu0 0
          %1362 = vmatprep.subr.bf16.mxu0 0
          %1363 = vmatpush1.bf16.msra.mxu0 0
          %1364 = vmatprep.subr.bf16.mxu0 0
          %1365 = vmatpush1.bf16.msra.mxu0 0
          %1366 = vmatprep.subr.bf16.mxu0 0
          %1367 = vmatpush1.bf16.msra.mxu0 0
          %1368 = vmatprep.subr.bf16.mxu0 0
          %1369 = vmatpush1.bf16.msra.mxu0 0
          %1370 = vmatprep.subr.bf16.mxu0 0
          %1371 = vmatpush1.bf16.msra.mxu0 0
          %1372 = vmatprep.subr.bf16.mxu0 0
          %1373 = vmatpush1.bf16.msra.mxu0 0
          %1374 = vmatprep.subr.bf16.mxu0 0
          %1375 = vmatpush1.bf16.msra.mxu0 0
          %1376 = vmatprep.subr.bf16.mxu0 0
          %1377 = vmatpush1.bf16.msra.mxu0 0
          %1378 = vmatprep.subr.bf16.mxu0 0
          %1379 = vmatpush1.bf16.msra.mxu0 0
          %1380 = vmatprep.subr.bf16.mxu0 0
          %1381 = vmatpush1.bf16.msra.mxu0 0
          %1382 = vmatprep.subr.bf16.mxu0 0
          %1383 = vmatpush1.bf16.msra.mxu0 0
          %1384 = vmatprep.subr.bf16.mxu0 0
          %1385 = vmatpush1.bf16.msra.mxu0 0
          %1386 = vmatprep.subr.bf16.mxu0 0
          %1387 = vmatpush1.bf16.msra.mxu0 0
          %1388 = vmatprep.mubr.bf16.mxu0 0
          %1389 = vmatmul.mubr.bf16.gmra.mrb[0].mxu0 %v1354
          %v1390 = vpop.f32.mrb[0].mxu0
          %v1391 = vadd.f32 0.0, %v1390
          %v1392 = vpop.f32.mrb[0].mxu0
          %v1393 = vpop.f32.mrb[0].mxu0
          %v1394 = vadd.f32 0.0, %v1393
          %v1395 = vpop.f32.mrb[0].mxu0
          %1396 = vdwg.mxu0
          %v1397 = vadd.f32 %v1318, %v1391
          %v1398 = vadd.f32 %v1321, %v1394
          %v1399 = vld [vmem:[%s5] sm:$0x1]
          %v1401 = vlaneseq
          %v1402 = vshrl.u32 %v1401, 7
          %v1403 = vsub.s32 0, %v1402
          %v1404 = vrot.slane %v1399, %v1403
          %v1406 = vadd.f32 %v1397, %v1404
          %v1407 = vadd.f32 %v1398, %v1404
          %v1408 = vld [vmem:[%s1] sm:$0xff]
          %v1409 = vld [vmem:[%s1 + $0x8] sm:$0xff]
          %v1410 = vadd.f32 %v1406, %v1408
          %v1411 = vadd.f32 %v1407, %v1409
          %1412 = vst.msk [vmem:[#allocation2] sm:$0xff] %vm1223, %v1410
          %1413 = vst.msk [vmem:[#allocation2 + $0x8] sm:$0xff] %vm1223, %v1411
        $region104: #{ctc_self_attention_forward.1} parent=99 // pred_fallthru
          _
        %v1414 = vld [vmem:[#allocation2] sm:$0xff]
        %v1415 = vld [vmem:[#allocation2 + $0x8] sm:$0xff]
        %v1416 = vpack.c.bf16 %v1415, %v1414
        %v1417 = vld [vmem:[%s792] sm:$0xf]
        %v1418 = vld [vmem:[%s792 + $0x4] sm:$0xf]
        %v1419 = vld [vmem:[%s792 + $0x8] sm:$0xf]
        %v1420 = vld [vmem:[%s792 + $0xc] sm:$0xf]
        %v1421 = vld [vmem:[%s795] sm:$0x1]
        %v1423 = vlaneseq
        %v1424 = vshrl.u32 %v1423, 7
        %v1425 = vsub.s32 0, %v1424
        %v1426 = vrot.slane %v1421, %v1425
        %v1432 = vunpack.c.l.b16 %v1417
        %v1433 = vunpack.c.l.b16 %v1418
        %v1434 = vunpack.c.l.b16 %v1419
        %v1435 = vunpack.c.l.b16 %v1420
        %v1436 = vpack.c.b16 %v1433, %v1432
        %v1437 = vpack.c.b16 %v1435, %v1434
        %vm1440 = vcmask 261120
        %v1442 = vsel %vm1440, %v1416, 0
        %1444 = vmatprep.subr.bf16.mxu0 0
        %1445 = vmatpush1.bf16.msra.mxu0 %v1436
        %1446 = vmatprep.subr.bf16.mxu0 0
        %1447 = vmatpush1.bf16.msra.mxu0 %v1437
        %1448 = vmatprep.subr.bf16.mxu0 0
        %1449 = vmatpush1.bf16.msra.mxu0 0
        %1450 = vmatprep.subr.bf16.mxu0 0
        %1451 = vmatpush1.bf16.msra.mxu0 0
        %1452 = vmatprep.subr.bf16.mxu0 0
        %1453 = vmatpush1.bf16.msra.mxu0 0
        %1454 = vmatprep.subr.bf16.mxu0 0
        %1455 = vmatpush1.bf16.msra.mxu0 0
        %1456 = vmatprep.subr.bf16.mxu0 0
        %1457 = vmatpush1.bf16.msra.mxu0 0
        %1458 = vmatprep.subr.bf16.mxu0 0
        %1459 = vmatpush1.bf16.msra.mxu0 0
        %1460 = vmatprep.subr.bf16.mxu0 0
        %1461 = vmatpush1.bf16.msra.mxu0 0
        %1462 = vmatprep.subr.bf16.mxu0 0
        %1463 = vmatpush1.bf16.msra.mxu0 0
        %1464 = vmatprep.subr.bf16.mxu0 0
        %1465 = vmatpush1.bf16.msra.mxu0 0
        %1466 = vmatprep.subr.bf16.mxu0 0
        %1467 = vmatpush1.bf16.msra.mxu0 0
        %1468 = vmatprep.subr.bf16.mxu0 0
        %1469 = vmatpush1.bf16.msra.mxu0 0
        %1470 = vmatprep.subr.bf16.mxu0 0
        %1471 = vmatpush1.bf16.msra.mxu0 0
        %1472 = vmatprep.subr.bf16.mxu0 0
        %1473 = vmatpush1.bf16.msra.mxu0 0
        %1474 = vmatprep.subr.bf16.mxu0 0
        %1475 = vmatpush1.bf16.msra.mxu0 0
        %1476 = vmatprep.mubr.bf16.mxu0 0
        %1477 = vmatmul.mubr.bf16.gmra.mrb[0].mxu0 %v1442
        %v1478 = vpop.f32.mrb[0].mxu0
        %v1479 = vadd.f32 %v1426, %v1478
        %v1480 = vpop.f32.mrb[0].mxu0
        %v1481 = vpop.f32.mrb[0].mxu0
        %v1482 = vadd.f32 %v1426, %v1481
        %v1483 = vpop.f32.mrb[0].mxu0
        %1484 = vdwg.mxu0
        %v1485 = vpack.c.bf16 %v1482, %v1479
        %1487 = vrot.lane.b32.xlu0 %v1485, 96
        %v1488 = vpop.permute.xlu0 %1487
        %vm1489 = vcmask 64512
        %v1491 = vsel %vm1489, %v1485, 0
        %v1494 = vsel %vm1489, %v1488, 0
        %1496 = vmatprep.subr.bf16.mxu0 0
        %1497 = vmatpush1.bf16.xpose.msra.mxu0 %v1494
        %1498 = vmatprep.subr.bf16.mxu0 0
        %1499 = vmatpush1.bf16.xpose.msra.mxu0 0
        %1500 = vmatprep.subr.bf16.mxu0 0
        %1501 = vmatpush1.bf16.xpose.msra.mxu0 0
        %1502 = vmatprep.subr.bf16.mxu0 0
        %1503 = vmatpush1.bf16.xpose.msra.mxu0 0
        %1504 = vmatprep.subr.bf16.mxu0 0
        %1505 = vmatpush1.bf16.xpose.msra.mxu0 0
        %1506 = vmatprep.subr.bf16.mxu0 0
        %1507 = vmatpush1.bf16.xpose.msra.mxu0 0
        %1508 = vmatprep.subr.bf16.mxu0 0
        %1509 = vmatpush1.bf16.xpose.msra.mxu0 0
        %1510 = vmatprep.subr.bf16.mxu0 0
        %1511 = vmatpush1.bf16.xpose.msra.mxu0 0
        %1512 = vmatprep.subr.bf16.mxu0 0
        %1513 = vmatpush1.bf16.xpose.msra.mxu0 0
        %1514 = vmatprep.subr.bf16.mxu0 0
        %1515 = vmatpush1.bf16.xpose.msra.mxu0 0
        %1516 = vmatprep.subr.bf16.mxu0 0
        %1517 = vmatpush1.bf16.xpose.msra.mxu0 0
        %1518 = vmatprep.subr.bf16.mxu0 0
        %1519 = vmatpush1.bf16.xpose.msra.mxu0 0
        %1520 = vmatprep.subr.bf16.mxu0 0
        %1521 = vmatpush1.bf16.xpose.msra.mxu0 0
        %1522 = vmatprep.subr.bf16.mxu0 0
        %1523 = vmatpush1.bf16.xpose.msra.mxu0 0
        %1524 = vmatprep.subr.bf16.mxu0 0
        %1525 = vmatpush1.bf16.xpose.msra.mxu0 0
        %1526 = vmatprep.subr.bf16.mxu0 0
        %1527 = vmatpush1.bf16.xpose.msra.mxu0 0
        %1528 = vmatprep.mubr.bf16.mxu0 0
        %1529 = vmatmul.mubr.bf16.gmra.mrb[0].mxu0 %v1491
        %v1530 = vpop.f32.mrb[0].mxu0
        %v1531 = vadd.f32 0.0, %v1530
        %v1532 = vpop.f32.mrb[0].mxu0
        %v1533 = vpop.f32.mrb[0].mxu0
        %v1534 = vadd.f32 0.0, %v1533
        %v1535 = vpop.f32.mrb[0].mxu0
        %1536 = vdwg.mxu0
        %v1537 = vmul.f32 %v1531, 0.35355338
        %v1538 = vmul.f32 %v1534, 0.35355338
        %vm1539 = vcmask 130048
        %v1540 = vsel %vm1539, %v1537, -inf
        %1541 = vmax.xlane.f32.xlu0 %v1540
        %v1542 = vpop.xlane.xlu0 %1541
        %v1543 = vsel %vm1539, %v1538, -inf
        %1544 = vmax.xlane.f32.xlu0 %v1543
        %v1545 = vpop.xlane.xlu0 %1544
        %v1546 = vsub.f32 %v1537, %v1542
        %v1547 = vsub.f32 %v1538, %v1545
        %v1548 = vmul.f32 %v1546, 1.442695
        %v1549 = vpow.pop %v1548
        %v1550 = vmul.f32 %v1547, 1.442695
        %v1551 = vpow.pop %v1550
        %v1552 = vsel %vm1539, %v1549, 0.0
        %1553 = vadd.xlane.f32.xlu0 %v1552
        %v1554 = vpop.xlane.xlu0 %1553
        %v1555 = vsel %vm1539, %v1551, 0.0
        %1556 = vadd.xlane.f32.xlu0 %v1555
        %v1557 = vpop.xlane.xlu0 %1556
        %v1558 = vrcp.pop %v1554
        %v1559 = vmul.f32 %v1549, %v1558
        %v1560 = vrcp.pop %v1557
        %v1561 = vmul.f32 %v1551, %v1560
        %v1562 = vpack.c.bf16 %v1561, %v1559
        %1563 = vrot.lane.b32.xlu0 %v1485, 64
        %v1564 = vpop.permute.xlu0 %1563
        %v1567 = vsel %vm1539, %v1562, 0
        %1569 = vmatprep.subr.bf16.mxu0 0
        %1570 = vmatpush1.bf16.msra.mxu0 %v1564
        %1571 = vmatprep.subr.bf16.mxu0 0
        %1572 = vmatpush1.bf16.msra.mxu0 0
        %1573 = vmatprep.subr.bf16.mxu0 0
        %1574 = vmatpush1.bf16.msra.mxu0 0
        %1575 = vmatprep.subr.bf16.mxu0 0
        %1576 = vmatpush1.bf16.msra.mxu0 0
        %1577 = vmatprep.subr.bf16.mxu0 0
        %1578 = vmatpush1.bf16.msra.mxu0 0
        %1579 = vmatprep.subr.bf16.mxu0 0
        %1580 = vmatpush1.bf16.msra.mxu0 0
        %1581 = vmatprep.subr.bf16.mxu0 0
        %1582 = vmatpush1.bf16.msra.mxu0 0
        %1583 = vmatprep.subr.bf16.mxu0 0
        %1584 = vmatpush1.bf16.msra.mxu0 0
        %1585 = vmatprep.subr.bf16.mxu0 0
        %1586 = vmatpush1.bf16.msra.mxu0 0
        %1587 = vmatprep.subr.bf16.mxu0 0
        %1588 = vmatpush1.bf16.msra.mxu0 0
        %1589 = vmatprep.subr.bf16.mxu0 0
        %1590 = vmatpush1.bf16.msra.mxu0 0
        %1591 = vmatprep.subr.bf16.mxu0 0
        %1592 = vmatpush1.bf16.msra.mxu0 0
        %1593 = vmatprep.subr.bf16.mxu0 0
        %1594 = vmatpush1.bf16.msra.mxu0 0
        %1595 = vmatprep.subr.bf16.mxu0 0
        %1596 = vmatpush1.bf16.msra.mxu0 0
        %1597 = vmatprep.subr.bf16.mxu0 0
        %1598 = vmatpush1.bf16.msra.mxu0 0
        %1599 = vmatprep.subr.bf16.mxu0 0
        %1600 = vmatpush1.bf16.msra.mxu0 0
        %1601 = vmatprep.mubr.bf16.mxu0 0
        %1602 = vmatmul.mubr.bf16.gmra.mrb[0].mxu0 %v1567
        %v1603 = vpop.f32.mrb[0].mxu0
        %v1604 = vadd.f32 0.0, %v1603
        %v1605 = vpop.f32.mrb[0].mxu0
        %v1606 = vpop.f32.mrb[0].mxu0
        %v1607 = vadd.f32 0.0, %v1606
        %v1608 = vpop.f32.mrb[0].mxu0
        %1609 = vdwg.mxu0
        %1610 = vrot.lane.b32.xlu0 %v1485, 120
        %v1611 = vpop.permute.xlu0 %1610
        %1612 = vrot.lane.b32.xlu0 %v1485, 88
        %v1613 = vpop.permute.xlu0 %1612
        %v1615 = vsel %vm1489, %v1611, 0
        %v1618 = vsel %vm1489, %v1613, 0
        %1620 = vmatprep.subr.bf16.mxu0 0
        %1621 = vmatpush1.bf16.xpose.msra.mxu0 %v1618
        %1622 = vmatprep.subr.bf16.mxu0 0
        %1623 = vmatpush1.bf16.xpose.msra.mxu0 0
        %1624 = vmatprep.subr.bf16.mxu0 0
        %1625 = vmatpush1.bf16.xpose.msra.mxu0 0
        %1626 = vmatprep.subr.bf16.mxu0 0
        %1627 = vmatpush1.bf16.xpose.msra.mxu0 0
        %1628 = vmatprep.subr.bf16.mxu0 0
        %1629 = vmatpush1.bf16.xpose.msra.mxu0 0
        %1630 = vmatprep.subr.bf16.mxu0 0
        %1631 = vmatpush1.bf16.xpose.msra.mxu0 0
        %1632 = vmatprep.subr.bf16.mxu0 0
        %1633 = vmatpush1.bf16.xpose.msra.mxu0 0
        %1634 = vmatprep.subr.bf16.mxu0 0
        %1635 = vmatpush1.bf16.xpose.msra.mxu0 0
        %1636 = vmatprep.subr.bf16.mxu0 0
        %1637 = vmatpush1.bf16.xpose.msra.mxu0 0
        %1638 = vmatprep.subr.bf16.mxu0 0
        %1639 = vmatpush1.bf16.xpose.msra.mxu0 0
        %1640 = vmatprep.subr.bf16.mxu0 0
        %1641 = vmatpush1.bf16.xpose.msra.mxu0 0
        %1642 = vmatprep.subr.bf16.mxu0 0
        %1643 = vmatpush1.bf16.xpose.msra.mxu0 0
        %1644 = vmatprep.subr.bf16.mxu0 0
        %1645 = vmatpush1.bf16.xpose.msra.mxu0 0
        %1646 = vmatprep.subr.bf16.mxu0 0
        %1647 = vmatpush1.bf16.xpose.msra.mxu0 0
        %1648 = vmatprep.subr.bf16.mxu0 0
        %1649 = vmatpush1.bf16.xpose.msra.mxu0 0
        %1650 = vmatprep.subr.bf16.mxu0 0
        %1651 = vmatpush1.bf16.xpose.msra.mxu0 0
        %1652 = vmatprep.mubr.bf16.mxu0 0
        %1653 = vmatmul.mubr.bf16.gmra.mrb[0].mxu0 %v1615
        %v1654 = vpop.f32.mrb[0].mxu0
        %v1655 = vadd.f32 0.0, %v1654
        %v1656 = vpop.f32.mrb[0].mxu0
        %v1657 = vpop.f32.mrb[0].mxu0
        %v1658 = vadd.f32 0.0, %v1657
        %v1659 = vpop.f32.mrb[0].mxu0
        %1660 = vdwg.mxu0
        %v1661 = vmul.f32 %v1655, 0.35355338
        %v1662 = vmul.f32 %v1658, 0.35355338
        %v1663 = vsel %vm1539, %v1661, -inf
        %1664 = vmax.xlane.f32.xlu0 %v1663
        %v1665 = vpop.xlane.xlu0 %1664
        %v1666 = vsel %vm1539, %v1662, -inf
        %1667 = vmax.xlane.f32.xlu0 %v1666
        %v1668 = vpop.xlane.xlu0 %1667
        %v1669 = vsub.f32 %v1661, %v1665
        %v1670 = vsub.f32 %v1662, %v1668
        %v1671 = vmul.f32 %v1669, 1.442695
        %v1672 = vpow.pop %v1671
        %v1673 = vmul.f32 %v1670, 1.442695
        %v1674 = vpow.pop %v1673
        %v1675 = vsel %vm1539, %v1672, 0.0
        %1676 = vadd.xlane.f32.xlu0 %v1675
        %v1677 = vpop.xlane.xlu0 %1676
        %v1678 = vsel %vm1539, %v1674, 0.0
        %1679 = vadd.xlane.f32.xlu0 %v1678
        %v1680 = vpop.xlane.xlu0 %1679
        %v1681 = vrcp.pop %v1677
        %v1682 = vmul.f32 %v1672, %v1681
        %v1683 = vrcp.pop %v1680
        %v1684 = vmul.f32 %v1674, %v1683
        %v1685 = vpack.c.bf16 %v1684, %v1682
        %1686 = vrot.lane.b32.xlu0 %v1485, 56
        %v1687 = vpop.permute.xlu0 %1686
        %v1690 = vsel %vm1539, %v1685, 0
        %1692 = vmatprep.subr.bf16.mxu0 0
        %1693 = vmatpush1.bf16.msra.mxu0 %v1687
        %1694 = vmatprep.subr.bf16.mxu0 0
        %1695 = vmatpush1.bf16.msra.mxu0 0
        %1696 = vmatprep.subr.bf16.mxu0 0
        %1697 = vmatpush1.bf16.msra.mxu0 0
        %1698 = vmatprep.subr.bf16.mxu0 0
        %1699 = vmatpush1.bf16.msra.mxu0 0
        %1700 = vmatprep.subr.bf16.mxu0 0
        %1701 = vmatpush1.bf16.msra.mxu0 0
        %1702 = vmatprep.subr.bf16.mxu0 0
        %1703 = vmatpush1.bf16.msra.mxu0 0
        %1704 = vmatprep.subr.bf16.mxu0 0
        %1705 = vmatpush1.bf16.msra.mxu0 0
        %1706 = vmatprep.subr.bf16.mxu0 0
        %1707 = vmatpush1.bf16.msra.mxu0 0
        %1708 = vmatprep.subr.bf16.mxu0 0
        %1709 = vmatpush1.bf16.msra.mxu0 0
        %1710 = vmatprep.subr.bf16.mxu0 0
        %1711 = vmatpush1.bf16.msra.mxu0 0
        %1712 = vmatprep.subr.bf16.mxu0 0
        %1713 = vmatpush1.bf16.msra.mxu0 0
        %1714 = vmatprep.subr.bf16.mxu0 0
        %1715 = vmatpush1.bf16.msra.mxu0 0
        %1716 = vmatprep.subr.bf16.mxu0 0
        %1717 = vmatpush1.bf16.msra.mxu0 0
        %1718 = vmatprep.subr.bf16.mxu0 0
        %1719 = vmatpush1.bf16.msra.mxu0 0
        %1720 = vmatprep.subr.bf16.mxu0 0
        %1721 = vmatpush1.bf16.msra.mxu0 0
        %1722 = vmatprep.subr.bf16.mxu0 0
        %1723 = vmatpush1.bf16.msra.mxu0 0
        %1724 = vmatprep.mubr.bf16.mxu0 0
        %1725 = vmatmul.mubr.bf16.gmra.mrb[0].mxu0 %v1690
        %v1726 = vpop.f32.mrb[0].mxu0
        %v1727 = vadd.f32 0.0, %v1726
        %v1728 = vpop.f32.mrb[0].mxu0
        %v1729 = vpop.f32.mrb[0].mxu0
        %v1730 = vadd.f32 0.0, %v1729
        %v1731 = vpop.f32.mrb[0].mxu0
        %1732 = vdwg.mxu0
        %1733 = vrot.lane.b32.xlu0 %v1485, 112
        %v1734 = vpop.permute.xlu0 %1733
        %1735 = vrot.lane.b32.xlu0 %v1485, 80
        %v1736 = vpop.permute.xlu0 %1735
        %v1738 = vsel %vm1489, %v1734, 0
        %v1741 = vsel %vm1489, %v1736, 0
        %1743 = vmatprep.subr.bf16.mxu0 0
        %1744 = vmatpush1.bf16.xpose.msra.mxu0 %v1741
        %1745 = vmatprep.subr.bf16.mxu0 0
        %1746 = vmatpush1.bf16.xpose.msra.mxu0 0
        %1747 = vmatprep.subr.bf16.mxu0 0
        %1748 = vmatpush1.bf16.xpose.msra.mxu0 0
        %1749 = vmatprep.subr.bf16.mxu0 0
        %1750 = vmatpush1.bf16.xpose.msra.mxu0 0
        %1751 = vmatprep.subr.bf16.mxu0 0
        %1752 = vmatpush1.bf16.xpose.msra.mxu0 0
        %1753 = vmatprep.subr.bf16.mxu0 0
        %1754 = vmatpush1.bf16.xpose.msra.mxu0 0
        %1755 = vmatprep.subr.bf16.mxu0 0
        %1756 = vmatpush1.bf16.xpose.msra.mxu0 0
        %1757 = vmatprep.subr.bf16.mxu0 0
        %1758 = vmatpush1.bf16.xpose.msra.mxu0 0
        %1759 = vmatprep.subr.bf16.mxu0 0
        %1760 = vmatpush1.bf16.xpose.msra.mxu0 0
        %1761 = vmatprep.subr.bf16.mxu0 0
        %1762 = vmatpush1.bf16.xpose.msra.mxu0 0
        %1763 = vmatprep.subr.bf16.mxu0 0
        %1764 = vmatpush1.bf16.xpose.msra.mxu0 0
        %1765 = vmatprep.subr.bf16.mxu0 0
        %1766 = vmatpush1.bf16.xpose.msra.mxu0 0
        %1767 = vmatprep.subr.bf16.mxu0 0
        %1768 = vmatpush1.bf16.xpose.msra.mxu0 0
        %1769 = vmatprep.subr.bf16.mxu0 0
        %1770 = vmatpush1.bf16.xpose.msra.mxu0 0
        %1771 = vmatprep.subr.bf16.mxu0 0
        %1772 = vmatpush1.bf16.xpose.msra.mxu0 0
        %1773 = vmatprep.subr.bf16.mxu0 0
        %1774 = vmatpush1.bf16.xpose.msra.mxu0 0
        %1775 = vmatprep.mubr.bf16.mxu0 0
        %1776 = vmatmul.mubr.bf16.gmra.mrb[0].mxu0 %v1738
        %v1777 = vpop.f32.mrb[0].mxu0
        %v1778 = vadd.f32 0.0, %v1777
        %v1779 = vpop.f32.mrb[0].mxu0
        %v1780 = vpop.f32.mrb[0].mxu0
        %v1781 = vadd.f32 0.0, %v1780
        %v1782 = vpop.f32.mrb[0].mxu0
        %1783 = vdwg.mxu0
        %v1784 = vmul.f32 %v1778, 0.35355338
        %v1785 = vmul.f32 %v1781, 0.35355338
        %v1786 = vsel %vm1539, %v1784, -inf
        %1787 = vmax.xlane.f32.xlu0 %v1786
        %v1788 = vpop.xlane.xlu0 %1787
        %v1789 = vsel %vm1539, %v1785, -inf
        %1790 = vmax.xlane.f32.xlu0 %v1789
        %v1791 = vpop.xlane.xlu0 %1790
        %v1792 = vsub.f32 %v1784, %v1788
        %v1793 = vsub.f32 %v1785, %v1791
        %v1794 = vmul.f32 %v1792, 1.442695
        %v1795 = vpow.pop %v1794
        %v1796 = vmul.f32 %v1793, 1.442695
        %v1797 = vpow.pop %v1796
        %v1798 = vsel %vm1539, %v1795, 0.0
        %1799 = vadd.xlane.f32.xlu0 %v1798
        %v1800 = vpop.xlane.xlu0 %1799
        %v1801 = vsel %vm1539, %v1797, 0.0
        %1802 = vadd.xlane.f32.xlu0 %v1801
        %v1803 = vpop.xlane.xlu0 %1802
        %v1804 = vrcp.pop %v1800
        %v1805 = vmul.f32 %v1795, %v1804
        %v1806 = vrcp.pop %v1803
        %v1807 = vmul.f32 %v1797, %v1806
        %v1808 = vpack.c.bf16 %v1807, %v1805
        %1809 = vrot.lane.b32.xlu0 %v1485, 48
        %v1810 = vpop.permute.xlu0 %1809
        %v1813 = vsel %vm1539, %v1808, 0
        %1815 = vmatprep.subr.bf16.mxu0 0
        %1816 = vmatpush1.bf16.msra.mxu0 %v1810
        %1817 = vmatprep.subr.bf16.mxu0 0
        %1818 = vmatpush1.bf16.msra.mxu0 0
        %1819 = vmatprep.subr.bf16.mxu0 0
        %1820 = vmatpush1.bf16.msra.mxu0 0
        %1821 = vmatprep.subr.bf16.mxu0 0
        %1822 = vmatpush1.bf16.msra.mxu0 0
        %1823 = vmatprep.subr.bf16.mxu0 0
        %1824 = vmatpush1.bf16.msra.mxu0 0
        %1825 = vmatprep.subr.bf16.mxu0 0
        %1826 = vmatpush1.bf16.msra.mxu0 0
        %1827 = vmatprep.subr.bf16.mxu0 0
        %1828 = vmatpush1.bf16.msra.mxu0 0
        %1829 = vmatprep.subr.bf16.mxu0 0
        %1830 = vmatpush1.bf16.msra.mxu0 0
        %1831 = vmatprep.subr.bf16.mxu0 0
        %1832 = vmatpush1.bf16.msra.mxu0 0
        %1833 = vmatprep.subr.bf16.mxu0 0
        %1834 = vmatpush1.bf16.msra.mxu0 0
        %1835 = vmatprep.subr.bf16.mxu0 0
        %1836 = vmatpush1.bf16.msra.mxu0 0
        %1837 = vmatprep.subr.bf16.mxu0 0
        %1838 = vmatpush1.bf16.msra.mxu0 0
        %1839 = vmatprep.subr.bf16.mxu0 0
        %1840 = vmatpush1.bf16.msra.mxu0 0
        %1841 = vmatprep.subr.bf16.mxu0 0
        %1842 = vmatpush1.bf16.msra.mxu0 0
        %1843 = vmatprep.subr.bf16.mxu0 0
        %1844 = vmatpush1.bf16.msra.mxu0 0
        %1845 = vmatprep.subr.bf16.mxu0 0
        %1846 = vmatpush1.bf16.msra.mxu0 0
        %1847 = vmatprep.mubr.bf16.mxu0 0
        %1848 = vmatmul.mubr.bf16.gmra.mrb[0].mxu0 %v1813
        %v1849 = vpop.f32.mrb[0].mxu0
        %v1850 = vadd.f32 0.0, %v1849
        %v1851 = vpop.f32.mrb[0].mxu0
        %v1852 = vpop.f32.mrb[0].mxu0
        %v1853 = vadd.f32 0.0, %v1852
        %v1854 = vpop.f32.mrb[0].mxu0
        %1855 = vdwg.mxu0
        %1856 = vrot.lane.b32.xlu0 %v1485, 104
        %v1857 = vpop.permute.xlu0 %1856
        %1858 = vrot.lane.b32.xlu0 %v1485, 72
        %v1859 = vpop.permute.xlu0 %1858
        %v1861 = vsel %vm1489, %v1857, 0
        %v1864 = vsel %vm1489, %v1859, 0
        %1866 = vmatprep.subr.bf16.mxu0 0
        %1867 = vmatpush1.bf16.xpose.msra.mxu0 %v1864
        %1868 = vmatprep.subr.bf16.mxu0 0
        %1869 = vmatpush1.bf16.xpose.msra.mxu0 0
        %1870 = vmatprep.subr.bf16.mxu0 0
        %1871 = vmatpush1.bf16.xpose.msra.mxu0 0
        %1872 = vmatprep.subr.bf16.mxu0 0
        %1873 = vmatpush1.bf16.xpose.msra.mxu0 0
        %1874 = vmatprep.subr.bf16.mxu0 0
        %1875 = vmatpush1.bf16.xpose.msra.mxu0 0
        %1876 = vmatprep.subr.bf16.mxu0 0
        %1877 = vmatpush1.bf16.xpose.msra.mxu0 0
        %1878 = vmatprep.subr.bf16.mxu0 0
        %1879 = vmatpush1.bf16.xpose.msra.mxu0 0
        %1880 = vmatprep.subr.bf16.mxu0 0
        %1881 = vmatpush1.bf16.xpose.msra.mxu0 0
        %1882 = vmatprep.subr.bf16.mxu0 0
        %1883 = vmatpush1.bf16.xpose.msra.mxu0 0
        %1884 = vmatprep.subr.bf16.mxu0 0
        %1885 = vmatpush1.bf16.xpose.msra.mxu0 0
        %1886 = vmatprep.subr.bf16.mxu0 0
        %1887 = vmatpush1.bf16.xpose.msra.mxu0 0
        %1888 = vmatprep.subr.bf16.mxu0 0
        %1889 = vmatpush1.bf16.xpose.msra.mxu0 0
        %1890 = vmatprep.subr.bf16.mxu0 0
        %1891 = vmatpush1.bf16.xpose.msra.mxu0 0
        %1892 = vmatprep.subr.bf16.mxu0 0
        %1893 = vmatpush1.bf16.xpose.msra.mxu0 0
        %1894 = vmatprep.subr.bf16.mxu0 0
        %1895 = vmatpush1.bf16.xpose.msra.mxu0 0
        %1896 = vmatprep.subr.bf16.mxu0 0
        %1897 = vmatpush1.bf16.xpose.msra.mxu0 0
        %1898 = vmatprep.mubr.bf16.mxu0 0
        %1899 = vmatmul.mubr.bf16.gmra.mrb[0].mxu0 %v1861
        %v1900 = vpop.f32.mrb[0].mxu0
        %v1901 = vadd.f32 0.0, %v1900
        %v1902 = vpop.f32.mrb[0].mxu0
        %v1903 = vpop.f32.mrb[0].mxu0
        %v1904 = vadd.f32 0.0, %v1903
        %v1905 = vpop.f32.mrb[0].mxu0
        %1906 = vdwg.mxu0
        %v1907 = vmul.f32 %v1901, 0.35355338
        %v1908 = vmul.f32 %v1904, 0.35355338
        %v1909 = vsel %vm1539, %v1907, -inf
        %1910 = vmax.xlane.f32.xlu0 %v1909
        %v1911 = vpop.xlane.xlu0 %1910
        %v1912 = vsel %vm1539, %v1908, -inf
        %1913 = vmax.xlane.f32.xlu0 %v1912
        %v1914 = vpop.xlane.xlu0 %1913
        %v1915 = vsub.f32 %v1907, %v1911
        %v1916 = vsub.f32 %v1908, %v1914
        %v1917 = vmul.f32 %v1915, 1.442695
        %v1918 = vpow.pop %v1917
        %v1919 = vmul.f32 %v1916, 1.442695
        %v1920 = vpow.pop %v1919
        %v1921 = vsel %vm1539, %v1918, 0.0
        %1922 = vadd.xlane.f32.xlu0 %v1921
        %v1923 = vpop.xlane.xlu0 %1922
        %v1924 = vsel %vm1539, %v1920, 0.0
        %1925 = vadd.xlane.f32.xlu0 %v1924
        %v1926 = vpop.xlane.xlu0 %1925
        %v1927 = vrcp.pop %v1923
        %v1928 = vmul.f32 %v1918, %v1927
        %v1929 = vrcp.pop %v1926
        %v1930 = vmul.f32 %v1920, %v1929
        %v1931 = vpack.c.bf16 %v1930, %v1928
        %1932 = vrot.lane.b32.xlu0 %v1485, 40
        %v1933 = vpop.permute.xlu0 %1932
        %v1936 = vsel %vm1539, %v1931, 0
        %1938 = vmatprep.subr.bf16.mxu0 0
        %1939 = vmatpush1.bf16.msra.mxu0 %v1933
        %1940 = vmatprep.subr.bf16.mxu0 0
        %1941 = vmatpush1.bf16.msra.mxu0 0
        %1942 = vmatprep.subr.bf16.mxu0 0
        %1943 = vmatpush1.bf16.msra.mxu0 0
        %1944 = vmatprep.subr.bf16.mxu0 0
        %1945 = vmatpush1.bf16.msra.mxu0 0
        %1946 = vmatprep.subr.bf16.mxu0 0
        %1947 = vmatpush1.bf16.msra.mxu0 0
        %1948 = vmatprep.subr.bf16.mxu0 0
        %1949 = vmatpush1.bf16.msra.mxu0 0
        %1950 = vmatprep.subr.bf16.mxu0 0
        %1951 = vmatpush1.bf16.msra.mxu0 0
        %1952 = vmatprep.subr.bf16.mxu0 0
        %1953 = vmatpush1.bf16.msra.mxu0 0
        %1954 = vmatprep.subr.bf16.mxu0 0
        %1955 = vmatpush1.bf16.msra.mxu0 0
        %1956 = vmatprep.subr.bf16.mxu0 0
        %1957 = vmatpush1.bf16.msra.mxu0 0
        %1958 = vmatprep.subr.bf16.mxu0 0
        %1959 = vmatpush1.bf16.msra.mxu0 0
        %1960 = vmatprep.subr.bf16.mxu0 0
        %1961 = vmatpush1.bf16.msra.mxu0 0
        %1962 = vmatprep.subr.bf16.mxu0 0
        %1963 = vmatpush1.bf16.msra.mxu0 0
        %1964 = vmatprep.subr.bf16.mxu0 0
        %1965 = vmatpush1.bf16.msra.mxu0 0
        %1966 = vmatprep.subr.bf16.mxu0 0
        %1967 = vmatpush1.bf16.msra.mxu0 0
        %1968 = vmatprep.subr.bf16.mxu0 0
        %1969 = vmatpush1.bf16.msra.mxu0 0
        %1970 = vmatprep.mubr.bf16.mxu0 0
        %1971 = vmatmul.mubr.bf16.gmra.mrb[0].mxu0 %v1936
        %v1972 = vpop.f32.mrb[0].mxu0
        %v1973 = vadd.f32 0.0, %v1972
        %v1974 = vpop.f32.mrb[0].mxu0
        %v1975 = vpop.f32.mrb[0].mxu0
        %v1976 = vadd.f32 0.0, %v1975
        %v1977 = vpop.f32.mrb[0].mxu0
        %1978 = vdwg.mxu0
        %1981 = vrot.lane.b32.xlu0 %v1727, 8
        %v1982 = vpop.permute.xlu0 %1981
        %1983 = vrot.lane.b32.xlu0 %v1730, 8
        %v1984 = vpop.permute.xlu0 %1983
        %1989 = vrot.lane.b32.xlu0 %v1850, 16
        %v1990 = vpop.permute.xlu0 %1989
        %1991 = vrot.lane.b32.xlu0 %v1853, 16
        %v1992 = vpop.permute.xlu0 %1991
        %1997 = vrot.lane.b32.xlu0 %v1973, 24
        %v1998 = vpop.permute.xlu0 %1997
        %1999 = vrot.lane.b32.xlu0 %v1976, 24
        %v2000 = vpop.permute.xlu0 %1999
        %v2003 = vsel %vm1489, %v1604, %v1982
        %v2004 = vsel %vm1489, %v1607, %v1984
        %v2005 = vsel %vm1539, %v2003, %v1990
        %v2006 = vsel %vm1539, %v2004, %v1992
        %vm2007 = vcmask 195584
        %v2008 = vsel %vm2007, %v2005, %v1998
        %v2009 = vsel %vm2007, %v2006, %v2000
        %v2010 = vpack.c.bf16 %v2009, %v2008
        %v2011 = vld [vmem:[%s800] sm:$0xf]
        %v2012 = vld [vmem:[%s800 + $0x4] sm:$0xf]
        %v2013 = vld [vmem:[%s800 + $0x8] sm:$0xf]
        %v2014 = vld [vmem:[%s800 + $0xc] sm:$0xf]
        %v2015 = vld [vmem:[%s803] sm:$0x1]
        %v2017 = vlaneseq
        %v2018 = vshrl.u32 %v2017, 7
        %v2019 = vsub.s32 0, %v2018
        %v2020 = vrot.slane %v2015, %v2019
        %v2026 = vunpack.c.l.b16 %v2011
        %v2027 = vunpack.c.l.b16 %v2012
        %v2028 = vunpack.c.l.b16 %v2013
        %v2029 = vunpack.c.l.b16 %v2014
        %v2030 = vpack.c.b16 %v2027, %v2026
        %v2031 = vpack.c.b16 %v2029, %v2028
        %v2035 = vsel %vm1440, %v2010, 0
        %2037 = vmatprep.subr.bf16.mxu0 0
        %2038 = vmatpush1.bf16.msra.mxu0 %v2030
        %2039 = vmatprep.subr.bf16.mxu0 0
        %2040 = vmatpush1.bf16.msra.mxu0 %v2031
        %2041 = vmatprep.subr.bf16.mxu0 0
        %2042 = vmatpush1.bf16.msra.mxu0 0
        %2043 = vmatprep.subr.bf16.mxu0 0
        %2044 = vmatpush1.bf16.msra.mxu0 0
        %2045 = vmatprep.subr.bf16.mxu0 0
        %2046 = vmatpush1.bf16.msra.mxu0 0
        %2047 = vmatprep.subr.bf16.mxu0 0
        %2048 = vmatpush1.bf16.msra.mxu0 0
        %2049 = vmatprep.subr.bf16.mxu0 0
        %2050 = vmatpush1.bf16.msra.mxu0 0
        %2051 = vmatprep.subr.bf16.mxu0 0
        %2052 = vmatpush1.bf16.msra.mxu0 0
        %2053 = vmatprep.subr.bf16.mxu0 0
        %2054 = vmatpush1.bf16.msra.mxu0 0
        %2055 = vmatprep.subr.bf16.mxu0 0
        %2056 = vmatpush1.bf16.msra.mxu0 0
        %2057 = vmatprep.subr.bf16.mxu0 0
        %2058 = vmatpush1.bf16.msra.mxu0 0
        %2059 = vmatprep.subr.bf16.mxu0 0
        %2060 = vmatpush1.bf16.msra.mxu0 0
        %2061 = vmatprep.subr.bf16.mxu0 0
        %2062 = vmatpush1.bf16.msra.mxu0 0
        %2063 = vmatprep.subr.bf16.mxu0 0
        %2064 = vmatpush1.bf16.msra.mxu0 0
        %2065 = vmatprep.subr.bf16.mxu0 0
        %2066 = vmatpush1.bf16.msra.mxu0 0
        %2067 = vmatprep.subr.bf16.mxu0 0
        %2068 = vmatpush1.bf16.msra.mxu0 0
        %2069 = vmatprep.mubr.bf16.mxu0 0
        %2070 = vmatmul.mubr.bf16.gmra.mrb[0].mxu0 %v2035
        %v2071 = vpop.f32.mrb[0].mxu0
        %v2072 = vadd.f32 %v2020, %v2071
        %v2073 = vpop.f32.mrb[0].mxu0
        %v2074 = vpop.f32.mrb[0].mxu0
        %v2075 = vadd.f32 %v2020, %v2074
        %v2076 = vpop.f32.mrb[0].mxu0
        %2077 = vdwg.mxu0
        %v2078 = vadd.f32 %v1414, %v2072
        %v2079 = vadd.f32 %v1415, %v2075
        %v2080 = vld [vmem:[%s806] sm:$0x1]
        %v2081 = vld [vmem:[%s809] sm:$0x1]
        %v2082 = vsel %vm1440, %v2078, 0.0
        %2083 = vadd.xlane.f32.xlu0 %v2082
        %v2084 = vpop.xlane.xlu0 %2083
        %v2085 = vsel %vm1440, %v2079, 0.0
        %2086 = vadd.xlane.f32.xlu0 %v2085
        %v2087 = vpop.xlane.xlu0 %2086
        %v2088 = vrcp.pop 32.0
        %v2089 = vmul.f32 %v2084, %v2088
        %v2090 = vmul.f32 %v2087, %v2088
        %v2091 = vsub.f32 %v2078, %v2089
        %v2092 = vsub.f32 %v2079, %v2090
        %v2093 = vmul.f32 %v2091, %v2091
        %v2094 = vmul.f32 %v2092, %v2092
        %v2095 = vsel %vm1440, %v2093, 0.0
        %2096 = vadd.xlane.f32.xlu0 %v2095
        %v2097 = vpop.xlane.xlu0 %2096
        %v2098 = vsel %vm1440, %v2094, 0.0
        %2099 = vadd.xlane.f32.xlu0 %v2098
        %v2100 = vpop.xlane.xlu0 %2099
        %v2101 = vmul.f32 %v2097, %v2088
        %v2102 = vmul.f32 %v2100, %v2088
        %v2103 = vadd.f32 %v2101, 1e-05
        %v2104 = vadd.f32 %v2102, 1e-05
        %v2105 = vrsqrt.pop %v2103
        %v2106 = vrsqrt.pop %v2104
        %v2107 = vmul.f32 %v2091, %v2105
        %v2108 = vmul.f32 %v2092, %v2106
        %v2110 = vlaneseq
        %v2111 = vshrl.u32 %v2110, 7
        %v2112 = vsub.s32 0, %v2111
        %v2113 = vrot.slane %v2080, %v2112
        %v2115 = vmul.f32 %v2107, %v2113
        %v2116 = vmul.f32 %v2108, %v2113
        %v2118 = vlaneseq
        %v2119 = vshrl.u32 %v2118, 7
        %v2120 = vsub.s32 0, %v2119
        %v2121 = vrot.slane %v2081, %v2120
        %v2123 = vadd.f32 %v2115, %v2121
        %v2124 = vadd.f32 %v2116, %v2121
        %v2125 = vpack.c.bf16 %v2124, %v2123
        %v2126 = vld [vmem:[%s814] sm:$0xf]
        %v2127 = vld [vmem:[%s814 + $0x4] sm:$0xf]
        %v2128 = vld [vmem:[%s814 + $0x8] sm:$0xf]
        %v2129 = vld [vmem:[%s814 + $0xc] sm:$0xf]
        %v2130 = vld [vmem:[%s817] sm:$0x1]
        %v2132 = vlaneseq
        %v2133 = vshrl.u32 %v2132, 7
        %v2134 = vsub.s32 0, %v2133
        %v2135 = vrot.slane %v2130, %v2134
        %v2141 = vunpack.c.l.b16 %v2126
        %v2142 = vunpack.c.l.b16 %v2127
        %v2143 = vunpack.c.l.b16 %v2128
        %v2144 = vunpack.c.l.b16 %v2129
        %v2145 = vpack.c.b16 %v2142, %v2141
        %v2146 = vpack.c.b16 %v2144, %v2143
        %v2150 = vsel %vm1440, %v2125, 0
        %2152 = vmatprep.subr.bf16.mxu0 0
        %2153 = vmatpush1.bf16.msra.mxu0 %v2145
        %2154 = vmatprep.subr.bf16.mxu0 0
        %2155 = vmatpush1.bf16.msra.mxu0 %v2146
        %2156 = vmatprep.subr.bf16.mxu0 0
        %2157 = vmatpush1.bf16.msra.mxu0 0
        %2158 = vmatprep.subr.bf16.mxu0 0
        %2159 = vmatpush1.bf16.msra.mxu0 0
        %2160 = vmatprep.subr.bf16.mxu0 0
        %2161 = vmatpush1.bf16.msra.mxu0 0
        %2162 = vmatprep.subr.bf16.mxu0 0
        %2163 = vmatpush1.bf16.msra.mxu0 0
        %2164 = vmatprep.subr.bf16.mxu0 0
        %2165 = vmatpush1.bf16.msra.mxu0 0
        %2166 = vmatprep.subr.bf16.mxu0 0
        %2167 = vmatpush1.bf16.msra.mxu0 0
        %2168 = vmatprep.subr.bf16.mxu0 0
        %2169 = vmatpush1.bf16.msra.mxu0 0
        %2170 = vmatprep.subr.bf16.mxu0 0
        %2171 = vmatpush1.bf16.msra.mxu0 0
        %2172 = vmatprep.subr.bf16.mxu0 0
        %2173 = vmatpush1.bf16.msra.mxu0 0
        %2174 = vmatprep.subr.bf16.mxu0 0
        %2175 = vmatpush1.bf16.msra.mxu0 0
        %2176 = vmatprep.subr.bf16.mxu0 0
        %2177 = vmatpush1.bf16.msra.mxu0 0
        %2178 = vmatprep.subr.bf16.mxu0 0
        %2179 = vmatpush1.bf16.msra.mxu0 0
        %2180 = vmatprep.subr.bf16.mxu0 0
        %2181 = vmatpush1.bf16.msra.mxu0 0
        %2182 = vmatprep.subr.bf16.mxu0 0
        %2183 = vmatpush1.bf16.msra.mxu0 0
        %2184 = vmatprep.mubr.bf16.mxu0 0
        %2185 = vmatmul.mubr.bf16.gmra.mrb[0].mxu0 %v2150
        %v2186 = vpop.f32.mrb[0].mxu0
        %v2187 = vadd.f32 %v2135, %v2186
        %v2188 = vpop.f32.mrb[0].mxu0
        %v2189 = vpop.f32.mrb[0].mxu0
        %v2190 = vadd.f32 %v2135, %v2189
        %v2191 = vpop.f32.mrb[0].mxu0
        %2192 = vdwg.mxu0
        %v2193 = vmax.f32 %v2187, 0.0
        %v2194 = vmax.f32 %v2190, 0.0
        %v2195 = vpack.c.bf16 %v2194, %v2193
        %v2196 = vld [vmem:[%s822] sm:$0xf]
        %v2197 = vld [vmem:[%s822 + $0x4] sm:$0xf]
        %v2198 = vld [vmem:[%s822 + $0x8] sm:$0xf]
        %v2199 = vld [vmem:[%s822 + $0xc] sm:$0xf]
        %v2200 = vld [vmem:[%s822 + $0x10] sm:$0xf]
        %v2201 = vld [vmem:[%s822 + $0x14] sm:$0xf]
        %v2202 = vld [vmem:[%s822 + $0x18] sm:$0xf]
        %v2203 = vld [vmem:[%s822 + $0x1c] sm:$0xf]
        %v2204 = vld [vmem:[%s825] sm:$0x1]
        %v2206 = vlaneseq
        %v2207 = vshrl.u32 %v2206, 7
        %v2208 = vsub.s32 0, %v2207
        %v2209 = vrot.slane %v2204, %v2208
        %v2219 = vunpack.c.l.b16 %v2196
        %v2220 = vunpack.c.l.b16 %v2197
        %v2221 = vunpack.c.l.b16 %v2198
        %v2222 = vunpack.c.l.b16 %v2199
        %v2223 = vunpack.c.l.b16 %v2200
        %v2224 = vunpack.c.l.b16 %v2201
        %v2225 = vunpack.c.l.b16 %v2202
        %v2226 = vunpack.c.l.b16 %v2203
        %v2227 = vpack.c.b16 %v2220, %v2219
        %v2228 = vpack.c.b16 %v2222, %v2221
        %v2229 = vpack.c.b16 %v2224, %v2223
        %v2230 = vpack.c.b16 %v2226, %v2225
        %vm2235 = vcmask 523264
        %v2237 = vsel %vm2235, %v2195, 0
        %2239 = vmatprep.subr.bf16.mxu0 0
        %2240 = vmatpush1.bf16.msra.mxu0 %v2227
        %2241 = vmatprep.subr.bf16.mxu0 0
        %2242 = vmatpush1.bf16.msra.mxu0 %v2228
        %2243 = vmatprep.subr.bf16.mxu0 0
        %2244 = vmatpush1.bf16.msra.mxu0 %v2229
        %2245 = vmatprep.subr.bf16.mxu0 0
        %2246 = vmatpush1.bf16.msra.mxu0 %v2230
        %2247 = vmatprep.subr.bf16.mxu0 0
        %2248 = vmatpush1.bf16.msra.mxu0 0
        %2249 = vmatprep.subr.bf16.mxu0 0
        %2250 = vmatpush1.bf16.msra.mxu0 0
        %2251 = vmatprep.subr.bf16.mxu0 0
        %2252 = vmatpush1.bf16.msra.mxu0 0
        %2253 = vmatprep.subr.bf16.mxu0 0
        %2254 = vmatpush1.bf16.msra.mxu0 0
        %2255 = vmatprep.subr.bf16.mxu0 0
        %2256 = vmatpush1.bf16.msra.mxu0 0
        %2257 = vmatprep.subr.bf16.mxu0 0
        %2258 = vmatpush1.bf16.msra.mxu0 0
        %2259 = vmatprep.subr.bf16.mxu0 0
        %2260 = vmatpush1.bf16.msra.mxu0 0
        %2261 = vmatprep.subr.bf16.mxu0 0
        %2262 = vmatpush1.bf16.msra.mxu0 0
        %2263 = vmatprep.subr.bf16.mxu0 0
        %2264 = vmatpush1.bf16.msra.mxu0 0
        %2265 = vmatprep.subr.bf16.mxu0 0
        %2266 = vmatpush1.bf16.msra.mxu0 0
        %2267 = vmatprep.subr.bf16.mxu0 0
        %2268 = vmatpush1.bf16.msra.mxu0 0
        %2269 = vmatprep.subr.bf16.mxu0 0
        %2270 = vmatpush1.bf16.msra.mxu0 0
        %2271 = vmatprep.mubr.bf16.mxu0 0
        %2272 = vmatmul.mubr.bf16.gmra.mrb[0].mxu0 %v2237
        %v2273 = vpop.f32.mrb[0].mxu0
        %v2274 = vadd.f32 %v2209, %v2273
        %v2275 = vpop.f32.mrb[0].mxu0
        %v2276 = vpop.f32.mrb[0].mxu0
        %v2277 = vadd.f32 %v2209, %v2276
        %v2278 = vpop.f32.mrb[0].mxu0
        %2279 = vdwg.mxu0
        %v2280 = vadd.f32 %v2123, %v2274
        %v2281 = vadd.f32 %v2124, %v2277
        %v2282 = vld [vmem:[%s828] sm:$0x1]
        %v2283 = vld [vmem:[%s831] sm:$0x1]
        %v2284 = vsel %vm1440, %v2280, 0.0
        %2285 = vadd.xlane.f32.xlu0 %v2284
        %v2286 = vpop.xlane.xlu0 %2285
        %v2287 = vsel %vm1440, %v2281, 0.0
        %2288 = vadd.xlane.f32.xlu0 %v2287
        %v2289 = vpop.xlane.xlu0 %2288
        %v2290 = vmul.f32 %v2286, %v2088
        %v2291 = vmul.f32 %v2289, %v2088
        %v2292 = vsub.f32 %v2280, %v2290
        %v2293 = vsub.f32 %v2281, %v2291
        %v2294 = vmul.f32 %v2292, %v2292
        %v2295 = vmul.f32 %v2293, %v2293
        %v2296 = vsel %vm1440, %v2294, 0.0
        %2297 = vadd.xlane.f32.xlu0 %v2296
        %v2298 = vpop.xlane.xlu0 %2297
        %v2299 = vsel %vm1440, %v2295, 0.0
        %2300 = vadd.xlane.f32.xlu0 %v2299
        %v2301 = vpop.xlane.xlu0 %2300
        %v2302 = vmul.f32 %v2298, %v2088
        %v2303 = vmul.f32 %v2301, %v2088
        %v2304 = vadd.f32 %v2302, 1e-05
        %v2305 = vadd.f32 %v2303, 1e-05
        %v2306 = vrsqrt.pop %v2304
        %v2307 = vrsqrt.pop %v2305
        %v2308 = vmul.f32 %v2292, %v2306
        %v2309 = vmul.f32 %v2293, %v2307
        %v2311 = vlaneseq
        %v2312 = vshrl.u32 %v2311, 7
        %v2313 = vsub.s32 0, %v2312
        %v2314 = vrot.slane %v2282, %v2313
        %v2316 = vmul.f32 %v2308, %v2314
        %v2317 = vmul.f32 %v2309, %v2314
        %v2319 = vlaneseq
        %v2320 = vshrl.u32 %v2319, 7
        %v2321 = vsub.s32 0, %v2320
        %v2322 = vrot.slane %v2283, %v2321
        %v2324 = vadd.f32 %v2316, %v2322
        %v2325 = vadd.f32 %v2317, %v2322
        %p2326 = scmp.ne.s32.totalorder %s39, 1
        // Predicated region
        $region105: #{ctc_self_attention_forward.1} parent=99 // pred_check
          %p2327 = pneg %p2326
        $region106: #{ctc_self_attention_forward.1} parent=99 // pred_check_branch
          %2329 = sbr.rel (%p2327) target = $region108
        $region107: #{ctc_self_attention_forward.1} parent=99 // pred_region
          %2330 = vst.msk [vmem:[#allocation2] sm:$0xff] %vm1440, %v2324
          %2331 = vst.msk [vmem:[#allocation2 + $0x8] sm:$0xff] %vm1440, %v2325
        $region108: #{ctc_self_attention_forward.1} parent=99 // pred_fallthru
          _
        %p2332 = scmp.eq.s32.totalorder %s39, 1
        // Predicated region
        $region109: #{ctc_self_attention_forward.1} parent=99 // pred_check
          %p2333 = pneg %p2332
        $region110: #{ctc_self_attention_forward.1} parent=99 // pred_check_branch
          %2335 = sbr.rel (%p2333) target = $region112
        $region111: #{ctc_self_attention_forward.1} parent=99 // pred_region
          %v2336 = vpack.c.bf16 %v2325, %v2324
          %v2337 = vld [vmem:[%s18] sm:$0xf]
          %v2338 = vld [vmem:[%s18 + $0x4] sm:$0xf]
          %v2339 = vld [vmem:[%s18 + $0x8] sm:$0xf]
          %v2340 = vld [vmem:[%s18 + $0xc] sm:$0xf]
          %v2341 = vld [vmem:[%s19] sm:$0x1]
          %v2343 = vlaneseq
          %v2344 = vshrl.u32 %v2343, 7
          %v2345 = vsub.s32 0, %v2344
          %v2346 = vrot.slane %v2341, %v2345
          %v2352 = vunpack.c.l.b16 %v2337
          %v2353 = vunpack.c.l.b16 %v2338
          %v2354 = vunpack.c.l.b16 %v2339
          %v2355 = vunpack.c.l.b16 %v2340
          %v2356 = vpack.c.b16 %v2353, %v2352
          %v2357 = vpack.c.b16 %v2355, %v2354
          %v2361 = vsel %vm1440, %v2336, 0
          %2363 = vmatprep.subr.bf16.mxu0 0
          %2364 = vmatpush1.bf16.msra.mxu0 %v2356
          %2365 = vmatprep.subr.bf16.mxu0 0
          %2366 = vmatpush1.bf16.msra.mxu0 %v2357
          %2367 = vmatprep.subr.bf16.mxu0 0
          %2368 = vmatpush1.bf16.msra.mxu0 0
          %2369 = vmatprep.subr.bf16.mxu0 0
          %2370 = vmatpush1.bf16.msra.mxu0 0
          %2371 = vmatprep.subr.bf16.mxu0 0
          %2372 = vmatpush1.bf16.msra.mxu0 0
          %2373 = vmatprep.subr.bf16.mxu0 0
          %2374 = vmatpush1.bf16.msra.mxu0 0
          %2375 = vmatprep.subr.bf16.mxu0 0
          %2376 = vmatpush1.bf16.msra.mxu0 0
          %2377 = vmatprep.subr.bf16.mxu0 0
          %2378 = vmatpush1.bf16.msra.mxu0 0
          %2379 = vmatprep.subr.bf16.mxu0 0
          %2380 = vmatpush1.bf16.msra.mxu0 0
          %2381 = vmatprep.subr.bf16.mxu0 0
          %2382 = vmatpush1.bf16.msra.mxu0 0
          %2383 = vmatprep.subr.bf16.mxu0 0
          %2384 = vmatpush1.bf16.msra.mxu0 0
          %2385 = vmatprep.subr.bf16.mxu0 0
          %2386 = vmatpush1.bf16.msra.mxu0 0
          %2387 = vmatprep.subr.bf16.mxu0 0
          %2388 = vmatpush1.bf16.msra.mxu0 0
          %2389 = vmatprep.subr.bf16.mxu0 0
          %2390 = vmatpush1.bf16.msra.mxu0 0
          %2391 = vmatprep.subr.bf16.mxu0 0
          %2392 = vmatpush1.bf16.msra.mxu0 0
          %2393 = vmatprep.subr.bf16.mxu0 0
          %2394 = vmatpush1.bf16.msra.mxu0 0
          %2395 = vmatprep.mubr.bf16.mxu0 0
          %2396 = vmatmul.mubr.bf16.gmra.mrb[0].mxu0 %v2361
          %v2397 = vpop.f32.mrb[0].mxu0
          %v2398 = vadd.f32 %v2346, %v2397
          %v2399 = vpop.f32.mrb[0].mxu0
          %v2400 = vpop.f32.mrb[0].mxu0
          %v2401 = vadd.f32 %v2346, %v2400
          %v2402 = vpop.f32.mrb[0].mxu0
          %2403 = vdwg.mxu0
          %v2404 = vlaneseq
          %v2405 = vand.u32 %v2404, 127
          %vm2406 = vcmp.lt.s32.totalorder %v2405, 40
          %v2407 = vsel %vm2406, %v2398, -1e+30
          %v2408 = vsel %vm2406, %v2401, -1e+30
          %2409 = vmax.xlane.f32.xlu0 %v2407
          %v2410 = vpop.xlane.xlu0 %2409
          %2411 = vmax.xlane.f32.xlu0 %v2408
          %v2412 = vpop.xlane.xlu0 %2411
          %v2413 = vsub.f32 %v2407, %v2410
          %v2414 = vsub.f32 %v2408, %v2412
          %v2415 = vmul.f32 %v2413, 1.442695
          %v2416 = vpow.pop %v2415
          %v2417 = vmul.f32 %v2414, 1.442695
          %v2418 = vpow.pop %v2417
          %2419 = vadd.xlane.f32.xlu0 %v2416
          %v2420 = vpop.xlane.xlu0 %2419
          %2421 = vadd.xlane.f32.xlu0 %v2418
          %v2422 = vpop.xlane.xlu0 %2421
          %v2423 = vlog2.pop %v2420
          %v2424 = vmul.f32 %v2423, 0.6931472
          %v2425 = vlog2.pop %v2422
          %v2426 = vmul.f32 %v2425, 0.6931472
          %v2427 = vadd.f32 %v2424, %v2410
          %v2428 = vadd.f32 %v2426, %v2412
          %v2429 = vsub.f32 %v2407, %v2427
          %v2430 = vsub.f32 %v2408, %v2428
          %2431 = vst [vmem:[%s782] sm:$0xff] %v2429
          %2432 = vst [vmem:[%s782 + $0x8] sm:$0xff] %v2430
        $region112: #{ctc_self_attention_forward.1} parent=99 // pred_fallthru
          _
        %s2433 = sand.u32 %s539, 1
        %s2434 = scalar_lea.sflag [#allocation4], %s2433
        %s2435 = sand.u32 %s539, 1
        %s2436 = smul.addr %s2435, 16
        %s2437 = scalar_lea.vmem [#allocation3], %s2436
        // Predicated region
        $region113: #{ctc_self_attention_forward.1} parent=99 // pred_check
          %p2438 = pneg %p549
        $region114: #{ctc_self_attention_forward.1} parent=99 // pred_check_branch
          %2440 = sbr.rel (%p2438) target = $region116
        $region115: #{ctc_self_attention_forward.1} parent=99 // pred_region
          %s2442 = ssub.s32 256, 256
          %2443 = vsyncadd %s2434, %s2442
          %s2444 = smul.addr %s38, 2
          %s2445 = smul.addr %s2444, 128
          %s2446 = scalar_lea.hbm %s20, %s2445
          %s2447 = sshll.u32 %s2437, 4
          %s2448 = int_to_ptr.vmem [resolvable:$true] %s2447
          %2453 = dma.vmem_to_hbm [thread:$0]  %s2448, 256, %s2446, %s2434, 128, 128, 8
        $region116: #{ctc_self_attention_forward.1} parent=99 // pred_fallthru
          _
      $region100: #{ctc_self_attention_forward.1} parent=5 // pred_fallthru
        _
      %p2454 = scmp.le.s32.totalorder 2, %s29
      // Predicated region
      $region117: #{ctc_self_attention_forward.1} parent=5 // pred_check
        %p2455 = pneg %p2454
      $region118: #{ctc_self_attention_forward.1} parent=5 // pred_check_branch
        %2457 = sbr.rel (%p2455) target = $region120
      $region119: #{ctc_self_attention_forward.1} parent=5 // pred_region
        %s2458 = ssub.s32 %s29, 2
        // Predicated region
        $region121: #{ctc_self_attention_forward.1} parent=119 // pred_check
          %p2459 = pneg %p555
        $region122: #{ctc_self_attention_forward.1} parent=119 // pred_check_branch
          %2461 = sbr.rel (%p2459) target = $region124
        $region123: #{ctc_self_attention_forward.1} parent=119 // pred_region
          %s2462 = sand.u32 %s540, 1
          %s2463 = scalar_lea.sflag [#allocation4], %s2462
          %s2464 = sand.u32 %s540, 1
          %s2465 = smul.addr %s2464, 16
          %s2466 = scalar_lea.vmem [#allocation3], %s2465
          %2467 = dma.done %s2463, 256
        $region124: #{ctc_self_attention_forward.1} parent=119 // pred_fallthru
          _
      $region120: #{ctc_self_attention_forward.1} parent=5 // pred_fallthru
        _
    $region6: #{ctc_self_attention_forward.1} parent=1 // loop_footer
      %s33 = sadd.s32 1, %s29
    $region7: #{ctc_self_attention_forward.1} parent=1 // loop_footer_branch
      %28 = sbr.rel target = $region3
    $region8: #{ctc_self_attention_forward.1} parent=1 // loop_exit
      _
    %2468 = vsyncpa [#allocation4], 1
    %s2469 = scalar_lea.sflag [#allocation4], 1
    %2470 = vsyncpa %s2469, 1

</llo_original>
